<compile_context>
chip_gen: v7x
topology: tpu7x:2x2x1
jax: 0.10.0
libtpu: 0.0.40
codegen_flags: <defaults>
</compile_context>

<pallas_src>
import jax
import jax.numpy as jnp
from jax.experimental import pallas as pl
from jax.experimental.pallas import tpu as pltpu


_LANE = 128  # weight/output feature dims padded to 128 lanes -> lane-dense MXU tiles & stores


def _round_up(n, m):
    return ((n + m - 1) // m) * m


def _num_tensorcores():
    """2 for dual-TC / megacore parts (v4, v5p, v7x); 1 otherwise (v5e, v6e, unknown)."""
    try:
        kind = jax.devices()[0].device_kind.lower()
    except Exception:
        return 1
    if any(tag in kind for tag in ("v7", "7x", "v4", "v5p")):
        return 2
    return 1


def _pick_block_b(B, num_cores):
    """VMEM-aware batch tile.

    Single-TC chips: one big tile (grid=1 when it fits) — extra grid steps are
    pure per-step overhead on a serial grid.  Dual-TC chips: split so the
    'parallel' batch axis covers both TensorCores with an even step count.
    """
    cap = 1024  # rows; a (1024 x 128-lane) f32 intermediate is only 0.5 MiB
    b8 = _round_up(max(B, 1), 8)
    if num_cores <= 1:
        return min(b8, cap)
    bb = _round_up(pl.cdiv(B, num_cores), 8)
    return max(8, min(bb, cap))


# ----------------------------------------------------------------------------
# Kernel
# ----------------------------------------------------------------------------
def _blackbox_kernel(x_ref, w1_ref, w2_ref, wf1_ref, bf1_ref, wf2_ref, bf2_ref,
                     z_ref, probs_ref, logits_ref):
    cd = w1_ref.dtype                       # MXU input dtype (bf16)
    x = x_ref[...].astype(cd)               # in-kernel cast; hides under the MXU

    # Encoder: Linear(E, E/2, bias=False) -> ReLU -> Linear(E/2, Hz, bias=False)
    h0 = jnp.maximum(
        jnp.dot(x, w1_ref[...], preferred_element_type=jnp.float32), 0.0)
    z = jnp.maximum(
        jnp.dot(h0.astype(cd), w2_ref[...],
                preferred_element_type=jnp.float32), 0.0)           # act_z = ReLU
    z_ref[...] = z.astype(z_ref.dtype)

    # Head: relu(fc1_y(z)) -> fc2_y   (biases broadcast from (1, H) f32 rows)
    h1 = jnp.maximum(
        jnp.dot(z.astype(cd), wf1_ref[...],
                preferred_element_type=jnp.float32) + bf1_ref[...], 0.0)
    logits = (jnp.dot(h1.astype(cd), wf2_ref[...],
                      preferred_element_type=jnp.float32) + bf2_ref[...])
    logits_ref[...] = logits.astype(logits_ref.dtype)

    # Softmax(dim=1). No class mask needed: padded class lanes of bf2 hold
    # -1e30 (wf2 padded columns are 0), so those logits are -1e30 and exp -> 0.
    m = jnp.max(logits, axis=-1, keepdims=True)
    e = jnp.exp(logits - m)
    inv = pl.reciprocal(jnp.sum(e, axis=-1, keepdims=True), approx=False)  # exact norm
    probs_ref[...] = (e * inv).astype(probs_ref.dtype)


# ----------------------------------------------------------------------------
# One-time parameter preparation (hoisted out of the per-call path)
# ----------------------------------------------------------------------------
def prepare_params(params, *, use_bf16=True):
    """Pad feature dims to 128 lanes and cast to the MXU dtype ONCE."""
    cd = jnp.bfloat16 if use_bf16 else jnp.float32
    f32 = jnp.float32
    w1, w2, wf1, bf1, wf2, bf2 = (params[k] for k in
                                  ("w1", "w2", "wf1", "bf1", "wf2", "bf2"))
    E, Eh = w1.shape
    Hz = w2.shape[1]
    Hy = wf1.shape[1]
    C = wf2.shape[1]
    Ehp, Hzp, Hyp, Cp = (_round_up(d, _LANE) for d in (Eh, Hz, Hy, C))

    prepped = {
        # w1 keeps its K dim at the true E so unpadded f32 x is fed directly.
        "w1":  jnp.zeros((E, Ehp), cd).at[:, :Eh].set(w1.astype(cd)),
        "w2":  jnp.zeros((Ehp, Hzp), cd).at[:Eh, :Hz].set(w2.astype(cd)),
        "wf1": jnp.zeros((Hzp, Hyp), cd).at[:Hz, :Hy].set(wf1.astype(cd)),
        "bf1": jnp.zeros((1, Hyp), f32).at[:, :Hy].set(bf1.astype(f32).reshape(1, -1)),
        # wf2 padded columns MUST stay zero; bf2 padded lanes carry the -1e30
        # sentinel that makes the in-kernel class mask unnecessary.
        "wf2": jnp.zeros((Hyp, Cp), cd).at[:Hy, :C].set(wf2.astype(cd)),
        "bf2": jnp.full((1, Cp), -1e30, f32).at[:, :C].set(bf2.astype(f32).reshape(1, -1)),
    }
    dims = dict(E=E, Eh=Eh, Hz=Hz, Hy=Hy, C=C, Ehp=Ehp, Hzp=Hzp, Hyp=Hyp, Cp=Cp)
    return prepped, dims


# ----------------------------------------------------------------------------
# Forward
# ----------------------------------------------------------------------------
def _resident_spec(shape, single_buffer):
    """Constant-index (resident) weight/bias spec; optionally single-buffered."""
    if single_buffer:
        return pl.BlockSpec(shape, lambda i: (0, 0), pipeline_mode=pl.Buffered(1))
    return pl.BlockSpec(shape, lambda i: (0, 0))


_SINGLE_BUFFER_OK = None  # cached: does this jax build accept pl.Buffered(1) here?


def blackbox_forward(x, prepped, dims, *, block_b=None):
    """Fused BlackBox forward.  x: (B, E) f32.  Returns (z, probs, logits)."""
    global _SINGLE_BUFFER_OK
    B, E = x.shape
    assert E == dims["E"], "x feature dim does not match prepared params"
    Ehp, Hzp, Hyp, Cp = dims["Ehp"], dims["Hzp"], dims["Hyp"], dims["Cp"]
    Hz, C = dims["Hz"], dims["C"]
    f32 = jnp.float32

    if block_b is None:
        block_b = _pick_block_b(B, _num_tensorcores())
    grid = (pl.cdiv(B, block_b),)   # ragged last block handled by Pallas

    w1p, w2p, wf1p, bf1p, wf2p, bf2p = (prepped[k] for k in
                                        ("w1", "w2", "wf1", "bf1", "wf2", "bf2"))

    # --- cost / VMEM bookkeeping (advisory) ---
    w_bytes = sum(int(a.size) * a.dtype.itemsize
                  for a in (w1p, w2p, wf1p, bf1p, wf2p, bf2p))
    io_bytes = 2 * (block_b * E * 4 + block_b * (Hzp + 2 * Cp) * 4)  # dbl-buffered x + outs
    tmp_bytes = block_b * (Ehp + Hzp + Hyp + 2 * Cp) * 4             # rough f32 intermediates
    need = 2 * w_bytes + io_bytes + tmp_bytes
    # Realistic scoped-VMEM limit with headroom; well under v7x's 64 MiB/TC.
    vmem_limit = int(min(48 * 1024 * 1024, max(32 * 1024 * 1024, 2 * need)))
    flops = 2 * B * (E * Ehp + Ehp * Hzp + Hzp * Hyp + Hyp * Cp)
    bytes_accessed = 4 * B * E + w_bytes + 4 * B * (Hzp + 2 * Cp)
    cost = pl.CostEstimate(flops=flops, transcendentals=B * Cp,
                           bytes_accessed=bytes_accessed)

    # NOTE: z/logits could be emitted in bf16 if downstream tolerates it
    # (halves the dominant writeback stream); kept f32 to preserve the API.
    out_shape = [
        jax.ShapeDtypeStruct((B, Hzp), f32),
        jax.ShapeDtypeStruct((B, Cp), f32),
        jax.ShapeDtypeStruct((B, Cp), f32),
    ]
    out_specs = [
        pl.BlockSpec((block_b, Hzp), lambda i: (i, 0)),   # z      (lane-dense)
        pl.BlockSpec((block_b, Cp),  lambda i: (i, 0)),   # probs  (lane-dense)
        pl.BlockSpec((block_b, Cp),  lambda i: (i, 0)),   # logits (lane-dense)
    ]

    def run(single_buffer):
        in_specs = [pl.BlockSpec((block_b, E), lambda i: (i, 0))] + [
            _resident_spec(s, single_buffer)
            for s in ((E, Ehp), (Ehp, Hzp), (Hzp, Hyp), (1, Hyp), (Hyp, Cp), (1, Cp))
        ]
        return pl.pallas_call(
            _blackbox_kernel,
            out_shape=out_shape,
            grid_spec=pltpu.PrefetchScalarGridSpec(
                num_scalar_prefetch=0,
                grid=grid,
                in_specs=in_specs,
                out_specs=out_specs,
            ),
            compiler_params=pltpu.CompilerParams(
                dimension_semantics=("parallel",),
                vmem_limit_bytes=vmem_limit,
            ),
            cost_estimate=cost,
        )(x, w1p, w2p, wf1p, bf1p, wf2p, bf2p)

    # Resident weights are single-buffered (Buffered(1)) when supported; probe
    # once and cache so production calls never pay the fallback check again.
    if _SINGLE_BUFFER_OK is None:
        try:
            outs = jax.block_until_ready(run(True))
            _SINGLE_BUFFER_OK = True
        except Exception:
            _SINGLE_BUFFER_OK = False
            outs = run(False)
    else:
        outs = run(_SINGLE_BUFFER_OK)

    z_p, probs_p, logits_p = outs
    # Slice padded lanes back to the true feature/class widths.
    return z_p[:, :Hz], probs_p[:, :C], logits_p[:, :C]


# ----------------------------------------------------------------------------
# Synthetic params + pure-JAX reference
# ----------------------------------------------------------------------------
def init_params(key, emb_size, num_hidden_z, num_hidden_y, num_classes):
    """Deterministic synthetic parameters (weights stored (in, out))."""
    ks = jax.random.split(key, 6)
    half = emb_size // 2
    scale = 0.1
    return {
        "w1":  scale * jax.random.normal(ks[0], (emb_size, half), jnp.float32),
        "w2":  scale * jax.random.normal(ks[1], (half, num_hidden_z), jnp.float32),
        "wf1": scale * jax.random.normal(ks[2], (num_hidden_z, num_hidden_y), jnp.float32),
        "bf1": scale * jax.random.normal(ks[3], (1, num_hidden_y), jnp.float32),
        "wf2": scale * jax.random.normal(ks[4], (num_hidden_y, num_classes), jnp.float32),
        "bf2": scale * jax.random.normal(ks[5], (1, num_classes), jnp.float32),
    }


def _reference_forward(x, p, compute_dtype=jnp.float32):
    """Pure-JAX reference using the same MXU input dtype / f32 accumulation."""
    cd = compute_dtype
    h0 = jnp.maximum(jnp.dot(x.astype(cd), p["w1"].astype(cd),
                             preferred_element_type=jnp.float32), 0.0)
    z = jnp.maximum(jnp.dot(h0.astype(cd), p["w2"].astype(cd),
                            preferred_element_type=jnp.float32), 0.0)
    h1 = jnp.maximum(jnp.dot(z.astype(cd), p["wf1"].astype(cd),
                             preferred_element_type=jnp.float32) + p["bf1"], 0.0)
    logits = jnp.dot(h1.astype(cd), p["wf2"].astype(cd),
                     preferred_element_type=jnp.float32) + p["bf2"]
    probs = jax.nn.softmax(logits, axis=1)
    return z, probs, logits


if __name__ == "__main__":
    # Small shapes consistent with the module's forward:
    #   emb_size=32, num_hidden_z=24, num_hidden_y=20, num_classes=10
    # (B=250 also exercises the ragged batch-edge + lane-slicing paths.)
    B, E, Hz, Hy, C = 250, 32, 24, 20, 10

    key = jax.random.PRNGKey(0)
    kx, kp = jax.random.split(key)
    x = jax.random.normal(kx, (B, E), jnp.float32)
    params = init_params(kp, E, Hz, Hy, C)

    prepped, dims = prepare_params(params)      # one-time pad + bf16 cast
    z, probs, logits = blackbox_forward(x, prepped, dims)
    jax.block_until_ready((z, probs, logits))

    z_ref, probs_ref, logits_ref = _reference_forward(x, params, jnp.bfloat16)
    assert z.shape == (B, Hz) and probs.shape == (B, C) and logits.shape == (B, C)
    assert jnp.allclose(z, z_ref, atol=1e-3, rtol=1e-3)
    assert jnp.allclose(logits, logits_ref, atol=1e-3, rtol=1e-3)
    assert jnp.allclose(probs, probs_ref, atol=2e-3, rtol=2e-3)
    assert jnp.allclose(jnp.sum(probs, axis=1), 1.0, atol=2e-3)

    print("KERNEL_OK")
</pallas_src>

<mosaic_0001>
module attributes {stable_mosaic.version = 11 : i64} {
  func.func @_blackbox_kernel(%arg0: i32, %arg1: memref<256x32xf32, #tpu.memory_space<vmem>>, %arg2: memref<32x128xbf16, #tpu.memory_space<vmem>>, %arg3: memref<128x128xbf16, #tpu.memory_space<vmem>>, %arg4: memref<128x128xbf16, #tpu.memory_space<vmem>>, %arg5: memref<1x128xf32, #tpu.memory_space<vmem>>, %arg6: memref<128x128xbf16, #tpu.memory_space<vmem>>, %arg7: memref<1x128xf32, #tpu.memory_space<vmem>>, %arg8: memref<256x128xf32, #tpu.memory_space<vmem>>, %arg9: memref<256x128xf32, #tpu.memory_space<vmem>>, %arg10: memref<256x128xf32, #tpu.memory_space<vmem>>) attributes {dimension_semantics = [#tpu.dimension_semantics<parallel>], iteration_bounds = array<i64: 1>, scalar_prefetch = 0 : i64, scratch_operands = 0 : i64, tpu.core_type = #tpu.core_type<tc>, window_params = [{transform_indices = @transform_0, window_bounds = array<i64: 256, 32>}, {pipeline_mode = #tpu.pipeline_mode<synchronous>, transform_indices = @transform_1, window_bounds = array<i64: 32, 128>}, {pipeline_mode = #tpu.pipeline_mode<synchronous>, transform_indices = @transform_2, window_bounds = array<i64: 128, 128>}, {pipeline_mode = #tpu.pipeline_mode<synchronous>, transform_indices = @transform_3, window_bounds = array<i64: 128, 128>}, {pipeline_mode = #tpu.pipeline_mode<synchronous>, transform_indices = @transform_4, window_bounds = array<i64: 1, 128>}, {pipeline_mode = #tpu.pipeline_mode<synchronous>, transform_indices = @transform_5, window_bounds = array<i64: 128, 128>}, {pipeline_mode = #tpu.pipeline_mode<synchronous>, transform_indices = @transform_6, window_bounds = array<i64: 1, 128>}, {transform_indices = @transform_7, window_bounds = array<i64: 256, 128>}, {transform_indices = @transform_8, window_bounds = array<i64: 256, 128>}, {transform_indices = @transform_9, window_bounds = array<i64: 256, 128>}]} {
    %c0 = arith.constant 0 : index
    %c0_0 = arith.constant 0 : index
    %0 = vector.load %arg1[%c0, %c0_0] : memref<256x32xf32, #tpu.memory_space<vmem>>, vector<256x32xf32>
    %1 = arith.truncf %0 : vector<256x32xf32> to vector<256x32xbf16>
    %c0_1 = arith.constant 0 : index
    %c0_2 = arith.constant 0 : index
    %2 = vector.load %arg2[%c0_1, %c0_2] : memref<32x128xbf16, #tpu.memory_space<vmem>>, vector<32x128xbf16>
    %cst = arith.constant dense<0.000000e+00> : vector<256x128xf32>
    %3 = tpu.matmul %1, %2, %cst {dimension_numbers = #tpu.dot_dimension_numbers<[1], [0], [0], [1], [0, 0, 1, 1], [], []>} : vector<256x32xbf16>, vector<32x128xbf16>, vector<256x128xf32> -> vector<256x128xf32>
    %cst_3 = arith.constant 0.000000e+00 : f32
    %4 = vector.broadcast %cst_3 : f32 to vector<256x128xf32>
    %5 = arith.maximumf %3, %4 : vector<256x128xf32>
    %6 = arith.truncf %5 : vector<256x128xf32> to vector<256x128xbf16>
    %c0_4 = arith.constant 0 : index
    %c0_5 = arith.constant 0 : index
    %7 = vector.load %arg3[%c0_4, %c0_5] : memref<128x128xbf16, #tpu.memory_space<vmem>>, vector<128x128xbf16>
    %cst_6 = arith.constant dense<0.000000e+00> : vector<256x128xf32>
    %8 = tpu.matmul %6, %7, %cst_6 {dimension_numbers = #tpu.dot_dimension_numbers<[1], [0], [0], [1], [0, 0, 1, 1], [], []>} : vector<256x128xbf16>, vector<128x128xbf16>, vector<256x128xf32> -> vector<256x128xf32>
    %cst_7 = arith.constant 0.000000e+00 : f32
    %9 = vector.broadcast %cst_7 : f32 to vector<256x128xf32>
    %10 = arith.maximumf %8, %9 : vector<256x128xf32>
    %c0_8 = arith.constant 0 : index
    %c0_9 = arith.constant 0 : index
    %11 = vector.load %arg8[%c0_8, %c0_9] : memref<256x128xf32, #tpu.memory_space<vmem>>, vector<256x128xf32>
    tpu.vector_store %arg8[%c0_8, %c0_9], %10 {strides = array<i32>} : memref<256x128xf32, #tpu.memory_space<vmem>>, vector<256x128xf32>,
    %12 = arith.truncf %10 : vector<256x128xf32> to vector<256x128xbf16>
    %c0_10 = arith.constant 0 : index
    %c0_11 = arith.constant 0 : index
    %13 = vector.load %arg4[%c0_10, %c0_11] : memref<128x128xbf16, #tpu.memory_space<vmem>>, vector<128x128xbf16>
    %cst_12 = arith.constant dense<0.000000e+00> : vector<256x128xf32>
    %14 = tpu.matmul %12, %13, %cst_12 {dimension_numbers = #tpu.dot_dimension_numbers<[1], [0], [0], [1], [0, 0, 1, 1], [], []>} : vector<256x128xbf16>, vector<128x128xbf16>, vector<256x128xf32> -> vector<256x128xf32>
    %c0_13 = arith.constant 0 : index
    %c0_14 = arith.constant 0 : index
    %15 = vector.load %arg5[%c0_13, %c0_14] : memref<1x128xf32, #tpu.memory_space<vmem>>, vector<1x128xf32>
    %16 = vector.broadcast %15 : vector<1x128xf32> to vector<256x128xf32>
    %17 = arith.addf %14, %16 : vector<256x128xf32>
    %cst_15 = arith.constant 0.000000e+00 : f32
    %18 = vector.broadcast %cst_15 : f32 to vector<256x128xf32>
    %19 = arith.maximumf %17, %18 : vector<256x128xf32>
    %20 = arith.truncf %19 : vector<256x128xf32> to vector<256x128xbf16>
    %c0_16 = arith.constant 0 : index
    %c0_17 = arith.constant 0 : index
    %21 = vector.load %arg6[%c0_16, %c0_17] : memref<128x128xbf16, #tpu.memory_space<vmem>>, vector<128x128xbf16>
    %cst_18 = arith.constant dense<0.000000e+00> : vector<256x128xf32>
    %22 = tpu.matmul %20, %21, %cst_18 {dimension_numbers = #tpu.dot_dimension_numbers<[1], [0], [0], [1], [0, 0, 1, 1], [], []>} : vector<256x128xbf16>, vector<128x128xbf16>, vector<256x128xf32> -> vector<256x128xf32>
    %c0_19 = arith.constant 0 : index
    %c0_20 = arith.constant 0 : index
    %23 = vector.load %arg7[%c0_19, %c0_20] : memref<1x128xf32, #tpu.memory_space<vmem>>, vector<1x128xf32>
    %24 = vector.broadcast %23 : vector<1x128xf32> to vector<256x128xf32>
    %25 = arith.addf %22, %24 : vector<256x128xf32>
    %c0_21 = arith.constant 0 : index
    %c0_22 = arith.constant 0 : index
    %26 = vector.load %arg10[%c0_21, %c0_22] : memref<256x128xf32, #tpu.memory_space<vmem>>, vector<256x128xf32>
    tpu.vector_store %arg10[%c0_21, %c0_22], %25 {strides = array<i32>} : memref<256x128xf32, #tpu.memory_space<vmem>>, vector<256x128xf32>,
    %cst_23 = arith.constant dense<0xFF800000> : vector<256xf32>
    %27 = vector.multi_reduction <maximumf>, %25, %cst_23 [1] : vector<256x128xf32> to vector<256xf32>
    %28 = vector.shape_cast %27 : vector<256xf32> to vector<256x1xf32>
    %29 = vector.broadcast %28 : vector<256x1xf32> to vector<256x128xf32>
    %30 = arith.subf %25, %29 : vector<256x128xf32>
    %31 = math.exp %30 : vector<256x128xf32>
    %cst_24 = arith.constant dense<0.000000e+00> : vector<256xf32>
    %32 = vector.multi_reduction <add>, %31, %cst_24 [1] : vector<256x128xf32> to vector<256xf32>
    %33 = vector.shape_cast %32 : vector<256xf32> to vector<256x1xf32>
    %34 = tpu.reciprocal %33 : vector<256x1xf32> -> vector<256x1xf32>
    %35 = vector.broadcast %34 : vector<256x1xf32> to vector<256x128xf32>
    %36 = arith.mulf %31, %35 : vector<256x128xf32>
    %c0_25 = arith.constant 0 : index
    %c0_26 = arith.constant 0 : index
    %37 = vector.load %arg9[%c0_25, %c0_26] : memref<256x128xf32, #tpu.memory_space<vmem>>, vector<256x128xf32>
    tpu.vector_store %arg9[%c0_25, %c0_26], %36 {strides = array<i32>} : memref<256x128xf32, #tpu.memory_space<vmem>>, vector<256x128xf32>,
    return
  }
  func.func @transform_0(%arg0: i32) -> (i32, i32) {
    %c0_i32 = arith.constant 0 : i32
    %c0_i32_0 = arith.constant 0 : i32
    return %arg0, %c0_i32 : i32, i32
  }
  func.func @transform_1(%arg0: i32) -> (i32, i32) {
    %c0_i32 = arith.constant 0 : i32
    %c0_i32_0 = arith.constant 0 : i32
    %c0_i32_1 = arith.constant 0 : i32
    return %c0_i32, %c0_i32_0 : i32, i32
  }
  func.func @transform_2(%arg0: i32) -> (i32, i32) {
    %c0_i32 = arith.constant 0 : i32
    %c0_i32_0 = arith.constant 0 : i32
    %c0_i32_1 = arith.constant 0 : i32
    return %c0_i32, %c0_i32_0 : i32, i32
  }
  func.func @transform_3(%arg0: i32) -> (i32, i32) {
    %c0_i32 = arith.constant 0 : i32
    %c0_i32_0 = arith.constant 0 : i32
    %c0_i32_1 = arith.constant 0 : i32
    return %c0_i32, %c0_i32_0 : i32, i32
  }
  func.func @transform_4(%arg0: i32) -> (i32, i32) {
    %c0_i32 = arith.constant 0 : i32
    %c0_i32_0 = arith.constant 0 : i32
    %c0_i32_1 = arith.constant 0 : i32
    return %c0_i32, %c0_i32_0 : i32, i32
  }
  func.func @transform_5(%arg0: i32) -> (i32, i32) {
    %c0_i32 = arith.constant 0 : i32
    %c0_i32_0 = arith.constant 0 : i32
    %c0_i32_1 = arith.constant 0 : i32
    return %c0_i32, %c0_i32_0 : i32, i32
  }
  func.func @transform_6(%arg0: i32) -> (i32, i32) {
    %c0_i32 = arith.constant 0 : i32
    %c0_i32_0 = arith.constant 0 : i32
    %c0_i32_1 = arith.constant 0 : i32
    return %c0_i32, %c0_i32_0 : i32, i32
  }
  func.func @transform_7(%arg0: i32) -> (i32, i32) {
    %c0_i32 = arith.constant 0 : i32
    %c0_i32_0 = arith.constant 0 : i32
    return %arg0, %c0_i32 : i32, i32
  }
  func.func @transform_8(%arg0: i32) -> (i32, i32) {
    %c0_i32 = arith.constant 0 : i32
    %c0_i32_0 = arith.constant 0 : i32
    return %arg0, %c0_i32 : i32, i32
  }
  func.func @transform_9(%arg0: i32) -> (i32, i32) {
    %c0_i32 = arith.constant 0 : i32
    %c0_i32_0 = arith.constant 0 : i32
    return %arg0, %c0_i32 : i32, i32
  }
}

module attributes {stable_mosaic.version = 11 : i64} {
  func.func @_blackbox_kernel(%arg0: i32, %arg1: memref<256x32xf32, #tpu.memory_space<vmem>>, %arg2: memref<32x128xbf16, #tpu.memory_space<vmem>>, %arg3: memref<128x128xbf16, #tpu.memory_space<vmem>>, %arg4: memref<128x128xbf16, #tpu.memory_space<vmem>>, %arg5: memref<1x128xf32, #tpu.memory_space<vmem>>, %arg6: memref<128x128xbf16, #tpu.memory_space<vmem>>, %arg7: memref<1x128xf32, #tpu.memory_space<vmem>>, %arg8: memref<256x128xf32, #tpu.memory_space<vmem>>, %arg9: memref<256x128xf32, #tpu.memory_space<vmem>>, %arg10: memref<256x128xf32, #tpu.memory_space<vmem>>) attributes {dimension_semantics = [#tpu.dimension_semantics<parallel>], iteration_bounds = array<i64: 1>, scalar_prefetch = 0 : i64, scratch_operands = 0 : i64, tpu.core_type = #tpu.core_type<tc>, window_params = [{transform_indices = @transform_0, window_bounds = array<i64: 256, 32>}, {pipeline_mode = #tpu.pipeline_mode<synchronous>, transform_indices = @transform_1, window_bounds = array<i64: 32, 128>}, {pipeline_mode = #tpu.pipeline_mode<synchronous>, transform_indices = @transform_2, window_bounds = array<i64: 128, 128>}, {pipeline_mode = #tpu.pipeline_mode<synchronous>, transform_indices = @transform_3, window_bounds = array<i64: 128, 128>}, {pipeline_mode = #tpu.pipeline_mode<synchronous>, transform_indices = @transform_4, window_bounds = array<i64: 1, 128>}, {pipeline_mode = #tpu.pipeline_mode<synchronous>, transform_indices = @transform_5, window_bounds = array<i64: 128, 128>}, {pipeline_mode = #tpu.pipeline_mode<synchronous>, transform_indices = @transform_6, window_bounds = array<i64: 1, 128>}, {transform_indices = @transform_7, window_bounds = array<i64: 256, 128>}, {transform_indices = @transform_8, window_bounds = array<i64: 256, 128>}, {transform_indices = @transform_9, window_bounds = array<i64: 256, 128>}]} {
    %c0 = arith.constant 0 : index
    %c0_0 = arith.constant 0 : index
    %0 = vector.load %arg1[%c0, %c0_0] : memref<256x32xf32, #tpu.memory_space<vmem>>, vector<256x32xf32>
    %1 = arith.truncf %0 : vector<256x32xf32> to vector<256x32xbf16>
    %c0_1 = arith.constant 0 : index
    %c0_2 = arith.constant 0 : index
    %2 = vector.load %arg2[%c0_1, %c0_2] : memref<32x128xbf16, #tpu.memory_space<vmem>>, vector<32x128xbf16>
    %cst = arith.constant dense<0.000000e+00> : vector<256x128xf32>
    %3 = tpu.matmul %1, %2, %cst {dimension_numbers = #tpu.dot_dimension_numbers<[1], [0], [0], [1], [0, 0, 1, 1], [], []>} : vector<256x32xbf16>, vector<32x128xbf16>, vector<256x128xf32> -> vector<256x128xf32>
    %cst_3 = arith.constant 0.000000e+00 : f32
    %4 = vector.broadcast %cst_3 : f32 to vector<256x128xf32>
    %5 = arith.maximumf %3, %4 : vector<256x128xf32>
    %6 = arith.truncf %5 : vector<256x128xf32> to vector<256x128xbf16>
    %c0_4 = arith.constant 0 : index
    %c0_5 = arith.constant 0 : index
    %7 = vector.load %arg3[%c0_4, %c0_5] : memref<128x128xbf16, #tpu.memory_space<vmem>>, vector<128x128xbf16>
    %cst_6 = arith.constant dense<0.000000e+00> : vector<256x128xf32>
    %8 = tpu.matmul %6, %7, %cst_6 {dimension_numbers = #tpu.dot_dimension_numbers<[1], [0], [0], [1], [0, 0, 1, 1], [], []>} : vector<256x128xbf16>, vector<128x128xbf16>, vector<256x128xf32> -> vector<256x128xf32>
    %cst_7 = arith.constant 0.000000e+00 : f32
    %9 = vector.broadcast %cst_7 : f32 to vector<256x128xf32>
    %10 = arith.maximumf %8, %9 : vector<256x128xf32>
    %c0_8 = arith.constant 0 : index
    %c0_9 = arith.constant 0 : index
    %11 = vector.load %arg8[%c0_8, %c0_9] : memref<256x128xf32, #tpu.memory_space<vmem>>, vector<256x128xf32>
    tpu.vector_store %arg8[%c0_8, %c0_9], %10 {strides = array<i32>} : memref<256x128xf32, #tpu.memory_space<vmem>>, vector<256x128xf32>,
    %12 = arith.truncf %10 : vector<256x128xf32> to vector<256x128xbf16>
    %c0_10 = arith.constant 0 : index
    %c0_11 = arith.constant 0 : index
    %13 = vector.load %arg4[%c0_10, %c0_11] : memref<128x128xbf16, #tpu.memory_space<vmem>>, vector<128x128xbf16>
    %cst_12 = arith.constant dense<0.000000e+00> : vector<256x128xf32>
    %14 = tpu.matmul %12, %13, %cst_12 {dimension_numbers = #tpu.dot_dimension_numbers<[1], [0], [0], [1], [0, 0, 1, 1], [], []>} : vector<256x128xbf16>, vector<128x128xbf16>, vector<256x128xf32> -> vector<256x128xf32>
    %c0_13 = arith.constant 0 : index
    %c0_14 = arith.constant 0 : index
    %15 = vector.load %arg5[%c0_13, %c0_14] : memref<1x128xf32, #tpu.memory_space<vmem>>, vector<1x128xf32>
    %16 = vector.broadcast %15 : vector<1x128xf32> to vector<256x128xf32>
    %17 = arith.addf %14, %16 : vector<256x128xf32>
    %cst_15 = arith.constant 0.000000e+00 : f32
    %18 = vector.broadcast %cst_15 : f32 to vector<256x128xf32>
    %19 = arith.maximumf %17, %18 : vector<256x128xf32>
    %20 = arith.truncf %19 : vector<256x128xf32> to vector<256x128xbf16>
    %c0_16 = arith.constant 0 : index
    %c0_17 = arith.constant 0 : index
    %21 = vector.load %arg6[%c0_16, %c0_17] : memref<128x128xbf16, #tpu.memory_space<vmem>>, vector<128x128xbf16>
    %cst_18 = arith.constant dense<0.000000e+00> : vector<256x128xf32>
    %22 = tpu.matmul %20, %21, %cst_18 {dimension_numbers = #tpu.dot_dimension_numbers<[1], [0], [0], [1], [0, 0, 1, 1], [], []>} : vector<256x128xbf16>, vector<128x128xbf16>, vector<256x128xf32> -> vector<256x128xf32>
    %c0_19 = arith.constant 0 : index
    %c0_20 = arith.constant 0 : index
    %23 = vector.load %arg7[%c0_19, %c0_20] : memref<1x128xf32, #tpu.memory_space<vmem>>, vector<1x128xf32>
    %24 = vector.broadcast %23 : vector<1x128xf32> to vector<256x128xf32>
    %25 = arith.addf %22, %24 : vector<256x128xf32>
    %c0_21 = arith.constant 0 : index
    %c0_22 = arith.constant 0 : index
    %26 = vector.load %arg10[%c0_21, %c0_22] : memref<256x128xf32, #tpu.memory_space<vmem>>, vector<256x128xf32>
    tpu.vector_store %arg10[%c0_21, %c0_22], %25 {strides = array<i32>} : memref<256x128xf32, #tpu.memory_space<vmem>>, vector<256x128xf32>,
    %cst_23 = arith.constant dense<0xFF800000> : vector<256xf32>
    %27 = vector.multi_reduction <maximumf>, %25, %cst_23 [1] : vector<256x128xf32> to vector<256xf32>
    %28 = vector.shape_cast %27 : vector<256xf32> to vector<256x1xf32>
    %29 = vector.broadcast %28 : vector<256x1xf32> to vector<256x128xf32>
    %30 = arith.subf %25, %29 : vector<256x128xf32>
    %31 = math.exp %30 : vector<256x128xf32>
    %cst_24 = arith.constant dense<0.000000e+00> : vector<256xf32>
    %32 = vector.multi_reduction <add>, %31, %cst_24 [1] : vector<256x128xf32> to vector<256xf32>
    %33 = vector.shape_cast %32 : vector<256xf32> to vector<256x1xf32>
    %34 = tpu.reciprocal %33 : vector<256x1xf32> -> vector<256x1xf32>
    %35 = vector.broadcast %34 : vector<256x1xf32> to vector<256x128xf32>
    %36 = arith.mulf %31, %35 : vector<256x128xf32>
    %c0_25 = arith.constant 0 : index
    %c0_26 = arith.constant 0 : index
    %37 = vector.load %arg9[%c0_25, %c0_26] : memref<256x128xf32, #tpu.memory_space<vmem>>, vector<256x128xf32>
    tpu.vector_store %arg9[%c0_25, %c0_26], %36 {strides = array<i32>} : memref<256x128xf32, #tpu.memory_space<vmem>>, vector<256x128xf32>,
    return
  }
  func.func @transform_0(%arg0: i32) -> (i32, i32) {
    %c0_i32 = arith.constant 0 : i32
    %c0_i32_0 = arith.constant 0 : i32
    return %arg0, %c0_i32 : i32, i32
  }
  func.func @transform_1(%arg0: i32) -> (i32, i32) {
    %c0_i32 = arith.constant 0 : i32
    %c0_i32_0 = arith.constant 0 : i32
    %c0_i32_1 = arith.constant 0 : i32
    return %c0_i32, %c0_i32_0 : i32, i32
  }
  func.func @transform_2(%arg0: i32) -> (i32, i32) {
    %c0_i32 = arith.constant 0 : i32
    %c0_i32_0 = arith.constant 0 : i32
    %c0_i32_1 = arith.constant 0 : i32
    return %c0_i32, %c0_i32_0 : i32, i32
  }
  func.func @transform_3(%arg0: i32) -> (i32, i32) {
    %c0_i32 = arith.constant 0 : i32
    %c0_i32_0 = arith.constant 0 : i32
    %c0_i32_1 = arith.constant 0 : i32
    return %c0_i32, %c0_i32_0 : i32, i32
  }
  func.func @transform_4(%arg0: i32) -> (i32, i32) {
    %c0_i32 = arith.constant 0 : i32
    %c0_i32_0 = arith.constant 0 : i32
    %c0_i32_1 = arith.constant 0 : i32
    return %c0_i32, %c0_i32_0 : i32, i32
  }
  func.func @transform_5(%arg0: i32) -> (i32, i32) {
    %c0_i32 = arith.constant 0 : i32
    %c0_i32_0 = arith.constant 0 : i32
    %c0_i32_1 = arith.constant 0 : i32
    return %c0_i32, %c0_i32_0 : i32, i32
  }
  func.func @transform_6(%arg0: i32) -> (i32, i32) {
    %c0_i32 = arith.constant 0 : i32
    %c0_i32_0 = arith.constant 0 : i32
    %c0_i32_1 = arith.constant 0 : i32
    return %c0_i32, %c0_i32_0 : i32, i32
  }
  func.func @transform_7(%arg0: i32) -> (i32, i32) {
    %c0_i32 = arith.constant 0 : i32
    %c0_i32_0 = arith.constant 0 : i32
    return %arg0, %c0_i32 : i32, i32
  }
  func.func @transform_8(%arg0: i32) -> (i32, i32) {
    %c0_i32 = arith.constant 0 : i32
    %c0_i32_0 = arith.constant 0 : i32
    return %arg0, %c0_i32 : i32, i32
  }
  func.func @transform_9(%arg0: i32) -> (i32, i32) {
    %c0_i32 = arith.constant 0 : i32
    %c0_i32_0 = arith.constant 0 : i32
    return %arg0, %c0_i32 : i32, i32
  }
}

</mosaic_0001>

<llo_original>
// kernel: tpu_custom_call.1
$region0: #{tpu_custom_call.1}
  #allocation0 [shape = 'u32[]', space=smem, size = 0x4, offset = 0x4, fixed_abs, tag = 'smem constant byte address 0x4 - core index']
  #allocation1 [shape = 'u32[144,128]{1,0:T(1,128)}', space=vmem, size = 0x12000, scoped, tag = 'internal scratch']
  %s0 = inlined_call_operand.vmem [shape: f32[250,32], index: 0, kind: input, shape index: {}]
  %s1 = inlined_call_operand.vmem [shape: bf16[32,128], index: 1, kind: input, shape index: {}]
  %s2 = inlined_call_operand.vmem [shape: bf16[128,128], index: 2, kind: input, shape index: {}]
  %s3 = inlined_call_operand.vmem [shape: bf16[128,128], index: 3, kind: input, shape index: {}]
  %s4 = inlined_call_operand.vmem [shape: f32[1,128], index: 4, kind: input, shape index: {}]
  %s5 = inlined_call_operand.vmem [shape: bf16[128,128], index: 5, kind: input, shape index: {}]
  %s6 = inlined_call_operand.vmem [shape: f32[1,128], index: 6, kind: input, shape index: {}]
  %s7 = inlined_call_operand.hbm [shape: f32[250,128], index: 7, kind: output, shape index: {0}]
  %s8 = inlined_call_operand.hbm [shape: f32[250,128], index: 8, kind: output, shape index: {1}]
  %s9 = inlined_call_operand.hbm [shape: f32[250,128], index: 9, kind: output, shape index: {2}]
  %10 = xla_tuple %s7, %s8, %s9
  %s11 = sld [smem:[#allocation0]]
  $region54: #{tpu_custom_call.1} parent=0
    _
  %s13 = ssub.s32 1, %s11
  %s14 = scalar_select 0, %s13, %s11
  $region1: #{tpu_custom_call.1} parent=0
    #allocation2 [shape = 'u8[131072]{0}', space=vmem, size = 0x20000, scoped, tag = 'output window, operand 0, single buffered']
    #allocation3 [shape = 's32[1]{0}', space=sflag, size = 0x4, scoped, tag = 'scoped memory for tpu_custom_call.1']
    #allocation4 [shape = 'u8[131072]{0}', space=vmem, size = 0x20000, scoped, tag = 'output window, operand 1, single buffered']
    #allocation5 [shape = 's32[1]{0}', space=sflag, size = 0x4, scoped, tag = 'scoped memory for tpu_custom_call.1']
    #allocation6 [shape = 'u8[131072]{0}', space=vmem, size = 0x20000, scoped, tag = 'output window, operand 2, single buffered']
    %15 = vsyncpa [#allocation3], 0
    %16 = vsyncpa [#allocation5], 0
    // Predicated region
    $region2: #{tpu_custom_call.1} parent=1 // pred_check
      _
    $region3: #{tpu_custom_call.1} parent=1 // pred_check_branch
      %18 = sbr.rel (0) target = $region5
    $region4: #{tpu_custom_call.1} parent=1 // pred_region
      _
    $region5: #{tpu_custom_call.1} parent=1 // pred_fallthru
      _
    // Predicated region
    $region6: #{tpu_custom_call.1} parent=1 // pred_check
      _
    $region7: #{tpu_custom_call.1} parent=1 // pred_check_branch
      %20 = sbr.rel (0) target = $region9
    $region8: #{tpu_custom_call.1} parent=1 // pred_region
      _
    $region9: #{tpu_custom_call.1} parent=1 // pred_fallthru
      _
    // Predicated region
    $region10: #{tpu_custom_call.1} parent=1 // pred_check
      _
    $region11: #{tpu_custom_call.1} parent=1 // pred_check_branch
      %22 = sbr.rel (0) target = $region13
    $region12: #{tpu_custom_call.1} parent=1 // pred_region
      _
    $region13: #{tpu_custom_call.1} parent=1 // pred_fallthru
      _
    // Predicated region
    $region14: #{tpu_custom_call.1} parent=1 // pred_check
      _
    $region15: #{tpu_custom_call.1} parent=1 // pred_check_branch
      %24 = sbr.rel (0) target = $region17
    $region16: #{tpu_custom_call.1} parent=1 // pred_region
      _
    $region17: #{tpu_custom_call.1} parent=1 // pred_fallthru
      _
    // Predicated region
    $region18: #{tpu_custom_call.1} parent=1 // pred_check
      _
    $region19: #{tpu_custom_call.1} parent=1 // pred_check_branch
      %26 = sbr.rel (0) target = $region21
    $region20: #{tpu_custom_call.1} parent=1 // pred_region
      _
    $region21: #{tpu_custom_call.1} parent=1 // pred_fallthru
      _
    // Predicated region
    $region22: #{tpu_custom_call.1} parent=1 // pred_check
      _
    $region23: #{tpu_custom_call.1} parent=1 // pred_check_branch
      %28 = sbr.rel (0) target = $region25
    $region24: #{tpu_custom_call.1} parent=1 // pred_region
      _
    $region25: #{tpu_custom_call.1} parent=1 // pred_fallthru
      _
    // Predicated region
    $region26: #{tpu_custom_call.1} parent=1 // pred_check
      _
    $region27: #{tpu_custom_call.1} parent=1 // pred_check_branch
      %30 = sbr.rel (0) target = $region29
    $region28: #{tpu_custom_call.1} parent=1 // pred_region
      _
    $region29: #{tpu_custom_call.1} parent=1 // pred_fallthru
      _
    %v32 = vld [vmem:[%s0] sm:$0xff]
    %v33 = vld [vmem:[%s0 + $0x8] sm:$0xff]
    %v34 = vld [vmem:[%s0 + $0x10] sm:$0xff]
    %v35 = vld [vmem:[%s0 + $0x18] sm:$0xff]
    %v36 = vld [vmem:[%s0 + $0x20] sm:$0xff]
    %v37 = vld [vmem:[%s0 + $0x28] sm:$0xff]
    %v38 = vld [vmem:[%s0 + $0x30] sm:$0xff]
    %v39 = vld [vmem:[%s0 + $0x38] sm:$0xff]
    %v40 = vld [vmem:[%s0 + $0x40] sm:$0xff]
    %v41 = vld [vmem:[%s0 + $0x48] sm:$0xff]
    %v42 = vld [vmem:[%s0 + $0x50] sm:$0xff]
    %v43 = vld [vmem:[%s0 + $0x58] sm:$0xff]
    %v44 = vld [vmem:[%s0 + $0x60] sm:$0xff]
    %v45 = vld [vmem:[%s0 + $0x68] sm:$0xff]
    %v46 = vld [vmem:[%s0 + $0x70] sm:$0xff]
    %v47 = vld [vmem:[%s0 + $0x78] sm:$0xff]
    %v48 = vld [vmem:[%s0 + $0x80] sm:$0xff]
    %v49 = vld [vmem:[%s0 + $0x88] sm:$0xff]
    %v50 = vld [vmem:[%s0 + $0x90] sm:$0xff]
    %v51 = vld [vmem:[%s0 + $0x98] sm:$0xff]
    %v52 = vld [vmem:[%s0 + $0xa0] sm:$0xff]
    %v53 = vld [vmem:[%s0 + $0xa8] sm:$0xff]
    %v54 = vld [vmem:[%s0 + $0xb0] sm:$0xff]
    %v55 = vld [vmem:[%s0 + $0xb8] sm:$0xff]
    %v56 = vld [vmem:[%s0 + $0xc0] sm:$0xff]
    %v57 = vld [vmem:[%s0 + $0xc8] sm:$0xff]
    %v58 = vld [vmem:[%s0 + $0xd0] sm:$0xff]
    %v59 = vld [vmem:[%s0 + $0xd8] sm:$0xff]
    %v60 = vld [vmem:[%s0 + $0xe0] sm:$0xff]
    %v61 = vld [vmem:[%s0 + $0xe8] sm:$0xff]
    %v62 = vld [vmem:[%s0 + $0xf0] sm:$0xff]
    %v63 = vld [vmem:[%s0 + $0xf8] sm:$0xff]
    %v64 = vpack.c.bf16 %v33, %v32
    %v65 = vpack.c.bf16 %v35, %v34
    %v66 = vpack.c.bf16 %v37, %v36
    %v67 = vpack.c.bf16 %v39, %v38
    %v68 = vpack.c.bf16 %v41, %v40
    %v69 = vpack.c.bf16 %v43, %v42
    %v70 = vpack.c.bf16 %v45, %v44
    %v71 = vpack.c.bf16 %v47, %v46
    %v72 = vpack.c.bf16 %v49, %v48
    %v73 = vpack.c.bf16 %v51, %v50
    %v74 = vpack.c.bf16 %v53, %v52
    %v75 = vpack.c.bf16 %v55, %v54
    %v76 = vpack.c.bf16 %v57, %v56
    %v77 = vpack.c.bf16 %v59, %v58
    %v78 = vpack.c.bf16 %v61, %v60
    %v79 = vpack.c.bf16 %v63, %v62
    %v80 = vld [vmem:[%s1] sm:$0xf]
    %v81 = vld [vmem:[%s1 + $0x4] sm:$0xf]
    %v82 = vld [vmem:[%s1 + $0x8] sm:$0xf]
    %v83 = vld [vmem:[%s1 + $0xc] sm:$0xf]
    %v88 = vunpack.c.l.b16 %v80
    %v89 = vunpack.c.l.b16 %v81
    %v90 = vunpack.c.l.b16 %v82
    %v91 = vunpack.c.l.b16 %v83
    %v92 = vpack.c.b16 %v89, %v88
    %v93 = vpack.c.b16 %v91, %v90
    %vm96 = vcmask 261120
    %v98 = vsel %vm96, %v64, 0
    %v101 = vsel %vm96, %v65, 0
    %v104 = vsel %vm96, %v66, 0
    %v107 = vsel %vm96, %v67, 0
    %v110 = vsel %vm96, %v68, 0
    %v113 = vsel %vm96, %v69, 0
    %v116 = vsel %vm96, %v70, 0
    %v119 = vsel %vm96, %v71, 0
    %v122 = vsel %vm96, %v72, 0
    %v125 = vsel %vm96, %v73, 0
    %v128 = vsel %vm96, %v74, 0
    %v131 = vsel %vm96, %v75, 0
    %v134 = vsel %vm96, %v76, 0
    %v137 = vsel %vm96, %v77, 0
    %v140 = vsel %vm96, %v78, 0
    %v143 = vsel %vm96, %v79, 0
    %145 = vmatprep.subr.bf16.mxu0 0
    %146 = vmatpush1.bf16.msra.mxu0 %v92
    %147 = vmatprep.subr.bf16.mxu0 0
    %148 = vmatpush1.bf16.msra.mxu0 %v93
    %149 = vmatprep.subr.bf16.mxu0 0
    %150 = vmatpush1.bf16.msra.mxu0 0
    %151 = vmatprep.subr.bf16.mxu0 0
    %152 = vmatpush1.bf16.msra.mxu0 0
    %153 = vmatprep.subr.bf16.mxu0 0
    %154 = vmatpush1.bf16.msra.mxu0 0
    %155 = vmatprep.subr.bf16.mxu0 0
    %156 = vmatpush1.bf16.msra.mxu0 0
    %157 = vmatprep.subr.bf16.mxu0 0
    %158 = vmatpush1.bf16.msra.mxu0 0
    %159 = vmatprep.subr.bf16.mxu0 0
    %160 = vmatpush1.bf16.msra.mxu0 0
    %161 = vmatprep.subr.bf16.mxu0 0
    %162 = vmatpush1.bf16.msra.mxu0 0
    %163 = vmatprep.subr.bf16.mxu0 0
    %164 = vmatpush1.bf16.msra.mxu0 0
    %165 = vmatprep.subr.bf16.mxu0 0
    %166 = vmatpush1.bf16.msra.mxu0 0
    %167 = vmatprep.subr.bf16.mxu0 0
    %168 = vmatpush1.bf16.msra.mxu0 0
    %169 = vmatprep.subr.bf16.mxu0 0
    %170 = vmatpush1.bf16.msra.mxu0 0
    %171 = vmatprep.subr.bf16.mxu0 0
    %172 = vmatpush1.bf16.msra.mxu0 0
    %173 = vmatprep.subr.bf16.mxu0 0
    %174 = vmatpush1.bf16.msra.mxu0 0
    %175 = vmatprep.subr.bf16.mxu0 0
    %176 = vmatpush1.bf16.msra.mxu0 0
    %177 = vmatprep.mubr.bf16.mxu0 0
    %178 = vmatmul.mubr.bf16.gmra.mrb[0].mxu0 %v98
    %v179 = vpop.f32.mrb[0].mxu0
    %v180 = vadd.f32 0.0, %v179
    %v181 = vpop.f32.mrb[0].mxu0
    %v182 = vpop.f32.mrb[0].mxu0
    %v183 = vadd.f32 0.0, %v182
    %v184 = vpop.f32.mrb[0].mxu0
    %185 = vmatprep.mubr.bf16.mxu0 0
    %186 = vmatmul.mubr.bf16.gmra.mrb[0].mxu0 %v101
    %v187 = vpop.f32.mrb[0].mxu0
    %v188 = vadd.f32 0.0, %v187
    %v189 = vpop.f32.mrb[0].mxu0
    %v190 = vpop.f32.mrb[0].mxu0
    %v191 = vadd.f32 0.0, %v190
    %v192 = vpop.f32.mrb[0].mxu0
    %193 = vmatprep.mubr.bf16.mxu0 0
    %194 = vmatmul.mubr.bf16.gmra.mrb[0].mxu0 %v104
    %v195 = vpop.f32.mrb[0].mxu0
    %v196 = vadd.f32 0.0, %v195
    %v197 = vpop.f32.mrb[0].mxu0
    %v198 = vpop.f32.mrb[0].mxu0
    %v199 = vadd.f32 0.0, %v198
    %v200 = vpop.f32.mrb[0].mxu0
    %201 = vmatprep.mubr.bf16.mxu0 0
    %202 = vmatmul.mubr.bf16.gmra.mrb[0].mxu0 %v107
    %v203 = vpop.f32.mrb[0].mxu0
    %v204 = vadd.f32 0.0, %v203
    %v205 = vpop.f32.mrb[0].mxu0
    %v206 = vpop.f32.mrb[0].mxu0
    %v207 = vadd.f32 0.0, %v206
    %v208 = vpop.f32.mrb[0].mxu0
    %209 = vmatprep.mubr.bf16.mxu0 0
    %210 = vmatmul.mubr.bf16.gmra.mrb[0].mxu0 %v110
    %v211 = vpop.f32.mrb[0].mxu0
    %v212 = vadd.f32 0.0, %v211
    %v213 = vpop.f32.mrb[0].mxu0
    %v214 = vpop.f32.mrb[0].mxu0
    %v215 = vadd.f32 0.0, %v214
    %v216 = vpop.f32.mrb[0].mxu0
    %217 = vmatprep.mubr.bf16.mxu0 0
    %218 = vmatmul.mubr.bf16.gmra.mrb[0].mxu0 %v113
    %v219 = vpop.f32.mrb[0].mxu0
    %v220 = vadd.f32 0.0, %v219
    %v221 = vpop.f32.mrb[0].mxu0
    %v222 = vpop.f32.mrb[0].mxu0
    %v223 = vadd.f32 0.0, %v222
    %v224 = vpop.f32.mrb[0].mxu0
    %225 = vmatprep.mubr.bf16.mxu0 0
    %226 = vmatmul.mubr.bf16.gmra.mrb[0].mxu0 %v116
    %v227 = vpop.f32.mrb[0].mxu0
    %v228 = vadd.f32 0.0, %v227
    %v229 = vpop.f32.mrb[0].mxu0
    %v230 = vpop.f32.mrb[0].mxu0
    %v231 = vadd.f32 0.0, %v230
    %v232 = vpop.f32.mrb[0].mxu0
    %233 = vmatprep.mubr.bf16.mxu0 0
    %234 = vmatmul.mubr.bf16.gmra.mrb[0].mxu0 %v119
    %v235 = vpop.f32.mrb[0].mxu0
    %v236 = vadd.f32 0.0, %v235
    %v237 = vpop.f32.mrb[0].mxu0
    %v238 = vpop.f32.mrb[0].mxu0
    %v239 = vadd.f32 0.0, %v238
    %v240 = vpop.f32.mrb[0].mxu0
    %241 = vmatprep.mubr.bf16.mxu0 0
    %242 = vmatmul.mubr.bf16.gmra.mrb[0].mxu0 %v122
    %v243 = vpop.f32.mrb[0].mxu0
    %v244 = vadd.f32 0.0, %v243
    %v245 = vpop.f32.mrb[0].mxu0
    %v246 = vpop.f32.mrb[0].mxu0
    %v247 = vadd.f32 0.0, %v246
    %v248 = vpop.f32.mrb[0].mxu0
    %249 = vmatprep.mubr.bf16.mxu0 0
    %250 = vmatmul.mubr.bf16.gmra.mrb[0].mxu0 %v125
    %v251 = vpop.f32.mrb[0].mxu0
    %v252 = vadd.f32 0.0, %v251
    %v253 = vpop.f32.mrb[0].mxu0
    %v254 = vpop.f32.mrb[0].mxu0
    %v255 = vadd.f32 0.0, %v254
    %v256 = vpop.f32.mrb[0].mxu0
    %257 = vmatprep.mubr.bf16.mxu0 0
    %258 = vmatmul.mubr.bf16.gmra.mrb[0].mxu0 %v128
    %v259 = vpop.f32.mrb[0].mxu0
    %v260 = vadd.f32 0.0, %v259
    %v261 = vpop.f32.mrb[0].mxu0
    %v262 = vpop.f32.mrb[0].mxu0
    %v263 = vadd.f32 0.0, %v262
    %v264 = vpop.f32.mrb[0].mxu0
    %265 = vmatprep.mubr.bf16.mxu0 0
    %266 = vmatmul.mubr.bf16.gmra.mrb[0].mxu0 %v131
    %v267 = vpop.f32.mrb[0].mxu0
    %v268 = vadd.f32 0.0, %v267
    %v269 = vpop.f32.mrb[0].mxu0
    %v270 = vpop.f32.mrb[0].mxu0
    %v271 = vadd.f32 0.0, %v270
    %v272 = vpop.f32.mrb[0].mxu0
    %273 = vmatprep.mubr.bf16.mxu0 0
    %274 = vmatmul.mubr.bf16.gmra.mrb[0].mxu0 %v134
    %v275 = vpop.f32.mrb[0].mxu0
    %v276 = vadd.f32 0.0, %v275
    %v277 = vpop.f32.mrb[0].mxu0
    %v278 = vpop.f32.mrb[0].mxu0
    %v279 = vadd.f32 0.0, %v278
    %v280 = vpop.f32.mrb[0].mxu0
    %281 = vmatprep.mubr.bf16.mxu0 0
    %282 = vmatmul.mubr.bf16.gmra.mrb[0].mxu0 %v137
    %v283 = vpop.f32.mrb[0].mxu0
    %v284 = vadd.f32 0.0, %v283
    %v285 = vpop.f32.mrb[0].mxu0
    %v286 = vpop.f32.mrb[0].mxu0
    %v287 = vadd.f32 0.0, %v286
    %v288 = vpop.f32.mrb[0].mxu0
    %289 = vmatprep.mubr.bf16.mxu0 0
    %290 = vmatmul.mubr.bf16.gmra.mrb[0].mxu0 %v140
    %v291 = vpop.f32.mrb[0].mxu0
    %v292 = vadd.f32 0.0, %v291
    %v293 = vpop.f32.mrb[0].mxu0
    %v294 = vpop.f32.mrb[0].mxu0
    %v295 = vadd.f32 0.0, %v294
    %v296 = vpop.f32.mrb[0].mxu0
    %297 = vmatprep.mubr.bf16.mxu0 0
    %298 = vmatmul.mubr.bf16.gmra.mrb[0].mxu0 %v143
    %v299 = vpop.f32.mrb[0].mxu0
    %v300 = vadd.f32 0.0, %v299
    %v301 = vpop.f32.mrb[0].mxu0
    %v302 = vpop.f32.mrb[0].mxu0
    %v303 = vadd.f32 0.0, %v302
    %v304 = vpop.f32.mrb[0].mxu0
    %305 = vdwg.mxu0
    %v306 = vmax.f32 %v180, 0.0
    %v307 = vmax.f32 %v183, 0.0
    %v308 = vmax.f32 %v188, 0.0
    %v309 = vmax.f32 %v191, 0.0
    %v310 = vmax.f32 %v196, 0.0
    %v311 = vmax.f32 %v199, 0.0
    %v312 = vmax.f32 %v204, 0.0
    %v313 = vmax.f32 %v207, 0.0
    %v314 = vmax.f32 %v212, 0.0
    %v315 = vmax.f32 %v215, 0.0
    %v316 = vmax.f32 %v220, 0.0
    %v317 = vmax.f32 %v223, 0.0
    %v318 = vmax.f32 %v228, 0.0
    %v319 = vmax.f32 %v231, 0.0
    %v320 = vmax.f32 %v236, 0.0
    %v321 = vmax.f32 %v239, 0.0
    %v322 = vmax.f32 %v244, 0.0
    %v323 = vmax.f32 %v247, 0.0
    %v324 = vmax.f32 %v252, 0.0
    %v325 = vmax.f32 %v255, 0.0
    %v326 = vmax.f32 %v260, 0.0
    %v327 = vmax.f32 %v263, 0.0
    %v328 = vmax.f32 %v268, 0.0
    %v329 = vmax.f32 %v271, 0.0
    %v330 = vmax.f32 %v276, 0.0
    %v331 = vmax.f32 %v279, 0.0
    %v332 = vmax.f32 %v284, 0.0
    %v333 = vmax.f32 %v287, 0.0
    %v334 = vmax.f32 %v292, 0.0
    %v335 = vmax.f32 %v295, 0.0
    %v336 = vmax.f32 %v300, 0.0
    %v337 = vmax.f32 %v303, 0.0
    %v338 = vpack.c.bf16 %v307, %v306
    %v339 = vpack.c.bf16 %v309, %v308
    %v340 = vpack.c.bf16 %v311, %v310
    %v341 = vpack.c.bf16 %v313, %v312
    %v342 = vpack.c.bf16 %v315, %v314
    %v343 = vpack.c.bf16 %v317, %v316
    %v344 = vpack.c.bf16 %v319, %v318
    %v345 = vpack.c.bf16 %v321, %v320
    %v346 = vpack.c.bf16 %v323, %v322
    %v347 = vpack.c.bf16 %v325, %v324
    %v348 = vpack.c.bf16 %v327, %v326
    %v349 = vpack.c.bf16 %v329, %v328
    %v350 = vpack.c.bf16 %v331, %v330
    %v351 = vpack.c.bf16 %v333, %v332
    %v352 = vpack.c.bf16 %v335, %v334
    %v353 = vpack.c.bf16 %v337, %v336
    %v354 = vld [vmem:[%s2] sm:$0xf]
    %v355 = vld [vmem:[%s2 + $0x4] sm:$0xf]
    %v356 = vld [vmem:[%s2 + $0x8] sm:$0xf]
    %v357 = vld [vmem:[%s2 + $0xc] sm:$0xf]
    %v358 = vld [vmem:[%s2 + $0x10] sm:$0xf]
    %v359 = vld [vmem:[%s2 + $0x14] sm:$0xf]
    %v360 = vld [vmem:[%s2 + $0x18] sm:$0xf]
    %v361 = vld [vmem:[%s2 + $0x1c] sm:$0xf]
    %v362 = vld [vmem:[%s2 + $0x20] sm:$0xf]
    %v363 = vld [vmem:[%s2 + $0x24] sm:$0xf]
    %v364 = vld [vmem:[%s2 + $0x28] sm:$0xf]
    %v365 = vld [vmem:[%s2 + $0x2c] sm:$0xf]
    %v366 = vld [vmem:[%s2 + $0x30] sm:$0xf]
    %v367 = vld [vmem:[%s2 + $0x34] sm:$0xf]
    %v368 = vld [vmem:[%s2 + $0x38] sm:$0xf]
    %v369 = vld [vmem:[%s2 + $0x3c] sm:$0xf]
    %v386 = vunpack.c.l.b16 %v354
    %v387 = vunpack.c.l.b16 %v355
    %v388 = vunpack.c.l.b16 %v356
    %v389 = vunpack.c.l.b16 %v357
    %v390 = vunpack.c.l.b16 %v358
    %v391 = vunpack.c.l.b16 %v359
    %v392 = vunpack.c.l.b16 %v360
    %v393 = vunpack.c.l.b16 %v361
    %v394 = vunpack.c.l.b16 %v362
    %v395 = vunpack.c.l.b16 %v363
    %v396 = vunpack.c.l.b16 %v364
    %v397 = vunpack.c.l.b16 %v365
    %v398 = vunpack.c.l.b16 %v366
    %v399 = vunpack.c.l.b16 %v367
    %v400 = vunpack.c.l.b16 %v368
    %v401 = vunpack.c.l.b16 %v369
    %v402 = vpack.c.b16 %v387, %v386
    %v403 = vpack.c.b16 %v389, %v388
    %v404 = vpack.c.b16 %v391, %v390
    %v405 = vpack.c.b16 %v393, %v392
    %v406 = vpack.c.b16 %v395, %v394
    %v407 = vpack.c.b16 %v397, %v396
    %v408 = vpack.c.b16 %v399, %v398
    %v409 = vpack.c.b16 %v401, %v400
    %418 = vmatprep.subr.bf16.mxu0 0
    %419 = vmatpush1.bf16.msra.mxu0 %v402
    %420 = vmatprep.subr.bf16.mxu0 0
    %421 = vmatpush1.bf16.msra.mxu0 %v403
    %422 = vmatprep.subr.bf16.mxu0 0
    %423 = vmatpush1.bf16.msra.mxu0 %v404
    %424 = vmatprep.subr.bf16.mxu0 0
    %425 = vmatpush1.bf16.msra.mxu0 %v405
    %426 = vmatprep.subr.bf16.mxu0 0
    %427 = vmatpush1.bf16.msra.mxu0 %v406
    %428 = vmatprep.subr.bf16.mxu0 0
    %429 = vmatpush1.bf16.msra.mxu0 %v407
    %430 = vmatprep.subr.bf16.mxu0 0
    %431 = vmatpush1.bf16.msra.mxu0 %v408
    %432 = vmatprep.subr.bf16.mxu0 0
    %433 = vmatpush1.bf16.msra.mxu0 %v409
    %434 = vmatprep.subr.bf16.mxu0 0
    %435 = vmatpush1.bf16.msra.mxu0 0
    %436 = vmatprep.subr.bf16.mxu0 0
    %437 = vmatpush1.bf16.msra.mxu0 0
    %438 = vmatprep.subr.bf16.mxu0 0
    %439 = vmatpush1.bf16.msra.mxu0 0
    %440 = vmatprep.subr.bf16.mxu0 0
    %441 = vmatpush1.bf16.msra.mxu0 0
    %442 = vmatprep.subr.bf16.mxu0 0
    %443 = vmatpush1.bf16.msra.mxu0 0
    %444 = vmatprep.subr.bf16.mxu0 0
    %445 = vmatpush1.bf16.msra.mxu0 0
    %446 = vmatprep.subr.bf16.mxu0 0
    %447 = vmatpush1.bf16.msra.mxu0 0
    %448 = vmatprep.subr.bf16.mxu0 0
    %449 = vmatpush1.bf16.msra.mxu0 0
    %450 = vmatprep.mubr.bf16.mxu0 0
    %451 = vmatmul.mubr.bf16.gmra.mrb[0].mxu0 %v338
    %v452 = vpop.f32.mrb[0].mxu0
    %v453 = vadd.f32 0.0, %v452
    %v454 = vpop.f32.mrb[0].mxu0
    %v455 = vpop.f32.mrb[0].mxu0
    %v456 = vadd.f32 0.0, %v455
    %v457 = vpop.f32.mrb[0].mxu0
    %458 = vmatprep.mubr.bf16.mxu0 0
    %459 = vmatmul.mubr.bf16.gmra.mrb[0].mxu0 %v339
    %v460 = vpop.f32.mrb[0].mxu0
    %v461 = vadd.f32 0.0, %v460
    %v462 = vpop.f32.mrb[0].mxu0
    %v463 = vpop.f32.mrb[0].mxu0
    %v464 = vadd.f32 0.0, %v463
    %v465 = vpop.f32.mrb[0].mxu0
    %466 = vmatprep.mubr.bf16.mxu0 0
    %467 = vmatmul.mubr.bf16.gmra.mrb[0].mxu0 %v340
    %v468 = vpop.f32.mrb[0].mxu0
    %v469 = vadd.f32 0.0, %v468
    %v470 = vpop.f32.mrb[0].mxu0
    %v471 = vpop.f32.mrb[0].mxu0
    %v472 = vadd.f32 0.0, %v471
    %v473 = vpop.f32.mrb[0].mxu0
    %474 = vmatprep.mubr.bf16.mxu0 0
    %475 = vmatmul.mubr.bf16.gmra.mrb[0].mxu0 %v341
    %v476 = vpop.f32.mrb[0].mxu0
    %v477 = vadd.f32 0.0, %v476
    %v478 = vpop.f32.mrb[0].mxu0
    %v479 = vpop.f32.mrb[0].mxu0
    %v480 = vadd.f32 0.0, %v479
    %v481 = vpop.f32.mrb[0].mxu0
    %482 = vmatprep.mubr.bf16.mxu0 0
    %483 = vmatmul.mubr.bf16.gmra.mrb[0].mxu0 %v342
    %v484 = vpop.f32.mrb[0].mxu0
    %v485 = vadd.f32 0.0, %v484
    %v486 = vpop.f32.mrb[0].mxu0
    %v487 = vpop.f32.mrb[0].mxu0
    %v488 = vadd.f32 0.0, %v487
    %v489 = vpop.f32.mrb[0].mxu0
    %490 = vmatprep.mubr.bf16.mxu0 0
    %491 = vmatmul.mubr.bf16.gmra.mrb[0].mxu0 %v343
    %v492 = vpop.f32.mrb[0].mxu0
    %v493 = vadd.f32 0.0, %v492
    %v494 = vpop.f32.mrb[0].mxu0
    %v495 = vpop.f32.mrb[0].mxu0
    %v496 = vadd.f32 0.0, %v495
    %v497 = vpop.f32.mrb[0].mxu0
    %498 = vmatprep.mubr.bf16.mxu0 0
    %499 = vmatmul.mubr.bf16.gmra.mrb[0].mxu0 %v344
    %v500 = vpop.f32.mrb[0].mxu0
    %v501 = vadd.f32 0.0, %v500
    %v502 = vpop.f32.mrb[0].mxu0
    %v503 = vpop.f32.mrb[0].mxu0
    %v504 = vadd.f32 0.0, %v503
    %v505 = vpop.f32.mrb[0].mxu0
    %506 = vmatprep.mubr.bf16.mxu0 0
    %507 = vmatmul.mubr.bf16.gmra.mrb[0].mxu0 %v345
    %v508 = vpop.f32.mrb[0].mxu0
    %v509 = vadd.f32 0.0, %v508
    %v510 = vpop.f32.mrb[0].mxu0
    %v511 = vpop.f32.mrb[0].mxu0
    %v512 = vadd.f32 0.0, %v511
    %v513 = vpop.f32.mrb[0].mxu0
    %514 = vmatprep.mubr.bf16.mxu0 0
    %515 = vmatmul.mubr.bf16.gmra.mrb[0].mxu0 %v346
    %v516 = vpop.f32.mrb[0].mxu0
    %v517 = vadd.f32 0.0, %v516
    %v518 = vpop.f32.mrb[0].mxu0
    %v519 = vpop.f32.mrb[0].mxu0
    %v520 = vadd.f32 0.0, %v519
    %v521 = vpop.f32.mrb[0].mxu0
    %522 = vmatprep.mubr.bf16.mxu0 0
    %523 = vmatmul.mubr.bf16.gmra.mrb[0].mxu0 %v347
    %v524 = vpop.f32.mrb[0].mxu0
    %v525 = vadd.f32 0.0, %v524
    %v526 = vpop.f32.mrb[0].mxu0
    %v527 = vpop.f32.mrb[0].mxu0
    %v528 = vadd.f32 0.0, %v527
    %v529 = vpop.f32.mrb[0].mxu0
    %530 = vmatprep.mubr.bf16.mxu0 0
    %531 = vmatmul.mubr.bf16.gmra.mrb[0].mxu0 %v348
    %v532 = vpop.f32.mrb[0].mxu0
    %v533 = vadd.f32 0.0, %v532
    %v534 = vpop.f32.mrb[0].mxu0
    %v535 = vpop.f32.mrb[0].mxu0
    %v536 = vadd.f32 0.0, %v535
    %v537 = vpop.f32.mrb[0].mxu0
    %538 = vmatprep.mubr.bf16.mxu0 0
    %539 = vmatmul.mubr.bf16.gmra.mrb[0].mxu0 %v349
    %v540 = vpop.f32.mrb[0].mxu0
    %v541 = vadd.f32 0.0, %v540
    %v542 = vpop.f32.mrb[0].mxu0
    %v543 = vpop.f32.mrb[0].mxu0
    %v544 = vadd.f32 0.0, %v543
    %v545 = vpop.f32.mrb[0].mxu0
    %546 = vmatprep.mubr.bf16.mxu0 0
    %547 = vmatmul.mubr.bf16.gmra.mrb[0].mxu0 %v350
    %v548 = vpop.f32.mrb[0].mxu0
    %v549 = vadd.f32 0.0, %v548
    %v550 = vpop.f32.mrb[0].mxu0
    %v551 = vpop.f32.mrb[0].mxu0
    %v552 = vadd.f32 0.0, %v551
    %v553 = vpop.f32.mrb[0].mxu0
    %554 = vmatprep.mubr.bf16.mxu0 0
    %555 = vmatmul.mubr.bf16.gmra.mrb[0].mxu0 %v351
    %v556 = vpop.f32.mrb[0].mxu0
    %v557 = vadd.f32 0.0, %v556
    %v558 = vpop.f32.mrb[0].mxu0
    %v559 = vpop.f32.mrb[0].mxu0
    %v560 = vadd.f32 0.0, %v559
    %v561 = vpop.f32.mrb[0].mxu0
    %562 = vmatprep.mubr.bf16.mxu0 0
    %563 = vmatmul.mubr.bf16.gmra.mrb[0].mxu0 %v352
    %v564 = vpop.f32.mrb[0].mxu0
    %v565 = vadd.f32 0.0, %v564
    %v566 = vpop.f32.mrb[0].mxu0
    %v567 = vpop.f32.mrb[0].mxu0
    %v568 = vadd.f32 0.0, %v567
    %v569 = vpop.f32.mrb[0].mxu0
    %570 = vmatprep.mubr.bf16.mxu0 0
    %571 = vmatmul.mubr.bf16.gmra.mrb[0].mxu0 %v353
    %v572 = vpop.f32.mrb[0].mxu0
    %v573 = vadd.f32 0.0, %v572
    %v574 = vpop.f32.mrb[0].mxu0
    %v575 = vpop.f32.mrb[0].mxu0
    %v576 = vadd.f32 0.0, %v575
    %v577 = vpop.f32.mrb[0].mxu0
    %578 = vdwg.mxu0
    %v579 = vmax.f32 %v453, 0.0
    %v580 = vmax.f32 %v456, 0.0
    %v581 = vmax.f32 %v461, 0.0
    %v582 = vmax.f32 %v464, 0.0
    %v583 = vmax.f32 %v469, 0.0
    %v584 = vmax.f32 %v472, 0.0
    %v585 = vmax.f32 %v477, 0.0
    %v586 = vmax.f32 %v480, 0.0
    %v587 = vmax.f32 %v485, 0.0
    %v588 = vmax.f32 %v488, 0.0
    %v589 = vmax.f32 %v493, 0.0
    %v590 = vmax.f32 %v496, 0.0
    %v591 = vmax.f32 %v501, 0.0
    %v592 = vmax.f32 %v504, 0.0
    %v593 = vmax.f32 %v509, 0.0
    %v594 = vmax.f32 %v512, 0.0
    %v595 = vmax.f32 %v517, 0.0
    %v596 = vmax.f32 %v520, 0.0
    %v597 = vmax.f32 %v525, 0.0
    %v598 = vmax.f32 %v528, 0.0
    %v599 = vmax.f32 %v533, 0.0
    %v600 = vmax.f32 %v536, 0.0
    %v601 = vmax.f32 %v541, 0.0
    %v602 = vmax.f32 %v544, 0.0
    %v603 = vmax.f32 %v549, 0.0
    %v604 = vmax.f32 %v552, 0.0
    %v605 = vmax.f32 %v557, 0.0
    %v606 = vmax.f32 %v560, 0.0
    %v607 = vmax.f32 %v565, 0.0
    %v608 = vmax.f32 %v568, 0.0
    %v609 = vmax.f32 %v573, 0.0
    %v610 = vmax.f32 %v576, 0.0
    %611 = vst [vmem:[#allocation2] sm:$0xff] %v579
    %612 = vst [vmem:[#allocation2 + $0x8] sm:$0xff] %v580
    %613 = vst [vmem:[#allocation2 + $0x10] sm:$0xff] %v581
    %614 = vst [vmem:[#allocation2 + $0x18] sm:$0xff] %v582
    %615 = vst [vmem:[#allocation2 + $0x20] sm:$0xff] %v583
    %616 = vst [vmem:[#allocation2 + $0x28] sm:$0xff] %v584
    %617 = vst [vmem:[#allocation2 + $0x30] sm:$0xff] %v585
    %618 = vst [vmem:[#allocation2 + $0x38] sm:$0xff] %v586
    %619 = vst [vmem:[#allocation2 + $0x40] sm:$0xff] %v587
    %620 = vst [vmem:[#allocation2 + $0x48] sm:$0xff] %v588
    %621 = vst [vmem:[#allocation2 + $0x50] sm:$0xff] %v589
    %622 = vst [vmem:[#allocation2 + $0x58] sm:$0xff] %v590
    %623 = vst [vmem:[#allocation2 + $0x60] sm:$0xff] %v591
    %624 = vst [vmem:[#allocation2 + $0x68] sm:$0xff] %v592
    %625 = vst [vmem:[#allocation2 + $0x70] sm:$0xff] %v593
    %626 = vst [vmem:[#allocation2 + $0x78] sm:$0xff] %v594
    %627 = vst [vmem:[#allocation2 + $0x80] sm:$0xff] %v595
    %628 = vst [vmem:[#allocation2 + $0x88] sm:$0xff] %v596
    %629 = vst [vmem:[#allocation2 + $0x90] sm:$0xff] %v597
    %630 = vst [vmem:[#allocation2 + $0x98] sm:$0xff] %v598
    %631 = vst [vmem:[#allocation2 + $0xa0] sm:$0xff] %v599
    %632 = vst [vmem:[#allocation2 + $0xa8] sm:$0xff] %v600
    %633 = vst [vmem:[#allocation2 + $0xb0] sm:$0xff] %v601
    %634 = vst [vmem:[#allocation2 + $0xb8] sm:$0xff] %v602
    %635 = vst [vmem:[#allocation2 + $0xc0] sm:$0xff] %v603
    %636 = vst [vmem:[#allocation2 + $0xc8] sm:$0xff] %v604
    %637 = vst [vmem:[#allocation2 + $0xd0] sm:$0xff] %v605
    %638 = vst [vmem:[#allocation2 + $0xd8] sm:$0xff] %v606
    %639 = vst [vmem:[#allocation2 + $0xe0] sm:$0xff] %v607
    %640 = vst [vmem:[#allocation2 + $0xe8] sm:$0xff] %v608
    %641 = vst [vmem:[#allocation2 + $0xf0] sm:$0xff] %v609
    %642 = vst [vmem:[#allocation2 + $0xf8] sm:$0xff] %v610
    %v643 = vpack.c.bf16 %v580, %v579
    %v644 = vpack.c.bf16 %v582, %v581
    %v645 = vpack.c.bf16 %v584, %v583
    %v646 = vpack.c.bf16 %v586, %v585
    %v647 = vpack.c.bf16 %v588, %v587
    %v648 = vpack.c.bf16 %v590, %v589
    %v649 = vpack.c.bf16 %v592, %v591
    %v650 = vpack.c.bf16 %v594, %v593
    %v651 = vpack.c.bf16 %v596, %v595
    %v652 = vpack.c.bf16 %v598, %v597
    %v653 = vpack.c.bf16 %v600, %v599
    %v654 = vpack.c.bf16 %v602, %v601
    %v655 = vpack.c.bf16 %v604, %v603
    %v656 = vpack.c.bf16 %v606, %v605
    %v657 = vpack.c.bf16 %v608, %v607
    %v658 = vpack.c.bf16 %v610, %v609
    %v659 = vld [vmem:[%s3] sm:$0xf]
    %v660 = vld [vmem:[%s3 + $0x4] sm:$0xf]
    %v661 = vld [vmem:[%s3 + $0x8] sm:$0xf]
    %v662 = vld [vmem:[%s3 + $0xc] sm:$0xf]
    %v663 = vld [vmem:[%s3 + $0x10] sm:$0xf]
    %v664 = vld [vmem:[%s3 + $0x14] sm:$0xf]
    %v665 = vld [vmem:[%s3 + $0x18] sm:$0xf]
    %v666 = vld [vmem:[%s3 + $0x1c] sm:$0xf]
    %v667 = vld [vmem:[%s3 + $0x20] sm:$0xf]
    %v668 = vld [vmem:[%s3 + $0x24] sm:$0xf]
    %v669 = vld [vmem:[%s3 + $0x28] sm:$0xf]
    %v670 = vld [vmem:[%s3 + $0x2c] sm:$0xf]
    %v671 = vld [vmem:[%s3 + $0x30] sm:$0xf]
    %v672 = vld [vmem:[%s3 + $0x34] sm:$0xf]
    %v673 = vld [vmem:[%s3 + $0x38] sm:$0xf]
    %v674 = vld [vmem:[%s3 + $0x3c] sm:$0xf]
    %v675 = vld [vmem:[%s4] sm:$0x1]
    %v677 = vlaneseq
    %v678 = vshrl.u32 %v677, 7
    %v679 = vsub.s32 0, %v678
    %v680 = vrot.slane %v675, %v679
    %v698 = vunpack.c.l.b16 %v659
    %v699 = vunpack.c.l.b16 %v660
    %v700 = vunpack.c.l.b16 %v661
    %v701 = vunpack.c.l.b16 %v662
    %v702 = vunpack.c.l.b16 %v663
    %v703 = vunpack.c.l.b16 %v664
    %v704 = vunpack.c.l.b16 %v665
    %v705 = vunpack.c.l.b16 %v666
    %v706 = vunpack.c.l.b16 %v667
    %v707 = vunpack.c.l.b16 %v668
    %v708 = vunpack.c.l.b16 %v669
    %v709 = vunpack.c.l.b16 %v670
    %v710 = vunpack.c.l.b16 %v671
    %v711 = vunpack.c.l.b16 %v672
    %v712 = vunpack.c.l.b16 %v673
    %v713 = vunpack.c.l.b16 %v674
    %v714 = vpack.c.b16 %v699, %v698
    %v715 = vpack.c.b16 %v701, %v700
    %v716 = vpack.c.b16 %v703, %v702
    %v717 = vpack.c.b16 %v705, %v704
    %v718 = vpack.c.b16 %v707, %v706
    %v719 = vpack.c.b16 %v709, %v708
    %v720 = vpack.c.b16 %v711, %v710
    %v721 = vpack.c.b16 %v713, %v712
    %730 = vmatprep.subr.bf16.mxu0 0
    %731 = vmatpush1.bf16.msra.mxu0 %v714
    %732 = vmatprep.subr.bf16.mxu0 0
    %733 = vmatpush1.bf16.msra.mxu0 %v715
    %734 = vmatprep.subr.bf16.mxu0 0
    %735 = vmatpush1.bf16.msra.mxu0 %v716
    %736 = vmatprep.subr.bf16.mxu0 0
    %737 = vmatpush1.bf16.msra.mxu0 %v717
    %738 = vmatprep.subr.bf16.mxu0 0
    %739 = vmatpush1.bf16.msra.mxu0 %v718
    %740 = vmatprep.subr.bf16.mxu0 0
    %741 = vmatpush1.bf16.msra.mxu0 %v719
    %742 = vmatprep.subr.bf16.mxu0 0
    %743 = vmatpush1.bf16.msra.mxu0 %v720
    %744 = vmatprep.subr.bf16.mxu0 0
    %745 = vmatpush1.bf16.msra.mxu0 %v721
    %746 = vmatprep.subr.bf16.mxu0 0
    %747 = vmatpush1.bf16.msra.mxu0 0
    %748 = vmatprep.subr.bf16.mxu0 0
    %749 = vmatpush1.bf16.msra.mxu0 0
    %750 = vmatprep.subr.bf16.mxu0 0
    %751 = vmatpush1.bf16.msra.mxu0 0
    %752 = vmatprep.subr.bf16.mxu0 0
    %753 = vmatpush1.bf16.msra.mxu0 0
    %754 = vmatprep.subr.bf16.mxu0 0
    %755 = vmatpush1.bf16.msra.mxu0 0
    %756 = vmatprep.subr.bf16.mxu0 0
    %757 = vmatpush1.bf16.msra.mxu0 0
    %758 = vmatprep.subr.bf16.mxu0 0
    %759 = vmatpush1.bf16.msra.mxu0 0
    %760 = vmatprep.subr.bf16.mxu0 0
    %761 = vmatpush1.bf16.msra.mxu0 0
    %762 = vmatprep.mubr.bf16.mxu0 0
    %763 = vmatmul.mubr.bf16.gmra.mrb[0].mxu0 %v643
    %v764 = vpop.f32.mrb[0].mxu0
    %v765 = vadd.f32 %v680, %v764
    %v766 = vpop.f32.mrb[0].mxu0
    %v767 = vpop.f32.mrb[0].mxu0
    %v768 = vadd.f32 %v680, %v767
    %v769 = vpop.f32.mrb[0].mxu0
    %770 = vmatprep.mubr.bf16.mxu0 0
    %771 = vmatmul.mubr.bf16.gmra.mrb[0].mxu0 %v644
    %v772 = vpop.f32.mrb[0].mxu0
    %v773 = vadd.f32 %v680, %v772
    %v774 = vpop.f32.mrb[0].mxu0
    %v775 = vpop.f32.mrb[0].mxu0
    %v776 = vadd.f32 %v680, %v775
    %v777 = vpop.f32.mrb[0].mxu0
    %778 = vmatprep.mubr.bf16.mxu0 0
    %779 = vmatmul.mubr.bf16.gmra.mrb[0].mxu0 %v645
    %v780 = vpop.f32.mrb[0].mxu0
    %v781 = vadd.f32 %v680, %v780
    %v782 = vpop.f32.mrb[0].mxu0
    %v783 = vpop.f32.mrb[0].mxu0
    %v784 = vadd.f32 %v680, %v783
    %v785 = vpop.f32.mrb[0].mxu0
    %786 = vmatprep.mubr.bf16.mxu0 0
    %787 = vmatmul.mubr.bf16.gmra.mrb[0].mxu0 %v646
    %v788 = vpop.f32.mrb[0].mxu0
    %v789 = vadd.f32 %v680, %v788
    %v790 = vpop.f32.mrb[0].mxu0
    %v791 = vpop.f32.mrb[0].mxu0
    %v792 = vadd.f32 %v680, %v791
    %v793 = vpop.f32.mrb[0].mxu0
    %794 = vmatprep.mubr.bf16.mxu0 0
    %795 = vmatmul.mubr.bf16.gmra.mrb[0].mxu0 %v647
    %v796 = vpop.f32.mrb[0].mxu0
    %v797 = vadd.f32 %v680, %v796
    %v798 = vpop.f32.mrb[0].mxu0
    %v799 = vpop.f32.mrb[0].mxu0
    %v800 = vadd.f32 %v680, %v799
    %v801 = vpop.f32.mrb[0].mxu0
    %802 = vmatprep.mubr.bf16.mxu0 0
    %803 = vmatmul.mubr.bf16.gmra.mrb[0].mxu0 %v648
    %v804 = vpop.f32.mrb[0].mxu0
    %v805 = vadd.f32 %v680, %v804
    %v806 = vpop.f32.mrb[0].mxu0
    %v807 = vpop.f32.mrb[0].mxu0
    %v808 = vadd.f32 %v680, %v807
    %v809 = vpop.f32.mrb[0].mxu0
    %810 = vmatprep.mubr.bf16.mxu0 0
    %811 = vmatmul.mubr.bf16.gmra.mrb[0].mxu0 %v649
    %v812 = vpop.f32.mrb[0].mxu0
    %v813 = vadd.f32 %v680, %v812
    %v814 = vpop.f32.mrb[0].mxu0
    %v815 = vpop.f32.mrb[0].mxu0
    %v816 = vadd.f32 %v680, %v815
    %v817 = vpop.f32.mrb[0].mxu0
    %818 = vmatprep.mubr.bf16.mxu0 0
    %819 = vmatmul.mubr.bf16.gmra.mrb[0].mxu0 %v650
    %v820 = vpop.f32.mrb[0].mxu0
    %v821 = vadd.f32 %v680, %v820
    %v822 = vpop.f32.mrb[0].mxu0
    %v823 = vpop.f32.mrb[0].mxu0
    %v824 = vadd.f32 %v680, %v823
    %v825 = vpop.f32.mrb[0].mxu0
    %826 = vmatprep.mubr.bf16.mxu0 0
    %827 = vmatmul.mubr.bf16.gmra.mrb[0].mxu0 %v651
    %v828 = vpop.f32.mrb[0].mxu0
    %v829 = vadd.f32 %v680, %v828
    %v830 = vpop.f32.mrb[0].mxu0
    %v831 = vpop.f32.mrb[0].mxu0
    %v832 = vadd.f32 %v680, %v831
    %v833 = vpop.f32.mrb[0].mxu0
    %834 = vmatprep.mubr.bf16.mxu0 0
    %835 = vmatmul.mubr.bf16.gmra.mrb[0].mxu0 %v652
    %v836 = vpop.f32.mrb[0].mxu0
    %v837 = vadd.f32 %v680, %v836
    %v838 = vpop.f32.mrb[0].mxu0
    %v839 = vpop.f32.mrb[0].mxu0
    %v840 = vadd.f32 %v680, %v839
    %v841 = vpop.f32.mrb[0].mxu0
    %842 = vmatprep.mubr.bf16.mxu0 0
    %843 = vmatmul.mubr.bf16.gmra.mrb[0].mxu0 %v653
    %v844 = vpop.f32.mrb[0].mxu0
    %v845 = vadd.f32 %v680, %v844
    %v846 = vpop.f32.mrb[0].mxu0
    %v847 = vpop.f32.mrb[0].mxu0
    %v848 = vadd.f32 %v680, %v847
    %v849 = vpop.f32.mrb[0].mxu0
    %850 = vmatprep.mubr.bf16.mxu0 0
    %851 = vmatmul.mubr.bf16.gmra.mrb[0].mxu0 %v654
    %v852 = vpop.f32.mrb[0].mxu0
    %v853 = vadd.f32 %v680, %v852
    %v854 = vpop.f32.mrb[0].mxu0
    %v855 = vpop.f32.mrb[0].mxu0
    %v856 = vadd.f32 %v680, %v855
    %v857 = vpop.f32.mrb[0].mxu0
    %858 = vmatprep.mubr.bf16.mxu0 0
    %859 = vmatmul.mubr.bf16.gmra.mrb[0].mxu0 %v655
    %v860 = vpop.f32.mrb[0].mxu0
    %v861 = vadd.f32 %v680, %v860
    %v862 = vpop.f32.mrb[0].mxu0
    %v863 = vpop.f32.mrb[0].mxu0
    %v864 = vadd.f32 %v680, %v863
    %v865 = vpop.f32.mrb[0].mxu0
    %866 = vmatprep.mubr.bf16.mxu0 0
    %867 = vmatmul.mubr.bf16.gmra.mrb[0].mxu0 %v656
    %v868 = vpop.f32.mrb[0].mxu0
    %v869 = vadd.f32 %v680, %v868
    %v870 = vpop.f32.mrb[0].mxu0
    %v871 = vpop.f32.mrb[0].mxu0
    %v872 = vadd.f32 %v680, %v871
    %v873 = vpop.f32.mrb[0].mxu0
    %874 = vmatprep.mubr.bf16.mxu0 0
    %875 = vmatmul.mubr.bf16.gmra.mrb[0].mxu0 %v657
    %v876 = vpop.f32.mrb[0].mxu0
    %v877 = vadd.f32 %v680, %v876
    %v878 = vpop.f32.mrb[0].mxu0
    %v879 = vpop.f32.mrb[0].mxu0
    %v880 = vadd.f32 %v680, %v879
    %v881 = vpop.f32.mrb[0].mxu0
    %882 = vmatprep.mubr.bf16.mxu0 0
    %883 = vmatmul.mubr.bf16.gmra.mrb[0].mxu0 %v658
    %v884 = vpop.f32.mrb[0].mxu0
    %v885 = vadd.f32 %v680, %v884
    %v886 = vpop.f32.mrb[0].mxu0
    %v887 = vpop.f32.mrb[0].mxu0
    %v888 = vadd.f32 %v680, %v887
    %v889 = vpop.f32.mrb[0].mxu0
    %890 = vdwg.mxu0
    %v891 = vmax.f32 %v765, 0.0
    %v892 = vmax.f32 %v768, 0.0
    %v893 = vmax.f32 %v773, 0.0
    %v894 = vmax.f32 %v776, 0.0
    %v895 = vmax.f32 %v781, 0.0
    %v896 = vmax.f32 %v784, 0.0
    %v897 = vmax.f32 %v789, 0.0
    %v898 = vmax.f32 %v792, 0.0
    %v899 = vmax.f32 %v797, 0.0
    %v900 = vmax.f32 %v800, 0.0
    %v901 = vmax.f32 %v805, 0.0
    %v902 = vmax.f32 %v808, 0.0
    %v903 = vmax.f32 %v813, 0.0
    %v904 = vmax.f32 %v816, 0.0
    %v905 = vmax.f32 %v821, 0.0
    %v906 = vmax.f32 %v824, 0.0
    %v907 = vmax.f32 %v829, 0.0
    %v908 = vmax.f32 %v832, 0.0
    %v909 = vmax.f32 %v837, 0.0
    %v910 = vmax.f32 %v840, 0.0
    %v911 = vmax.f32 %v845, 0.0
    %v912 = vmax.f32 %v848, 0.0
    %v913 = vmax.f32 %v853, 0.0
    %v914 = vmax.f32 %v856, 0.0
    %v915 = vmax.f32 %v861, 0.0
    %v916 = vmax.f32 %v864, 0.0
    %v917 = vmax.f32 %v869, 0.0
    %v918 = vmax.f32 %v872, 0.0
    %v919 = vmax.f32 %v877, 0.0
    %v920 = vmax.f32 %v880, 0.0
    %v921 = vmax.f32 %v885, 0.0
    %v922 = vmax.f32 %v888, 0.0
    %v923 = vpack.c.bf16 %v892, %v891
    %v924 = vpack.c.bf16 %v894, %v893
    %v925 = vpack.c.bf16 %v896, %v895
    %v926 = vpack.c.bf16 %v898, %v897
    %v927 = vpack.c.bf16 %v900, %v899
    %v928 = vpack.c.bf16 %v902, %v901
    %v929 = vpack.c.bf16 %v904, %v903
    %v930 = vpack.c.bf16 %v906, %v905
    %v931 = vpack.c.bf16 %v908, %v907
    %v932 = vpack.c.bf16 %v910, %v909
    %v933 = vpack.c.bf16 %v912, %v911
    %v934 = vpack.c.bf16 %v914, %v913
    %v935 = vpack.c.bf16 %v916, %v915
    %v936 = vpack.c.bf16 %v918, %v917
    %v937 = vpack.c.bf16 %v920, %v919
    %v938 = vpack.c.bf16 %v922, %v921
    %v939 = vld [vmem:[%s5] sm:$0xf]
    %v940 = vld [vmem:[%s5 + $0x4] sm:$0xf]
    %v941 = vld [vmem:[%s5 + $0x8] sm:$0xf]
    %v942 = vld [vmem:[%s5 + $0xc] sm:$0xf]
    %v943 = vld [vmem:[%s5 + $0x10] sm:$0xf]
    %v944 = vld [vmem:[%s5 + $0x14] sm:$0xf]
    %v945 = vld [vmem:[%s5 + $0x18] sm:$0xf]
    %v946 = vld [vmem:[%s5 + $0x1c] sm:$0xf]
    %v947 = vld [vmem:[%s5 + $0x20] sm:$0xf]
    %v948 = vld [vmem:[%s5 + $0x24] sm:$0xf]
    %v949 = vld [vmem:[%s5 + $0x28] sm:$0xf]
    %v950 = vld [vmem:[%s5 + $0x2c] sm:$0xf]
    %v951 = vld [vmem:[%s5 + $0x30] sm:$0xf]
    %v952 = vld [vmem:[%s5 + $0x34] sm:$0xf]
    %v953 = vld [vmem:[%s5 + $0x38] sm:$0xf]
    %v954 = vld [vmem:[%s5 + $0x3c] sm:$0xf]
    %v955 = vld [vmem:[%s6] sm:$0x1]
    %v957 = vlaneseq
    %v958 = vshrl.u32 %v957, 7
    %v959 = vsub.s32 0, %v958
    %v960 = vrot.slane %v955, %v959
    %v978 = vunpack.c.l.b16 %v939
    %v979 = vunpack.c.l.b16 %v940
    %v980 = vunpack.c.l.b16 %v941
    %v981 = vunpack.c.l.b16 %v942
    %v982 = vunpack.c.l.b16 %v943
    %v983 = vunpack.c.l.b16 %v944
    %v984 = vunpack.c.l.b16 %v945
    %v985 = vunpack.c.l.b16 %v946
    %v986 = vunpack.c.l.b16 %v947
    %v987 = vunpack.c.l.b16 %v948
    %v988 = vunpack.c.l.b16 %v949
    %v989 = vunpack.c.l.b16 %v950
    %v990 = vunpack.c.l.b16 %v951
    %v991 = vunpack.c.l.b16 %v952
    %v992 = vunpack.c.l.b16 %v953
    %v993 = vunpack.c.l.b16 %v954
    %v994 = vpack.c.b16 %v979, %v978
    %v995 = vpack.c.b16 %v981, %v980
    %v996 = vpack.c.b16 %v983, %v982
    %v997 = vpack.c.b16 %v985, %v984
    %v998 = vpack.c.b16 %v987, %v986
    %v999 = vpack.c.b16 %v989, %v988
    %v1000 = vpack.c.b16 %v991, %v990
    %v1001 = vpack.c.b16 %v993, %v992
    %1010 = vmatprep.subr.bf16.mxu0 0
    %1011 = vmatpush1.bf16.msra.mxu0 %v994
    %1012 = vmatprep.subr.bf16.mxu0 0
    %1013 = vmatpush1.bf16.msra.mxu0 %v995
    %1014 = vmatprep.subr.bf16.mxu0 0
    %1015 = vmatpush1.bf16.msra.mxu0 %v996
    %1016 = vmatprep.subr.bf16.mxu0 0
    %1017 = vmatpush1.bf16.msra.mxu0 %v997
    %1018 = vmatprep.subr.bf16.mxu0 0
    %1019 = vmatpush1.bf16.msra.mxu0 %v998
    %1020 = vmatprep.subr.bf16.mxu0 0
    %1021 = vmatpush1.bf16.msra.mxu0 %v999
    %1022 = vmatprep.subr.bf16.mxu0 0
    %1023 = vmatpush1.bf16.msra.mxu0 %v1000
    %1024 = vmatprep.subr.bf16.mxu0 0
    %1025 = vmatpush1.bf16.msra.mxu0 %v1001
    %1026 = vmatprep.subr.bf16.mxu0 0
    %1027 = vmatpush1.bf16.msra.mxu0 0
    %1028 = vmatprep.subr.bf16.mxu0 0
    %1029 = vmatpush1.bf16.msra.mxu0 0
    %1030 = vmatprep.subr.bf16.mxu0 0
    %1031 = vmatpush1.bf16.msra.mxu0 0
    %1032 = vmatprep.subr.bf16.mxu0 0
    %1033 = vmatpush1.bf16.msra.mxu0 0
    %1034 = vmatprep.subr.bf16.mxu0 0
    %1035 = vmatpush1.bf16.msra.mxu0 0
    %1036 = vmatprep.subr.bf16.mxu0 0
    %1037 = vmatpush1.bf16.msra.mxu0 0
    %1038 = vmatprep.subr.bf16.mxu0 0
    %1039 = vmatpush1.bf16.msra.mxu0 0
    %1040 = vmatprep.subr.bf16.mxu0 0
    %1041 = vmatpush1.bf16.msra.mxu0 0
    %1042 = vmatprep.mubr.bf16.mxu0 0
    %1043 = vmatmul.mubr.bf16.gmra.mrb[0].mxu0 %v923
    %v1044 = vpop.f32.mrb[0].mxu0
    %v1045 = vadd.f32 %v960, %v1044
    %v1046 = vpop.f32.mrb[0].mxu0
    %v1047 = vpop.f32.mrb[0].mxu0
    %v1048 = vadd.f32 %v960, %v1047
    %v1049 = vpop.f32.mrb[0].mxu0
    %1050 = vmatprep.mubr.bf16.mxu0 0
    %1051 = vmatmul.mubr.bf16.gmra.mrb[0].mxu0 %v924
    %v1052 = vpop.f32.mrb[0].mxu0
    %v1053 = vadd.f32 %v960, %v1052
    %v1054 = vpop.f32.mrb[0].mxu0
    %v1055 = vpop.f32.mrb[0].mxu0
    %v1056 = vadd.f32 %v960, %v1055
    %v1057 = vpop.f32.mrb[0].mxu0
    %1058 = vmatprep.mubr.bf16.mxu0 0
    %1059 = vmatmul.mubr.bf16.gmra.mrb[0].mxu0 %v925
    %v1060 = vpop.f32.mrb[0].mxu0
    %v1061 = vadd.f32 %v960, %v1060
    %v1062 = vpop.f32.mrb[0].mxu0
    %v1063 = vpop.f32.mrb[0].mxu0
    %v1064 = vadd.f32 %v960, %v1063
    %v1065 = vpop.f32.mrb[0].mxu0
    %1066 = vmatprep.mubr.bf16.mxu0 0
    %1067 = vmatmul.mubr.bf16.gmra.mrb[0].mxu0 %v926
    %v1068 = vpop.f32.mrb[0].mxu0
    %v1069 = vadd.f32 %v960, %v1068
    %v1070 = vpop.f32.mrb[0].mxu0
    %v1071 = vpop.f32.mrb[0].mxu0
    %v1072 = vadd.f32 %v960, %v1071
    %v1073 = vpop.f32.mrb[0].mxu0
    %1074 = vmatprep.mubr.bf16.mxu0 0
    %1075 = vmatmul.mubr.bf16.gmra.mrb[0].mxu0 %v927
    %v1076 = vpop.f32.mrb[0].mxu0
    %v1077 = vadd.f32 %v960, %v1076
    %v1078 = vpop.f32.mrb[0].mxu0
    %v1079 = vpop.f32.mrb[0].mxu0
    %v1080 = vadd.f32 %v960, %v1079
    %v1081 = vpop.f32.mrb[0].mxu0
    %1082 = vmatprep.mubr.bf16.mxu0 0
    %1083 = vmatmul.mubr.bf16.gmra.mrb[0].mxu0 %v928
    %v1084 = vpop.f32.mrb[0].mxu0
    %v1085 = vadd.f32 %v960, %v1084
    %v1086 = vpop.f32.mrb[0].mxu0
    %v1087 = vpop.f32.mrb[0].mxu0
    %v1088 = vadd.f32 %v960, %v1087
    %v1089 = vpop.f32.mrb[0].mxu0
    %1090 = vmatprep.mubr.bf16.mxu0 0
    %1091 = vmatmul.mubr.bf16.gmra.mrb[0].mxu0 %v929
    %v1092 = vpop.f32.mrb[0].mxu0
    %v1093 = vadd.f32 %v960, %v1092
    %v1094 = vpop.f32.mrb[0].mxu0
    %v1095 = vpop.f32.mrb[0].mxu0
    %v1096 = vadd.f32 %v960, %v1095
    %v1097 = vpop.f32.mrb[0].mxu0
    %1098 = vmatprep.mubr.bf16.mxu0 0
    %1099 = vmatmul.mubr.bf16.gmra.mrb[0].mxu0 %v930
    %v1100 = vpop.f32.mrb[0].mxu0
    %v1101 = vadd.f32 %v960, %v1100
    %v1102 = vpop.f32.mrb[0].mxu0
    %v1103 = vpop.f32.mrb[0].mxu0
    %v1104 = vadd.f32 %v960, %v1103
    %v1105 = vpop.f32.mrb[0].mxu0
    %1106 = vmatprep.mubr.bf16.mxu0 0
    %1107 = vmatmul.mubr.bf16.gmra.mrb[0].mxu0 %v931
    %v1108 = vpop.f32.mrb[0].mxu0
    %v1109 = vadd.f32 %v960, %v1108
    %v1110 = vpop.f32.mrb[0].mxu0
    %v1111 = vpop.f32.mrb[0].mxu0
    %v1112 = vadd.f32 %v960, %v1111
    %v1113 = vpop.f32.mrb[0].mxu0
    %1114 = vmatprep.mubr.bf16.mxu0 0
    %1115 = vmatmul.mubr.bf16.gmra.mrb[0].mxu0 %v932
    %v1116 = vpop.f32.mrb[0].mxu0
    %v1117 = vadd.f32 %v960, %v1116
    %v1118 = vpop.f32.mrb[0].mxu0
    %v1119 = vpop.f32.mrb[0].mxu0
    %v1120 = vadd.f32 %v960, %v1119
    %v1121 = vpop.f32.mrb[0].mxu0
    %1122 = vmatprep.mubr.bf16.mxu0 0
    %1123 = vmatmul.mubr.bf16.gmra.mrb[0].mxu0 %v933
    %v1124 = vpop.f32.mrb[0].mxu0
    %v1125 = vadd.f32 %v960, %v1124
    %v1126 = vpop.f32.mrb[0].mxu0
    %v1127 = vpop.f32.mrb[0].mxu0
    %v1128 = vadd.f32 %v960, %v1127
    %v1129 = vpop.f32.mrb[0].mxu0
    %1130 = vmatprep.mubr.bf16.mxu0 0
    %1131 = vmatmul.mubr.bf16.gmra.mrb[0].mxu0 %v934
    %v1132 = vpop.f32.mrb[0].mxu0
    %v1133 = vadd.f32 %v960, %v1132
    %v1134 = vpop.f32.mrb[0].mxu0
    %v1135 = vpop.f32.mrb[0].mxu0
    %v1136 = vadd.f32 %v960, %v1135
    %v1137 = vpop.f32.mrb[0].mxu0
    %1138 = vmatprep.mubr.bf16.mxu0 0
    %1139 = vmatmul.mubr.bf16.gmra.mrb[0].mxu0 %v935
    %v1140 = vpop.f32.mrb[0].mxu0
    %v1141 = vadd.f32 %v960, %v1140
    %v1142 = vpop.f32.mrb[0].mxu0
    %v1143 = vpop.f32.mrb[0].mxu0
    %v1144 = vadd.f32 %v960, %v1143
    %v1145 = vpop.f32.mrb[0].mxu0
    %1146 = vmatprep.mubr.bf16.mxu0 0
    %1147 = vmatmul.mubr.bf16.gmra.mrb[0].mxu0 %v936
    %v1148 = vpop.f32.mrb[0].mxu0
    %v1149 = vadd.f32 %v960, %v1148
    %v1150 = vpop.f32.mrb[0].mxu0
    %v1151 = vpop.f32.mrb[0].mxu0
    %v1152 = vadd.f32 %v960, %v1151
    %v1153 = vpop.f32.mrb[0].mxu0
    %1154 = vmatprep.mubr.bf16.mxu0 0
    %1155 = vmatmul.mubr.bf16.gmra.mrb[0].mxu0 %v937
    %v1156 = vpop.f32.mrb[0].mxu0
    %v1157 = vadd.f32 %v960, %v1156
    %v1158 = vpop.f32.mrb[0].mxu0
    %v1159 = vpop.f32.mrb[0].mxu0
    %v1160 = vadd.f32 %v960, %v1159
    %v1161 = vpop.f32.mrb[0].mxu0
    %1162 = vmatprep.mubr.bf16.mxu0 0
    %1163 = vmatmul.mubr.bf16.gmra.mrb[0].mxu0 %v938
    %v1164 = vpop.f32.mrb[0].mxu0
    %v1165 = vadd.f32 %v960, %v1164
    %v1166 = vpop.f32.mrb[0].mxu0
    %v1167 = vpop.f32.mrb[0].mxu0
    %v1168 = vadd.f32 %v960, %v1167
    %v1169 = vpop.f32.mrb[0].mxu0
    %1170 = vdwg.mxu0
    %1171 = vst [vmem:[#allocation6] sm:$0xff] %v1045
    %1172 = vst [vmem:[#allocation6 + $0x8] sm:$0xff] %v1048
    %1173 = vst [vmem:[#allocation6 + $0x10] sm:$0xff] %v1053
    %1174 = vst [vmem:[#allocation6 + $0x18] sm:$0xff] %v1056
    %1175 = vst [vmem:[#allocation6 + $0x20] sm:$0xff] %v1061
    %1176 = vst [vmem:[#allocation6 + $0x28] sm:$0xff] %v1064
    %1177 = vst [vmem:[#allocation6 + $0x30] sm:$0xff] %v1069
    %1178 = vst [vmem:[#allocation6 + $0x38] sm:$0xff] %v1072
    %1179 = vst [vmem:[#allocation6 + $0x40] sm:$0xff] %v1077
    %1180 = vst [vmem:[#allocation6 + $0x48] sm:$0xff] %v1080
    %1181 = vst [vmem:[#allocation6 + $0x50] sm:$0xff] %v1085
    %1182 = vst [vmem:[#allocation6 + $0x58] sm:$0xff] %v1088
    %1183 = vst [vmem:[#allocation6 + $0x60] sm:$0xff] %v1093
    %1184 = vst [vmem:[#allocation6 + $0x68] sm:$0xff] %v1096
    %1185 = vst [vmem:[#allocation6 + $0x70] sm:$0xff] %v1101
    %1186 = vst [vmem:[#allocation6 + $0x78] sm:$0xff] %v1104
    %1187 = vst [vmem:[#allocation6 + $0x80] sm:$0xff] %v1109
    %1188 = vst [vmem:[#allocation6 + $0x88] sm:$0xff] %v1112
    %1189 = vst [vmem:[#allocation6 + $0x90] sm:$0xff] %v1117
    %1190 = vst [vmem:[#allocation6 + $0x98] sm:$0xff] %v1120
    %1191 = vst [vmem:[#allocation6 + $0xa0] sm:$0xff] %v1125
    %1192 = vst [vmem:[#allocation6 + $0xa8] sm:$0xff] %v1128
    %1193 = vst [vmem:[#allocation6 + $0xb0] sm:$0xff] %v1133
    %1194 = vst [vmem:[#allocation6 + $0xb8] sm:$0xff] %v1136
    %1195 = vst [vmem:[#allocation6 + $0xc0] sm:$0xff] %v1141
    %1196 = vst [vmem:[#allocation6 + $0xc8] sm:$0xff] %v1144
    %1197 = vst [vmem:[#allocation6 + $0xd0] sm:$0xff] %v1149
    %1198 = vst [vmem:[#allocation6 + $0xd8] sm:$0xff] %v1152
    %1199 = vst [vmem:[#allocation6 + $0xe0] sm:$0xff] %v1157
    %1200 = vst [vmem:[#allocation6 + $0xe8] sm:$0xff] %v1160
    %1201 = vst [vmem:[#allocation6 + $0xf0] sm:$0xff] %v1165
    %1202 = vst [vmem:[#allocation6 + $0xf8] sm:$0xff] %v1168
    %1203 = vmax.xlane.f32.xlu0 %v1045
    %v1204 = vpop.xlane.xlu0 %1203
    %1205 = vmax.xlane.f32.xlu0 %v1048
    %v1206 = vpop.xlane.xlu0 %1205
    %1207 = vmax.xlane.f32.xlu0 %v1053
    %v1208 = vpop.xlane.xlu0 %1207
    %1209 = vmax.xlane.f32.xlu0 %v1056
    %v1210 = vpop.xlane.xlu0 %1209
    %1211 = vmax.xlane.f32.xlu0 %v1061
    %v1212 = vpop.xlane.xlu0 %1211
    %1213 = vmax.xlane.f32.xlu0 %v1064
    %v1214 = vpop.xlane.xlu0 %1213
    %1215 = vmax.xlane.f32.xlu0 %v1069
    %v1216 = vpop.xlane.xlu0 %1215
    %1217 = vmax.xlane.f32.xlu0 %v1072
    %v1218 = vpop.xlane.xlu0 %1217
    %1219 = vmax.xlane.f32.xlu0 %v1077
    %v1220 = vpop.xlane.xlu0 %1219
    %1221 = vmax.xlane.f32.xlu0 %v1080
    %v1222 = vpop.xlane.xlu0 %1221
    %1223 = vmax.xlane.f32.xlu0 %v1085
    %v1224 = vpop.xlane.xlu0 %1223
    %1225 = vmax.xlane.f32.xlu0 %v1088
    %v1226 = vpop.xlane.xlu0 %1225
    %1227 = vmax.xlane.f32.xlu0 %v1093
    %v1228 = vpop.xlane.xlu0 %1227
    %1229 = vmax.xlane.f32.xlu0 %v1096
    %v1230 = vpop.xlane.xlu0 %1229
    %1231 = vmax.xlane.f32.xlu0 %v1101
    %v1232 = vpop.xlane.xlu0 %1231
    %1233 = vmax.xlane.f32.xlu0 %v1104
    %v1234 = vpop.xlane.xlu0 %1233
    %1235 = vmax.xlane.f32.xlu0 %v1109
    %v1236 = vpop.xlane.xlu0 %1235
    %1237 = vmax.xlane.f32.xlu0 %v1112
    %v1238 = vpop.xlane.xlu0 %1237
    %1239 = vmax.xlane.f32.xlu0 %v1117
    %v1240 = vpop.xlane.xlu0 %1239
    %1241 = vmax.xlane.f32.xlu0 %v1120
    %v1242 = vpop.xlane.xlu0 %1241
    %1243 = vmax.xlane.f32.xlu0 %v1125
    %v1244 = vpop.xlane.xlu0 %1243
    %1245 = vmax.xlane.f32.xlu0 %v1128
    %v1246 = vpop.xlane.xlu0 %1245
    %1247 = vmax.xlane.f32.xlu0 %v1133
    %v1248 = vpop.xlane.xlu0 %1247
    %1249 = vmax.xlane.f32.xlu0 %v1136
    %v1250 = vpop.xlane.xlu0 %1249
    %1251 = vmax.xlane.f32.xlu0 %v1141
    %v1252 = vpop.xlane.xlu0 %1251
    %1253 = vmax.xlane.f32.xlu0 %v1144
    %v1254 = vpop.xlane.xlu0 %1253
    %1255 = vmax.xlane.f32.xlu0 %v1149
    %v1256 = vpop.xlane.xlu0 %1255
    %1257 = vmax.xlane.f32.xlu0 %v1152
    %v1258 = vpop.xlane.xlu0 %1257
    %1259 = vmax.xlane.f32.xlu0 %v1157
    %v1260 = vpop.xlane.xlu0 %1259
    %1261 = vmax.xlane.f32.xlu0 %v1160
    %v1262 = vpop.xlane.xlu0 %1261
    %1263 = vmax.xlane.f32.xlu0 %v1165
    %v1264 = vpop.xlane.xlu0 %1263
    %1265 = vmax.xlane.f32.xlu0 %v1168
    %v1266 = vpop.xlane.xlu0 %1265
    %v1267 = vsub.f32 %v1045, %v1204
    %v1268 = vsub.f32 %v1048, %v1206
    %v1269 = vsub.f32 %v1053, %v1208
    %v1270 = vsub.f32 %v1056, %v1210
    %v1271 = vsub.f32 %v1061, %v1212
    %v1272 = vsub.f32 %v1064, %v1214
    %v1273 = vsub.f32 %v1069, %v1216
    %v1274 = vsub.f32 %v1072, %v1218
    %v1275 = vsub.f32 %v1077, %v1220
    %v1276 = vsub.f32 %v1080, %v1222
    %v1277 = vsub.f32 %v1085, %v1224
    %v1278 = vsub.f32 %v1088, %v1226
    %v1279 = vsub.f32 %v1093, %v1228
    %v1280 = vsub.f32 %v1096, %v1230
    %v1281 = vsub.f32 %v1101, %v1232
    %v1282 = vsub.f32 %v1104, %v1234
    %v1283 = vsub.f32 %v1109, %v1236
    %v1284 = vsub.f32 %v1112, %v1238
    %v1285 = vsub.f32 %v1117, %v1240
    %v1286 = vsub.f32 %v1120, %v1242
    %v1287 = vsub.f32 %v1125, %v1244
    %v1288 = vsub.f32 %v1128, %v1246
    %v1289 = vsub.f32 %v1133, %v1248
    %v1290 = vsub.f32 %v1136, %v1250
    %v1291 = vsub.f32 %v1141, %v1252
    %v1292 = vsub.f32 %v1144, %v1254
    %v1293 = vsub.f32 %v1149, %v1256
    %v1294 = vsub.f32 %v1152, %v1258
    %v1295 = vsub.f32 %v1157, %v1260
    %v1296 = vsub.f32 %v1160, %v1262
    %v1297 = vsub.f32 %v1165, %v1264
    %v1298 = vsub.f32 %v1168, %v1266
    %v1299 = vmul.f32 %v1267, 1.442695
    %v1300 = vpow.pop %v1299
    %v1301 = vmul.f32 %v1268, 1.442695
    %v1302 = vpow.pop %v1301
    %v1303 = vmul.f32 %v1269, 1.442695
    %v1304 = vpow.pop %v1303
    %v1305 = vmul.f32 %v1270, 1.442695
    %v1306 = vpow.pop %v1305
    %v1307 = vmul.f32 %v1271, 1.442695
    %v1308 = vpow.pop %v1307
    %v1309 = vmul.f32 %v1272, 1.442695
    %v1310 = vpow.pop %v1309
    %v1311 = vmul.f32 %v1273, 1.442695
    %v1312 = vpow.pop %v1311
    %v1313 = vmul.f32 %v1274, 1.442695
    %v1314 = vpow.pop %v1313
    %v1315 = vmul.f32 %v1275, 1.442695
    %v1316 = vpow.pop %v1315
    %v1317 = vmul.f32 %v1276, 1.442695
    %v1318 = vpow.pop %v1317
    %v1319 = vmul.f32 %v1277, 1.442695
    %v1320 = vpow.pop %v1319
    %v1321 = vmul.f32 %v1278, 1.442695
    %v1322 = vpow.pop %v1321
    %v1323 = vmul.f32 %v1279, 1.442695
    %v1324 = vpow.pop %v1323
    %v1325 = vmul.f32 %v1280, 1.442695
    %v1326 = vpow.pop %v1325
    %v1327 = vmul.f32 %v1281, 1.442695
    %v1328 = vpow.pop %v1327
    %v1329 = vmul.f32 %v1282, 1.442695
    %v1330 = vpow.pop %v1329
    %v1331 = vmul.f32 %v1283, 1.442695
    %v1332 = vpow.pop %v1331
    %v1333 = vmul.f32 %v1284, 1.442695
    %v1334 = vpow.pop %v1333
    %v1335 = vmul.f32 %v1285, 1.442695
    %v1336 = vpow.pop %v1335
    %v1337 = vmul.f32 %v1286, 1.442695
    %v1338 = vpow.pop %v1337
    %v1339 = vmul.f32 %v1287, 1.442695
    %v1340 = vpow.pop %v1339
    %v1341 = vmul.f32 %v1288, 1.442695
    %v1342 = vpow.pop %v1341
    %v1343 = vmul.f32 %v1289, 1.442695
    %v1344 = vpow.pop %v1343
    %v1345 = vmul.f32 %v1290, 1.442695
    %v1346 = vpow.pop %v1345
    %v1347 = vmul.f32 %v1291, 1.442695
    %v1348 = vpow.pop %v1347
    %v1349 = vmul.f32 %v1292, 1.442695
    %v1350 = vpow.pop %v1349
    %v1351 = vmul.f32 %v1293, 1.442695
    %v1352 = vpow.pop %v1351
    %v1353 = vmul.f32 %v1294, 1.442695
    %v1354 = vpow.pop %v1353
    %v1355 = vmul.f32 %v1295, 1.442695
    %v1356 = vpow.pop %v1355
    %v1357 = vmul.f32 %v1296, 1.442695
    %v1358 = vpow.pop %v1357
    %v1359 = vmul.f32 %v1297, 1.442695
    %v1360 = vpow.pop %v1359
    %v1361 = vmul.f32 %v1298, 1.442695
    %v1362 = vpow.pop %v1361
    %1363 = vadd.xlane.f32.xlu0 %v1300
    %v1364 = vpop.xlane.xlu0 %1363
    %1365 = vadd.xlane.f32.xlu0 %v1302
    %v1366 = vpop.xlane.xlu0 %1365
    %1367 = vadd.xlane.f32.xlu0 %v1304
    %v1368 = vpop.xlane.xlu0 %1367
    %1369 = vadd.xlane.f32.xlu0 %v1306
    %v1370 = vpop.xlane.xlu0 %1369
    %1371 = vadd.xlane.f32.xlu0 %v1308
    %v1372 = vpop.xlane.xlu0 %1371
    %1373 = vadd.xlane.f32.xlu0 %v1310
    %v1374 = vpop.xlane.xlu0 %1373
    %1375 = vadd.xlane.f32.xlu0 %v1312
    %v1376 = vpop.xlane.xlu0 %1375
    %1377 = vadd.xlane.f32.xlu0 %v1314
    %v1378 = vpop.xlane.xlu0 %1377
    %1379 = vadd.xlane.f32.xlu0 %v1316
    %v1380 = vpop.xlane.xlu0 %1379
    %1381 = vadd.xlane.f32.xlu0 %v1318
    %v1382 = vpop.xlane.xlu0 %1381
    %1383 = vadd.xlane.f32.xlu0 %v1320
    %v1384 = vpop.xlane.xlu0 %1383
    %1385 = vadd.xlane.f32.xlu0 %v1322
    %v1386 = vpop.xlane.xlu0 %1385
    %1387 = vadd.xlane.f32.xlu0 %v1324
    %v1388 = vpop.xlane.xlu0 %1387
    %1389 = vadd.xlane.f32.xlu0 %v1326
    %v1390 = vpop.xlane.xlu0 %1389
    %1391 = vadd.xlane.f32.xlu0 %v1328
    %v1392 = vpop.xlane.xlu0 %1391
    %1393 = vadd.xlane.f32.xlu0 %v1330
    %v1394 = vpop.xlane.xlu0 %1393
    %1395 = vadd.xlane.f32.xlu0 %v1332
    %v1396 = vpop.xlane.xlu0 %1395
    %1397 = vadd.xlane.f32.xlu0 %v1334
    %v1398 = vpop.xlane.xlu0 %1397
    %1399 = vadd.xlane.f32.xlu0 %v1336
    %v1400 = vpop.xlane.xlu0 %1399
    %1401 = vadd.xlane.f32.xlu0 %v1338
    %v1402 = vpop.xlane.xlu0 %1401
    %1403 = vadd.xlane.f32.xlu0 %v1340
    %v1404 = vpop.xlane.xlu0 %1403
    %1405 = vadd.xlane.f32.xlu0 %v1342
    %v1406 = vpop.xlane.xlu0 %1405
    %1407 = vadd.xlane.f32.xlu0 %v1344
    %v1408 = vpop.xlane.xlu0 %1407
    %1409 = vadd.xlane.f32.xlu0 %v1346
    %v1410 = vpop.xlane.xlu0 %1409
    %1411 = vadd.xlane.f32.xlu0 %v1348
    %v1412 = vpop.xlane.xlu0 %1411
    %1413 = vadd.xlane.f32.xlu0 %v1350
    %v1414 = vpop.xlane.xlu0 %1413
    %1415 = vadd.xlane.f32.xlu0 %v1352
    %v1416 = vpop.xlane.xlu0 %1415
    %1417 = vadd.xlane.f32.xlu0 %v1354
    %v1418 = vpop.xlane.xlu0 %1417
    %1419 = vadd.xlane.f32.xlu0 %v1356
    %v1420 = vpop.xlane.xlu0 %1419
    %1421 = vadd.xlane.f32.xlu0 %v1358
    %v1422 = vpop.xlane.xlu0 %1421
    %1423 = vadd.xlane.f32.xlu0 %v1360
    %v1424 = vpop.xlane.xlu0 %1423
    %1425 = vadd.xlane.f32.xlu0 %v1362
    %v1426 = vpop.xlane.xlu0 %1425
    %v1427 = vrcp.pop %v1364
    %v1428 = vrcp.pop %v1366
    %v1429 = vrcp.pop %v1368
    %v1430 = vrcp.pop %v1370
    %v1431 = vrcp.pop %v1372
    %v1432 = vrcp.pop %v1374
    %v1433 = vrcp.pop %v1376
    %v1434 = vrcp.pop %v1378
    %v1435 = vrcp.pop %v1380
    %v1436 = vrcp.pop %v1382
    %v1437 = vrcp.pop %v1384
    %v1438 = vrcp.pop %v1386
    %v1439 = vrcp.pop %v1388
    %v1440 = vrcp.pop %v1390
    %v1441 = vrcp.pop %v1392
    %v1442 = vrcp.pop %v1394
    %v1443 = vrcp.pop %v1396
    %v1444 = vrcp.pop %v1398
    %v1445 = vrcp.pop %v1400
    %v1446 = vrcp.pop %v1402
    %v1447 = vrcp.pop %v1404
    %v1448 = vrcp.pop %v1406
    %v1449 = vrcp.pop %v1408
    %v1450 = vrcp.pop %v1410
    %v1451 = vrcp.pop %v1412
    %v1452 = vrcp.pop %v1414
    %v1453 = vrcp.pop %v1416
    %v1454 = vrcp.pop %v1418
    %v1455 = vrcp.pop %v1420
    %v1456 = vrcp.pop %v1422
    %v1457 = vrcp.pop %v1424
    %v1458 = vrcp.pop %v1426
    %v1459 = vmul.f32 %v1300, %v1427
    %v1460 = vmul.f32 %v1302, %v1428
    %v1461 = vmul.f32 %v1304, %v1429
    %v1462 = vmul.f32 %v1306, %v1430
    %v1463 = vmul.f32 %v1308, %v1431
    %v1464 = vmul.f32 %v1310, %v1432
    %v1465 = vmul.f32 %v1312, %v1433
    %v1466 = vmul.f32 %v1314, %v1434
    %v1467 = vmul.f32 %v1316, %v1435
    %v1468 = vmul.f32 %v1318, %v1436
    %v1469 = vmul.f32 %v1320, %v1437
    %v1470 = vmul.f32 %v1322, %v1438
    %v1471 = vmul.f32 %v1324, %v1439
    %v1472 = vmul.f32 %v1326, %v1440
    %v1473 = vmul.f32 %v1328, %v1441
    %v1474 = vmul.f32 %v1330, %v1442
    %v1475 = vmul.f32 %v1332, %v1443
    %v1476 = vmul.f32 %v1334, %v1444
    %v1477 = vmul.f32 %v1336, %v1445
    %v1478 = vmul.f32 %v1338, %v1446
    %v1479 = vmul.f32 %v1340, %v1447
    %v1480 = vmul.f32 %v1342, %v1448
    %v1481 = vmul.f32 %v1344, %v1449
    %v1482 = vmul.f32 %v1346, %v1450
    %v1483 = vmul.f32 %v1348, %v1451
    %v1484 = vmul.f32 %v1350, %v1452
    %v1485 = vmul.f32 %v1352, %v1453
    %v1486 = vmul.f32 %v1354, %v1454
    %v1487 = vmul.f32 %v1356, %v1455
    %v1488 = vmul.f32 %v1358, %v1456
    %v1489 = vmul.f32 %v1360, %v1457
    %v1490 = vmul.f32 %v1362, %v1458
    %1491 = vst [vmem:[#allocation4] sm:$0xff] %v1459
    %1492 = vst [vmem:[#allocation4 + $0x8] sm:$0xff] %v1460
    %1493 = vst [vmem:[#allocation4 + $0x10] sm:$0xff] %v1461
    %1494 = vst [vmem:[#allocation4 + $0x18] sm:$0xff] %v1462
    %1495 = vst [vmem:[#allocation4 + $0x20] sm:$0xff] %v1463
    %1496 = vst [vmem:[#allocation4 + $0x28] sm:$0xff] %v1464
    %1497 = vst [vmem:[#allocation4 + $0x30] sm:$0xff] %v1465
    %1498 = vst [vmem:[#allocation4 + $0x38] sm:$0xff] %v1466
    %1499 = vst [vmem:[#allocation4 + $0x40] sm:$0xff] %v1467
    %1500 = vst [vmem:[#allocation4 + $0x48] sm:$0xff] %v1468
    %1501 = vst [vmem:[#allocation4 + $0x50] sm:$0xff] %v1469
    %1502 = vst [vmem:[#allocation4 + $0x58] sm:$0xff] %v1470
    %1503 = vst [vmem:[#allocation4 + $0x60] sm:$0xff] %v1471
    %1504 = vst [vmem:[#allocation4 + $0x68] sm:$0xff] %v1472
    %1505 = vst [vmem:[#allocation4 + $0x70] sm:$0xff] %v1473
    %1506 = vst [vmem:[#allocation4 + $0x78] sm:$0xff] %v1474
    %1507 = vst [vmem:[#allocation4 + $0x80] sm:$0xff] %v1475
    %1508 = vst [vmem:[#allocation4 + $0x88] sm:$0xff] %v1476
    %1509 = vst [vmem:[#allocation4 + $0x90] sm:$0xff] %v1477
    %1510 = vst [vmem:[#allocation4 + $0x98] sm:$0xff] %v1478
    %1511 = vst [vmem:[#allocation4 + $0xa0] sm:$0xff] %v1479
    %1512 = vst [vmem:[#allocation4 + $0xa8] sm:$0xff] %v1480
    %1513 = vst [vmem:[#allocation4 + $0xb0] sm:$0xff] %v1481
    %1514 = vst [vmem:[#allocation4 + $0xb8] sm:$0xff] %v1482
    %1515 = vst [vmem:[#allocation4 + $0xc0] sm:$0xff] %v1483
    %1516 = vst [vmem:[#allocation4 + $0xc8] sm:$0xff] %v1484
    %1517 = vst [vmem:[#allocation4 + $0xd0] sm:$0xff] %v1485
    %1518 = vst [vmem:[#allocation4 + $0xd8] sm:$0xff] %v1486
    %1519 = vst [vmem:[#allocation4 + $0xe0] sm:$0xff] %v1487
    %1520 = vst [vmem:[#allocation4 + $0xe8] sm:$0xff] %v1488
    %1521 = vst [vmem:[#allocation4 + $0xf0] sm:$0xff] %v1489
    %1522 = vst [vmem:[#allocation4 + $0xf8] sm:$0xff] %v1490
    // Predicated region
    $region30: #{tpu_custom_call.1} parent=1 // pred_check
      _
    $region31: #{tpu_custom_call.1} parent=1 // pred_check_branch
      %1524 = sbr.rel (0) target = $region33
    $region32: #{tpu_custom_call.1} parent=1 // pred_region
      %s1526 = ssub.s32 4096, 4096
      %1527 = vsyncadd [#allocation3], %s1526
      %s1528 = sshll.u32 [#allocation2], 4
      %s1529 = int_to_ptr.vmem [resolvable:$true] %s1528
      %1534 = dma.vmem_to_hbm [thread:$0]  %s1529, 4096, %s7, [#allocation3], 128, 128, 8
    $region33: #{tpu_custom_call.1} parent=1 // pred_fallthru
      _
    // Predicated region
    $region34: #{tpu_custom_call.1} parent=1 // pred_check
      _
    $region35: #{tpu_custom_call.1} parent=1 // pred_check_branch
      %1536 = sbr.rel (0) target = $region37
    $region36: #{tpu_custom_call.1} parent=1 // pred_region
      %s1538 = ssub.s32 4096, 4096
      %1539 = vsyncadd [#allocation5], %s1538
      %s1540 = sshll.u32 [#allocation4], 4
      %s1541 = int_to_ptr.vmem [resolvable:$true] %s1540
      %1546 = dma.vmem_to_hbm [thread:$0]  %s1541, 4096, %s8, [#allocation5], 128, 128, 8
    $region37: #{tpu_custom_call.1} parent=1 // pred_fallthru
      _
    // Predicated region
    $region38: #{tpu_custom_call.1} parent=1 // pred_check
      _
    $region39: #{tpu_custom_call.1} parent=1 // pred_check_branch
      %1548 = sbr.rel (0) target = $region41
    $region40: #{tpu_custom_call.1} parent=1 // pred_region
      %s1550 = ssub.s32 4096, 4096
      %1551 = vsyncadd [#allocation5], %s1550
      %s1552 = sshll.u32 [#allocation6], 4
      %s1553 = int_to_ptr.vmem [resolvable:$true] %s1552
      %1558 = dma.vmem_to_hbm [thread:$0]  %s1553, 4096, %s9, [#allocation5], 128, 128, 8
    $region41: #{tpu_custom_call.1} parent=1 // pred_fallthru
      _
    // Predicated region
    $region42: #{tpu_custom_call.1} parent=1 // pred_check
      _
    $region43: #{tpu_custom_call.1} parent=1 // pred_check_branch
      %1560 = sbr.rel (0) target = $region45
    $region44: #{tpu_custom_call.1} parent=1 // pred_region
      %1561 = dma.done [#allocation3], 4096
    $region45: #{tpu_custom_call.1} parent=1 // pred_fallthru
      _
    // Predicated region
    $region46: #{tpu_custom_call.1} parent=1 // pred_check
      _
    $region47: #{tpu_custom_call.1} parent=1 // pred_check_branch
      %1563 = sbr.rel (0) target = $region49
    $region48: #{tpu_custom_call.1} parent=1 // pred_region
      %1564 = dma.done [#allocation5], 4096
    $region49: #{tpu_custom_call.1} parent=1 // pred_fallthru
      _
    // Predicated region
    $region50: #{tpu_custom_call.1} parent=1 // pred_check
      _
    $region51: #{tpu_custom_call.1} parent=1 // pred_check_branch
      %1566 = sbr.rel (0) target = $region53
    $region52: #{tpu_custom_call.1} parent=1 // pred_region
      %1567 = dma.done [#allocation5], 4096
    $region53: #{tpu_custom_call.1} parent=1 // pred_fallthru
      _
    %1568 = vsyncpa [#allocation3], 1
    %1569 = vsyncpa [#allocation5], 1

// kernel: tpu_custom_call.1
$region0: #{tpu_custom_call.1}
  #allocation0 [shape = 'u32[]', space=smem, size = 0x4, offset = 0x4, fixed_abs, tag = 'smem constant byte address 0x4 - core index']
  #allocation1 [shape = 'u32[144,128]{1,0:T(1,128)}', space=vmem, size = 0x12000, scoped, tag = 'internal scratch']
  %s0 = inlined_call_operand.vmem [shape: f32[250,32], index: 0, kind: input, shape index: {}]
  %s1 = inlined_call_operand.vmem [shape: bf16[32,128], index: 1, kind: input, shape index: {}]
  %s2 = inlined_call_operand.vmem [shape: bf16[128,128], index: 2, kind: input, shape index: {}]
  %s3 = inlined_call_operand.vmem [shape: bf16[128,128], index: 3, kind: input, shape index: {}]
  %s4 = inlined_call_operand.vmem [shape: f32[1,128], index: 4, kind: input, shape index: {}]
  %s5 = inlined_call_operand.vmem [shape: bf16[128,128], index: 5, kind: input, shape index: {}]
  %s6 = inlined_call_operand.vmem [shape: f32[1,128], index: 6, kind: input, shape index: {}]
  %s7 = inlined_call_operand.hbm [shape: f32[250,128], index: 7, kind: output, shape index: {0}]
  %s8 = inlined_call_operand.hbm [shape: f32[250,128], index: 8, kind: output, shape index: {1}]
  %s9 = inlined_call_operand.hbm [shape: f32[250,128], index: 9, kind: output, shape index: {2}]
  %10 = xla_tuple %s7, %s8, %s9
  %s11 = sld [smem:[#allocation0]]
  $region54: #{tpu_custom_call.1} parent=0
    _
  %s13 = ssub.s32 1, %s11
  %s14 = scalar_select 0, %s13, %s11
  $region1: #{tpu_custom_call.1} parent=0
    #allocation2 [shape = 'u8[131072]{0}', space=vmem, size = 0x20000, scoped, tag = 'output window, operand 0, single buffered']
    #allocation3 [shape = 's32[1]{0}', space=sflag, size = 0x4, scoped, tag = 'scoped memory for tpu_custom_call.1']
    #allocation4 [shape = 'u8[131072]{0}', space=vmem, size = 0x20000, scoped, tag = 'output window, operand 1, single buffered']
    #allocation5 [shape = 's32[1]{0}', space=sflag, size = 0x4, scoped, tag = 'scoped memory for tpu_custom_call.1']
    #allocation6 [shape = 'u8[131072]{0}', space=vmem, size = 0x20000, scoped, tag = 'output window, operand 2, single buffered']
    %15 = vsyncpa [#allocation3], 0
    %16 = vsyncpa [#allocation5], 0
    // Predicated region
    $region2: #{tpu_custom_call.1} parent=1 // pred_check
      _
    $region3: #{tpu_custom_call.1} parent=1 // pred_check_branch
      %18 = sbr.rel (0) target = $region5
    $region4: #{tpu_custom_call.1} parent=1 // pred_region
      _
    $region5: #{tpu_custom_call.1} parent=1 // pred_fallthru
      _
    // Predicated region
    $region6: #{tpu_custom_call.1} parent=1 // pred_check
      _
    $region7: #{tpu_custom_call.1} parent=1 // pred_check_branch
      %20 = sbr.rel (0) target = $region9
    $region8: #{tpu_custom_call.1} parent=1 // pred_region
      _
    $region9: #{tpu_custom_call.1} parent=1 // pred_fallthru
      _
    // Predicated region
    $region10: #{tpu_custom_call.1} parent=1 // pred_check
      _
    $region11: #{tpu_custom_call.1} parent=1 // pred_check_branch
      %22 = sbr.rel (0) target = $region13
    $region12: #{tpu_custom_call.1} parent=1 // pred_region
      _
    $region13: #{tpu_custom_call.1} parent=1 // pred_fallthru
      _
    // Predicated region
    $region14: #{tpu_custom_call.1} parent=1 // pred_check
      _
    $region15: #{tpu_custom_call.1} parent=1 // pred_check_branch
      %24 = sbr.rel (0) target = $region17
    $region16: #{tpu_custom_call.1} parent=1 // pred_region
      _
    $region17: #{tpu_custom_call.1} parent=1 // pred_fallthru
      _
    // Predicated region
    $region18: #{tpu_custom_call.1} parent=1 // pred_check
      _
    $region19: #{tpu_custom_call.1} parent=1 // pred_check_branch
      %26 = sbr.rel (0) target = $region21
    $region20: #{tpu_custom_call.1} parent=1 // pred_region
      _
    $region21: #{tpu_custom_call.1} parent=1 // pred_fallthru
      _
    // Predicated region
    $region22: #{tpu_custom_call.1} parent=1 // pred_check
      _
    $region23: #{tpu_custom_call.1} parent=1 // pred_check_branch
      %28 = sbr.rel (0) target = $region25
    $region24: #{tpu_custom_call.1} parent=1 // pred_region
      _
    $region25: #{tpu_custom_call.1} parent=1 // pred_fallthru
      _
    // Predicated region
    $region26: #{tpu_custom_call.1} parent=1 // pred_check
      _
    $region27: #{tpu_custom_call.1} parent=1 // pred_check_branch
      %30 = sbr.rel (0) target = $region29
    $region28: #{tpu_custom_call.1} parent=1 // pred_region
      _
    $region29: #{tpu_custom_call.1} parent=1 // pred_fallthru
      _
    %v32 = vld [vmem:[%s0] sm:$0xff]
    %v33 = vld [vmem:[%s0 + $0x8] sm:$0xff]
    %v34 = vld [vmem:[%s0 + $0x10] sm:$0xff]
    %v35 = vld [vmem:[%s0 + $0x18] sm:$0xff]
    %v36 = vld [vmem:[%s0 + $0x20] sm:$0xff]
    %v37 = vld [vmem:[%s0 + $0x28] sm:$0xff]
    %v38 = vld [vmem:[%s0 + $0x30] sm:$0xff]
    %v39 = vld [vmem:[%s0 + $0x38] sm:$0xff]
    %v40 = vld [vmem:[%s0 + $0x40] sm:$0xff]
    %v41 = vld [vmem:[%s0 + $0x48] sm:$0xff]
    %v42 = vld [vmem:[%s0 + $0x50] sm:$0xff]
    %v43 = vld [vmem:[%s0 + $0x58] sm:$0xff]
    %v44 = vld [vmem:[%s0 + $0x60] sm:$0xff]
    %v45 = vld [vmem:[%s0 + $0x68] sm:$0xff]
    %v46 = vld [vmem:[%s0 + $0x70] sm:$0xff]
    %v47 = vld [vmem:[%s0 + $0x78] sm:$0xff]
    %v48 = vld [vmem:[%s0 + $0x80] sm:$0xff]
    %v49 = vld [vmem:[%s0 + $0x88] sm:$0xff]
    %v50 = vld [vmem:[%s0 + $0x90] sm:$0xff]
    %v51 = vld [vmem:[%s0 + $0x98] sm:$0xff]
    %v52 = vld [vmem:[%s0 + $0xa0] sm:$0xff]
    %v53 = vld [vmem:[%s0 + $0xa8] sm:$0xff]
    %v54 = vld [vmem:[%s0 + $0xb0] sm:$0xff]
    %v55 = vld [vmem:[%s0 + $0xb8] sm:$0xff]
    %v56 = vld [vmem:[%s0 + $0xc0] sm:$0xff]
    %v57 = vld [vmem:[%s0 + $0xc8] sm:$0xff]
    %v58 = vld [vmem:[%s0 + $0xd0] sm:$0xff]
    %v59 = vld [vmem:[%s0 + $0xd8] sm:$0xff]
    %v60 = vld [vmem:[%s0 + $0xe0] sm:$0xff]
    %v61 = vld [vmem:[%s0 + $0xe8] sm:$0xff]
    %v62 = vld [vmem:[%s0 + $0xf0] sm:$0xff]
    %v63 = vld [vmem:[%s0 + $0xf8] sm:$0xff]
    %v64 = vpack.c.bf16 %v33, %v32
    %v65 = vpack.c.bf16 %v35, %v34
    %v66 = vpack.c.bf16 %v37, %v36
    %v67 = vpack.c.bf16 %v39, %v38
    %v68 = vpack.c.bf16 %v41, %v40
    %v69 = vpack.c.bf16 %v43, %v42
    %v70 = vpack.c.bf16 %v45, %v44
    %v71 = vpack.c.bf16 %v47, %v46
    %v72 = vpack.c.bf16 %v49, %v48
    %v73 = vpack.c.bf16 %v51, %v50
    %v74 = vpack.c.bf16 %v53, %v52
    %v75 = vpack.c.bf16 %v55, %v54
    %v76 = vpack.c.bf16 %v57, %v56
    %v77 = vpack.c.bf16 %v59, %v58
    %v78 = vpack.c.bf16 %v61, %v60
    %v79 = vpack.c.bf16 %v63, %v62
    %v80 = vld [vmem:[%s1] sm:$0xf]
    %v81 = vld [vmem:[%s1 + $0x4] sm:$0xf]
    %v82 = vld [vmem:[%s1 + $0x8] sm:$0xf]
    %v83 = vld [vmem:[%s1 + $0xc] sm:$0xf]
    %v88 = vunpack.c.l.b16 %v80
    %v89 = vunpack.c.l.b16 %v81
    %v90 = vunpack.c.l.b16 %v82
    %v91 = vunpack.c.l.b16 %v83
    %v92 = vpack.c.b16 %v89, %v88
    %v93 = vpack.c.b16 %v91, %v90
    %vm96 = vcmask 261120
    %v98 = vsel %vm96, %v64, 0
    %v101 = vsel %vm96, %v65, 0
    %v104 = vsel %vm96, %v66, 0
    %v107 = vsel %vm96, %v67, 0
    %v110 = vsel %vm96, %v68, 0
    %v113 = vsel %vm96, %v69, 0
    %v116 = vsel %vm96, %v70, 0
    %v119 = vsel %vm96, %v71, 0
    %v122 = vsel %vm96, %v72, 0
    %v125 = vsel %vm96, %v73, 0
    %v128 = vsel %vm96, %v74, 0
    %v131 = vsel %vm96, %v75, 0
    %v134 = vsel %vm96, %v76, 0
    %v137 = vsel %vm96, %v77, 0
    %v140 = vsel %vm96, %v78, 0
    %v143 = vsel %vm96, %v79, 0
    %145 = vmatprep.subr.bf16.mxu0 0
    %146 = vmatpush1.bf16.msra.mxu0 %v92
    %147 = vmatprep.subr.bf16.mxu0 0
    %148 = vmatpush1.bf16.msra.mxu0 %v93
    %149 = vmatprep.subr.bf16.mxu0 0
    %150 = vmatpush1.bf16.msra.mxu0 0
    %151 = vmatprep.subr.bf16.mxu0 0
    %152 = vmatpush1.bf16.msra.mxu0 0
    %153 = vmatprep.subr.bf16.mxu0 0
    %154 = vmatpush1.bf16.msra.mxu0 0
    %155 = vmatprep.subr.bf16.mxu0 0
    %156 = vmatpush1.bf16.msra.mxu0 0
    %157 = vmatprep.subr.bf16.mxu0 0
    %158 = vmatpush1.bf16.msra.mxu0 0
    %159 = vmatprep.subr.bf16.mxu0 0
    %160 = vmatpush1.bf16.msra.mxu0 0
    %161 = vmatprep.subr.bf16.mxu0 0
    %162 = vmatpush1.bf16.msra.mxu0 0
    %163 = vmatprep.subr.bf16.mxu0 0
    %164 = vmatpush1.bf16.msra.mxu0 0
    %165 = vmatprep.subr.bf16.mxu0 0
    %166 = vmatpush1.bf16.msra.mxu0 0
    %167 = vmatprep.subr.bf16.mxu0 0
    %168 = vmatpush1.bf16.msra.mxu0 0
    %169 = vmatprep.subr.bf16.mxu0 0
    %170 = vmatpush1.bf16.msra.mxu0 0
    %171 = vmatprep.subr.bf16.mxu0 0
    %172 = vmatpush1.bf16.msra.mxu0 0
    %173 = vmatprep.subr.bf16.mxu0 0
    %174 = vmatpush1.bf16.msra.mxu0 0
    %175 = vmatprep.subr.bf16.mxu0 0
    %176 = vmatpush1.bf16.msra.mxu0 0
    %177 = vmatprep.mubr.bf16.mxu0 0
    %178 = vmatmul.mubr.bf16.gmra.mrb[0].mxu0 %v98
    %v179 = vpop.f32.mrb[0].mxu0
    %v180 = vadd.f32 0.0, %v179
    %v181 = vpop.f32.mrb[0].mxu0
    %v182 = vpop.f32.mrb[0].mxu0
    %v183 = vadd.f32 0.0, %v182
    %v184 = vpop.f32.mrb[0].mxu0
    %185 = vmatprep.mubr.bf16.mxu0 0
    %186 = vmatmul.mubr.bf16.gmra.mrb[0].mxu0 %v101
    %v187 = vpop.f32.mrb[0].mxu0
    %v188 = vadd.f32 0.0, %v187
    %v189 = vpop.f32.mrb[0].mxu0
    %v190 = vpop.f32.mrb[0].mxu0
    %v191 = vadd.f32 0.0, %v190
    %v192 = vpop.f32.mrb[0].mxu0
    %193 = vmatprep.mubr.bf16.mxu0 0
    %194 = vmatmul.mubr.bf16.gmra.mrb[0].mxu0 %v104
    %v195 = vpop.f32.mrb[0].mxu0
    %v196 = vadd.f32 0.0, %v195
    %v197 = vpop.f32.mrb[0].mxu0
    %v198 = vpop.f32.mrb[0].mxu0
    %v199 = vadd.f32 0.0, %v198
    %v200 = vpop.f32.mrb[0].mxu0
    %201 = vmatprep.mubr.bf16.mxu0 0
    %202 = vmatmul.mubr.bf16.gmra.mrb[0].mxu0 %v107
    %v203 = vpop.f32.mrb[0].mxu0
    %v204 = vadd.f32 0.0, %v203
    %v205 = vpop.f32.mrb[0].mxu0
    %v206 = vpop.f32.mrb[0].mxu0
    %v207 = vadd.f32 0.0, %v206
    %v208 = vpop.f32.mrb[0].mxu0
    %209 = vmatprep.mubr.bf16.mxu0 0
    %210 = vmatmul.mubr.bf16.gmra.mrb[0].mxu0 %v110
    %v211 = vpop.f32.mrb[0].mxu0
    %v212 = vadd.f32 0.0, %v211
    %v213 = vpop.f32.mrb[0].mxu0
    %v214 = vpop.f32.mrb[0].mxu0
    %v215 = vadd.f32 0.0, %v214
    %v216 = vpop.f32.mrb[0].mxu0
    %217 = vmatprep.mubr.bf16.mxu0 0
    %218 = vmatmul.mubr.bf16.gmra.mrb[0].mxu0 %v113
    %v219 = vpop.f32.mrb[0].mxu0
    %v220 = vadd.f32 0.0, %v219
    %v221 = vpop.f32.mrb[0].mxu0
    %v222 = vpop.f32.mrb[0].mxu0
    %v223 = vadd.f32 0.0, %v222
    %v224 = vpop.f32.mrb[0].mxu0
    %225 = vmatprep.mubr.bf16.mxu0 0
    %226 = vmatmul.mubr.bf16.gmra.mrb[0].mxu0 %v116
    %v227 = vpop.f32.mrb[0].mxu0
    %v228 = vadd.f32 0.0, %v227
    %v229 = vpop.f32.mrb[0].mxu0
    %v230 = vpop.f32.mrb[0].mxu0
    %v231 = vadd.f32 0.0, %v230
    %v232 = vpop.f32.mrb[0].mxu0
    %233 = vmatprep.mubr.bf16.mxu0 0
    %234 = vmatmul.mubr.bf16.gmra.mrb[0].mxu0 %v119
    %v235 = vpop.f32.mrb[0].mxu0
    %v236 = vadd.f32 0.0, %v235
    %v237 = vpop.f32.mrb[0].mxu0
    %v238 = vpop.f32.mrb[0].mxu0
    %v239 = vadd.f32 0.0, %v238
    %v240 = vpop.f32.mrb[0].mxu0
    %241 = vmatprep.mubr.bf16.mxu0 0
    %242 = vmatmul.mubr.bf16.gmra.mrb[0].mxu0 %v122
    %v243 = vpop.f32.mrb[0].mxu0
    %v244 = vadd.f32 0.0, %v243
    %v245 = vpop.f32.mrb[0].mxu0
    %v246 = vpop.f32.mrb[0].mxu0
    %v247 = vadd.f32 0.0, %v246
    %v248 = vpop.f32.mrb[0].mxu0
    %249 = vmatprep.mubr.bf16.mxu0 0
    %250 = vmatmul.mubr.bf16.gmra.mrb[0].mxu0 %v125
    %v251 = vpop.f32.mrb[0].mxu0
    %v252 = vadd.f32 0.0, %v251
    %v253 = vpop.f32.mrb[0].mxu0
    %v254 = vpop.f32.mrb[0].mxu0
    %v255 = vadd.f32 0.0, %v254
    %v256 = vpop.f32.mrb[0].mxu0
    %257 = vmatprep.mubr.bf16.mxu0 0
    %258 = vmatmul.mubr.bf16.gmra.mrb[0].mxu0 %v128
    %v259 = vpop.f32.mrb[0].mxu0
    %v260 = vadd.f32 0.0, %v259
    %v261 = vpop.f32.mrb[0].mxu0
    %v262 = vpop.f32.mrb[0].mxu0
    %v263 = vadd.f32 0.0, %v262
    %v264 = vpop.f32.mrb[0].mxu0
    %265 = vmatprep.mubr.bf16.mxu0 0
    %266 = vmatmul.mubr.bf16.gmra.mrb[0].mxu0 %v131
    %v267 = vpop.f32.mrb[0].mxu0
    %v268 = vadd.f32 0.0, %v267
    %v269 = vpop.f32.mrb[0].mxu0
    %v270 = vpop.f32.mrb[0].mxu0
    %v271 = vadd.f32 0.0, %v270
    %v272 = vpop.f32.mrb[0].mxu0
    %273 = vmatprep.mubr.bf16.mxu0 0
    %274 = vmatmul.mubr.bf16.gmra.mrb[0].mxu0 %v134
    %v275 = vpop.f32.mrb[0].mxu0
    %v276 = vadd.f32 0.0, %v275
    %v277 = vpop.f32.mrb[0].mxu0
    %v278 = vpop.f32.mrb[0].mxu0
    %v279 = vadd.f32 0.0, %v278
    %v280 = vpop.f32.mrb[0].mxu0
    %281 = vmatprep.mubr.bf16.mxu0 0
    %282 = vmatmul.mubr.bf16.gmra.mrb[0].mxu0 %v137
    %v283 = vpop.f32.mrb[0].mxu0
    %v284 = vadd.f32 0.0, %v283
    %v285 = vpop.f32.mrb[0].mxu0
    %v286 = vpop.f32.mrb[0].mxu0
    %v287 = vadd.f32 0.0, %v286
    %v288 = vpop.f32.mrb[0].mxu0
    %289 = vmatprep.mubr.bf16.mxu0 0
    %290 = vmatmul.mubr.bf16.gmra.mrb[0].mxu0 %v140
    %v291 = vpop.f32.mrb[0].mxu0
    %v292 = vadd.f32 0.0, %v291
    %v293 = vpop.f32.mrb[0].mxu0
    %v294 = vpop.f32.mrb[0].mxu0
    %v295 = vadd.f32 0.0, %v294
    %v296 = vpop.f32.mrb[0].mxu0
    %297 = vmatprep.mubr.bf16.mxu0 0
    %298 = vmatmul.mubr.bf16.gmra.mrb[0].mxu0 %v143
    %v299 = vpop.f32.mrb[0].mxu0
    %v300 = vadd.f32 0.0, %v299
    %v301 = vpop.f32.mrb[0].mxu0
    %v302 = vpop.f32.mrb[0].mxu0
    %v303 = vadd.f32 0.0, %v302
    %v304 = vpop.f32.mrb[0].mxu0
    %305 = vdwg.mxu0
    %v306 = vmax.f32 %v180, 0.0
    %v307 = vmax.f32 %v183, 0.0
    %v308 = vmax.f32 %v188, 0.0
    %v309 = vmax.f32 %v191, 0.0
    %v310 = vmax.f32 %v196, 0.0
    %v311 = vmax.f32 %v199, 0.0
    %v312 = vmax.f32 %v204, 0.0
    %v313 = vmax.f32 %v207, 0.0
    %v314 = vmax.f32 %v212, 0.0
    %v315 = vmax.f32 %v215, 0.0
    %v316 = vmax.f32 %v220, 0.0
    %v317 = vmax.f32 %v223, 0.0
    %v318 = vmax.f32 %v228, 0.0
    %v319 = vmax.f32 %v231, 0.0
    %v320 = vmax.f32 %v236, 0.0
    %v321 = vmax.f32 %v239, 0.0
    %v322 = vmax.f32 %v244, 0.0
    %v323 = vmax.f32 %v247, 0.0
    %v324 = vmax.f32 %v252, 0.0
    %v325 = vmax.f32 %v255, 0.0
    %v326 = vmax.f32 %v260, 0.0
    %v327 = vmax.f32 %v263, 0.0
    %v328 = vmax.f32 %v268, 0.0
    %v329 = vmax.f32 %v271, 0.0
    %v330 = vmax.f32 %v276, 0.0
    %v331 = vmax.f32 %v279, 0.0
    %v332 = vmax.f32 %v284, 0.0
    %v333 = vmax.f32 %v287, 0.0
    %v334 = vmax.f32 %v292, 0.0
    %v335 = vmax.f32 %v295, 0.0
    %v336 = vmax.f32 %v300, 0.0
    %v337 = vmax.f32 %v303, 0.0
    %v338 = vpack.c.bf16 %v307, %v306
    %v339 = vpack.c.bf16 %v309, %v308
    %v340 = vpack.c.bf16 %v311, %v310
    %v341 = vpack.c.bf16 %v313, %v312
    %v342 = vpack.c.bf16 %v315, %v314
    %v343 = vpack.c.bf16 %v317, %v316
    %v344 = vpack.c.bf16 %v319, %v318
    %v345 = vpack.c.bf16 %v321, %v320
    %v346 = vpack.c.bf16 %v323, %v322
    %v347 = vpack.c.bf16 %v325, %v324
    %v348 = vpack.c.bf16 %v327, %v326
    %v349 = vpack.c.bf16 %v329, %v328
    %v350 = vpack.c.bf16 %v331, %v330
    %v351 = vpack.c.bf16 %v333, %v332
    %v352 = vpack.c.bf16 %v335, %v334
    %v353 = vpack.c.bf16 %v337, %v336
    %v354 = vld [vmem:[%s2] sm:$0xf]
    %v355 = vld [vmem:[%s2 + $0x4] sm:$0xf]
    %v356 = vld [vmem:[%s2 + $0x8] sm:$0xf]
    %v357 = vld [vmem:[%s2 + $0xc] sm:$0xf]
    %v358 = vld [vmem:[%s2 + $0x10] sm:$0xf]
    %v359 = vld [vmem:[%s2 + $0x14] sm:$0xf]
    %v360 = vld [vmem:[%s2 + $0x18] sm:$0xf]
    %v361 = vld [vmem:[%s2 + $0x1c] sm:$0xf]
    %v362 = vld [vmem:[%s2 + $0x20] sm:$0xf]
    %v363 = vld [vmem:[%s2 + $0x24] sm:$0xf]
    %v364 = vld [vmem:[%s2 + $0x28] sm:$0xf]
    %v365 = vld [vmem:[%s2 + $0x2c] sm:$0xf]
    %v366 = vld [vmem:[%s2 + $0x30] sm:$0xf]
    %v367 = vld [vmem:[%s2 + $0x34] sm:$0xf]
    %v368 = vld [vmem:[%s2 + $0x38] sm:$0xf]
    %v369 = vld [vmem:[%s2 + $0x3c] sm:$0xf]
    %v386 = vunpack.c.l.b16 %v354
    %v387 = vunpack.c.l.b16 %v355
    %v388 = vunpack.c.l.b16 %v356
    %v389 = vunpack.c.l.b16 %v357
    %v390 = vunpack.c.l.b16 %v358
    %v391 = vunpack.c.l.b16 %v359
    %v392 = vunpack.c.l.b16 %v360
    %v393 = vunpack.c.l.b16 %v361
    %v394 = vunpack.c.l.b16 %v362
    %v395 = vunpack.c.l.b16 %v363
    %v396 = vunpack.c.l.b16 %v364
    %v397 = vunpack.c.l.b16 %v365
    %v398 = vunpack.c.l.b16 %v366
    %v399 = vunpack.c.l.b16 %v367
    %v400 = vunpack.c.l.b16 %v368
    %v401 = vunpack.c.l.b16 %v369
    %v402 = vpack.c.b16 %v387, %v386
    %v403 = vpack.c.b16 %v389, %v388
    %v404 = vpack.c.b16 %v391, %v390
    %v405 = vpack.c.b16 %v393, %v392
    %v406 = vpack.c.b16 %v395, %v394
    %v407 = vpack.c.b16 %v397, %v396
    %v408 = vpack.c.b16 %v399, %v398
    %v409 = vpack.c.b16 %v401, %v400
    %418 = vmatprep.subr.bf16.mxu0 0
    %419 = vmatpush1.bf16.msra.mxu0 %v402
    %420 = vmatprep.subr.bf16.mxu0 0
    %421 = vmatpush1.bf16.msra.mxu0 %v403
    %422 = vmatprep.subr.bf16.mxu0 0
    %423 = vmatpush1.bf16.msra.mxu0 %v404
    %424 = vmatprep.subr.bf16.mxu0 0
    %425 = vmatpush1.bf16.msra.mxu0 %v405
    %426 = vmatprep.subr.bf16.mxu0 0
    %427 = vmatpush1.bf16.msra.mxu0 %v406
    %428 = vmatprep.subr.bf16.mxu0 0
    %429 = vmatpush1.bf16.msra.mxu0 %v407
    %430 = vmatprep.subr.bf16.mxu0 0
    %431 = vmatpush1.bf16.msra.mxu0 %v408
    %432 = vmatprep.subr.bf16.mxu0 0
    %433 = vmatpush1.bf16.msra.mxu0 %v409
    %434 = vmatprep.subr.bf16.mxu0 0
    %435 = vmatpush1.bf16.msra.mxu0 0
    %436 = vmatprep.subr.bf16.mxu0 0
    %437 = vmatpush1.bf16.msra.mxu0 0
    %438 = vmatprep.subr.bf16.mxu0 0
    %439 = vmatpush1.bf16.msra.mxu0 0
    %440 = vmatprep.subr.bf16.mxu0 0
    %441 = vmatpush1.bf16.msra.mxu0 0
    %442 = vmatprep.subr.bf16.mxu0 0
    %443 = vmatpush1.bf16.msra.mxu0 0
    %444 = vmatprep.subr.bf16.mxu0 0
    %445 = vmatpush1.bf16.msra.mxu0 0
    %446 = vmatprep.subr.bf16.mxu0 0
    %447 = vmatpush1.bf16.msra.mxu0 0
    %448 = vmatprep.subr.bf16.mxu0 0
    %449 = vmatpush1.bf16.msra.mxu0 0
    %450 = vmatprep.mubr.bf16.mxu0 0
    %451 = vmatmul.mubr.bf16.gmra.mrb[0].mxu0 %v338
    %v452 = vpop.f32.mrb[0].mxu0
    %v453 = vadd.f32 0.0, %v452
    %v454 = vpop.f32.mrb[0].mxu0
    %v455 = vpop.f32.mrb[0].mxu0
    %v456 = vadd.f32 0.0, %v455
    %v457 = vpop.f32.mrb[0].mxu0
    %458 = vmatprep.mubr.bf16.mxu0 0
    %459 = vmatmul.mubr.bf16.gmra.mrb[0].mxu0 %v339
    %v460 = vpop.f32.mrb[0].mxu0
    %v461 = vadd.f32 0.0, %v460
    %v462 = vpop.f32.mrb[0].mxu0
    %v463 = vpop.f32.mrb[0].mxu0
    %v464 = vadd.f32 0.0, %v463
    %v465 = vpop.f32.mrb[0].mxu0
    %466 = vmatprep.mubr.bf16.mxu0 0
    %467 = vmatmul.mubr.bf16.gmra.mrb[0].mxu0 %v340
    %v468 = vpop.f32.mrb[0].mxu0
    %v469 = vadd.f32 0.0, %v468
    %v470 = vpop.f32.mrb[0].mxu0
    %v471 = vpop.f32.mrb[0].mxu0
    %v472 = vadd.f32 0.0, %v471
    %v473 = vpop.f32.mrb[0].mxu0
    %474 = vmatprep.mubr.bf16.mxu0 0
    %475 = vmatmul.mubr.bf16.gmra.mrb[0].mxu0 %v341
    %v476 = vpop.f32.mrb[0].mxu0
    %v477 = vadd.f32 0.0, %v476
    %v478 = vpop.f32.mrb[0].mxu0
    %v479 = vpop.f32.mrb[0].mxu0
    %v480 = vadd.f32 0.0, %v479
    %v481 = vpop.f32.mrb[0].mxu0
    %482 = vmatprep.mubr.bf16.mxu0 0
    %483 = vmatmul.mubr.bf16.gmra.mrb[0].mxu0 %v342
    %v484 = vpop.f32.mrb[0].mxu0
    %v485 = vadd.f32 0.0, %v484
    %v486 = vpop.f32.mrb[0].mxu0
    %v487 = vpop.f32.mrb[0].mxu0
    %v488 = vadd.f32 0.0, %v487
    %v489 = vpop.f32.mrb[0].mxu0
    %490 = vmatprep.mubr.bf16.mxu0 0
    %491 = vmatmul.mubr.bf16.gmra.mrb[0].mxu0 %v343
    %v492 = vpop.f32.mrb[0].mxu0
    %v493 = vadd.f32 0.0, %v492
    %v494 = vpop.f32.mrb[0].mxu0
    %v495 = vpop.f32.mrb[0].mxu0
    %v496 = vadd.f32 0.0, %v495
    %v497 = vpop.f32.mrb[0].mxu0
    %498 = vmatprep.mubr.bf16.mxu0 0
    %499 = vmatmul.mubr.bf16.gmra.mrb[0].mxu0 %v344
    %v500 = vpop.f32.mrb[0].mxu0
    %v501 = vadd.f32 0.0, %v500
    %v502 = vpop.f32.mrb[0].mxu0
    %v503 = vpop.f32.mrb[0].mxu0
    %v504 = vadd.f32 0.0, %v503
    %v505 = vpop.f32.mrb[0].mxu0
    %506 = vmatprep.mubr.bf16.mxu0 0
    %507 = vmatmul.mubr.bf16.gmra.mrb[0].mxu0 %v345
    %v508 = vpop.f32.mrb[0].mxu0
    %v509 = vadd.f32 0.0, %v508
    %v510 = vpop.f32.mrb[0].mxu0
    %v511 = vpop.f32.mrb[0].mxu0
    %v512 = vadd.f32 0.0, %v511
    %v513 = vpop.f32.mrb[0].mxu0
    %514 = vmatprep.mubr.bf16.mxu0 0
    %515 = vmatmul.mubr.bf16.gmra.mrb[0].mxu0 %v346
    %v516 = vpop.f32.mrb[0].mxu0
    %v517 = vadd.f32 0.0, %v516
    %v518 = vpop.f32.mrb[0].mxu0
    %v519 = vpop.f32.mrb[0].mxu0
    %v520 = vadd.f32 0.0, %v519
    %v521 = vpop.f32.mrb[0].mxu0
    %522 = vmatprep.mubr.bf16.mxu0 0
    %523 = vmatmul.mubr.bf16.gmra.mrb[0].mxu0 %v347
    %v524 = vpop.f32.mrb[0].mxu0
    %v525 = vadd.f32 0.0, %v524
    %v526 = vpop.f32.mrb[0].mxu0
    %v527 = vpop.f32.mrb[0].mxu0
    %v528 = vadd.f32 0.0, %v527
    %v529 = vpop.f32.mrb[0].mxu0
    %530 = vmatprep.mubr.bf16.mxu0 0
    %531 = vmatmul.mubr.bf16.gmra.mrb[0].mxu0 %v348
    %v532 = vpop.f32.mrb[0].mxu0
    %v533 = vadd.f32 0.0, %v532
    %v534 = vpop.f32.mrb[0].mxu0
    %v535 = vpop.f32.mrb[0].mxu0
    %v536 = vadd.f32 0.0, %v535
    %v537 = vpop.f32.mrb[0].mxu0
    %538 = vmatprep.mubr.bf16.mxu0 0
    %539 = vmatmul.mubr.bf16.gmra.mrb[0].mxu0 %v349
    %v540 = vpop.f32.mrb[0].mxu0
    %v541 = vadd.f32 0.0, %v540
    %v542 = vpop.f32.mrb[0].mxu0
    %v543 = vpop.f32.mrb[0].mxu0
    %v544 = vadd.f32 0.0, %v543
    %v545 = vpop.f32.mrb[0].mxu0
    %546 = vmatprep.mubr.bf16.mxu0 0
    %547 = vmatmul.mubr.bf16.gmra.mrb[0].mxu0 %v350
    %v548 = vpop.f32.mrb[0].mxu0
    %v549 = vadd.f32 0.0, %v548
    %v550 = vpop.f32.mrb[0].mxu0
    %v551 = vpop.f32.mrb[0].mxu0
    %v552 = vadd.f32 0.0, %v551
    %v553 = vpop.f32.mrb[0].mxu0
    %554 = vmatprep.mubr.bf16.mxu0 0
    %555 = vmatmul.mubr.bf16.gmra.mrb[0].mxu0 %v351
    %v556 = vpop.f32.mrb[0].mxu0
    %v557 = vadd.f32 0.0, %v556
    %v558 = vpop.f32.mrb[0].mxu0
    %v559 = vpop.f32.mrb[0].mxu0
    %v560 = vadd.f32 0.0, %v559
    %v561 = vpop.f32.mrb[0].mxu0
    %562 = vmatprep.mubr.bf16.mxu0 0
    %563 = vmatmul.mubr.bf16.gmra.mrb[0].mxu0 %v352
    %v564 = vpop.f32.mrb[0].mxu0
    %v565 = vadd.f32 0.0, %v564
    %v566 = vpop.f32.mrb[0].mxu0
    %v567 = vpop.f32.mrb[0].mxu0
    %v568 = vadd.f32 0.0, %v567
    %v569 = vpop.f32.mrb[0].mxu0
    %570 = vmatprep.mubr.bf16.mxu0 0
    %571 = vmatmul.mubr.bf16.gmra.mrb[0].mxu0 %v353
    %v572 = vpop.f32.mrb[0].mxu0
    %v573 = vadd.f32 0.0, %v572
    %v574 = vpop.f32.mrb[0].mxu0
    %v575 = vpop.f32.mrb[0].mxu0
    %v576 = vadd.f32 0.0, %v575
    %v577 = vpop.f32.mrb[0].mxu0
    %578 = vdwg.mxu0
    %v579 = vmax.f32 %v453, 0.0
    %v580 = vmax.f32 %v456, 0.0
    %v581 = vmax.f32 %v461, 0.0
    %v582 = vmax.f32 %v464, 0.0
    %v583 = vmax.f32 %v469, 0.0
    %v584 = vmax.f32 %v472, 0.0
    %v585 = vmax.f32 %v477, 0.0
    %v586 = vmax.f32 %v480, 0.0
    %v587 = vmax.f32 %v485, 0.0
    %v588 = vmax.f32 %v488, 0.0
    %v589 = vmax.f32 %v493, 0.0
    %v590 = vmax.f32 %v496, 0.0
    %v591 = vmax.f32 %v501, 0.0
    %v592 = vmax.f32 %v504, 0.0
    %v593 = vmax.f32 %v509, 0.0
    %v594 = vmax.f32 %v512, 0.0
    %v595 = vmax.f32 %v517, 0.0
    %v596 = vmax.f32 %v520, 0.0
    %v597 = vmax.f32 %v525, 0.0
    %v598 = vmax.f32 %v528, 0.0
    %v599 = vmax.f32 %v533, 0.0
    %v600 = vmax.f32 %v536, 0.0
    %v601 = vmax.f32 %v541, 0.0
    %v602 = vmax.f32 %v544, 0.0
    %v603 = vmax.f32 %v549, 0.0
    %v604 = vmax.f32 %v552, 0.0
    %v605 = vmax.f32 %v557, 0.0
    %v606 = vmax.f32 %v560, 0.0
    %v607 = vmax.f32 %v565, 0.0
    %v608 = vmax.f32 %v568, 0.0
    %v609 = vmax.f32 %v573, 0.0
    %v610 = vmax.f32 %v576, 0.0
    %611 = vst [vmem:[#allocation2] sm:$0xff] %v579
    %612 = vst [vmem:[#allocation2 + $0x8] sm:$0xff] %v580
    %613 = vst [vmem:[#allocation2 + $0x10] sm:$0xff] %v581
    %614 = vst [vmem:[#allocation2 + $0x18] sm:$0xff] %v582
    %615 = vst [vmem:[#allocation2 + $0x20] sm:$0xff] %v583
    %616 = vst [vmem:[#allocation2 + $0x28] sm:$0xff] %v584
    %617 = vst [vmem:[#allocation2 + $0x30] sm:$0xff] %v585
    %618 = vst [vmem:[#allocation2 + $0x38] sm:$0xff] %v586
    %619 = vst [vmem:[#allocation2 + $0x40] sm:$0xff] %v587
    %620 = vst [vmem:[#allocation2 + $0x48] sm:$0xff] %v588
    %621 = vst [vmem:[#allocation2 + $0x50] sm:$0xff] %v589
    %622 = vst [vmem:[#allocation2 + $0x58] sm:$0xff] %v590
    %623 = vst [vmem:[#allocation2 + $0x60] sm:$0xff] %v591
    %624 = vst [vmem:[#allocation2 + $0x68] sm:$0xff] %v592
    %625 = vst [vmem:[#allocation2 + $0x70] sm:$0xff] %v593
    %626 = vst [vmem:[#allocation2 + $0x78] sm:$0xff] %v594
    %627 = vst [vmem:[#allocation2 + $0x80] sm:$0xff] %v595
    %628 = vst [vmem:[#allocation2 + $0x88] sm:$0xff] %v596
    %629 = vst [vmem:[#allocation2 + $0x90] sm:$0xff] %v597
    %630 = vst [vmem:[#allocation2 + $0x98] sm:$0xff] %v598
    %631 = vst [vmem:[#allocation2 + $0xa0] sm:$0xff] %v599
    %632 = vst [vmem:[#allocation2 + $0xa8] sm:$0xff] %v600
    %633 = vst [vmem:[#allocation2 + $0xb0] sm:$0xff] %v601
    %634 = vst [vmem:[#allocation2 + $0xb8] sm:$0xff] %v602
    %635 = vst [vmem:[#allocation2 + $0xc0] sm:$0xff] %v603
    %636 = vst [vmem:[#allocation2 + $0xc8] sm:$0xff] %v604
    %637 = vst [vmem:[#allocation2 + $0xd0] sm:$0xff] %v605
    %638 = vst [vmem:[#allocation2 + $0xd8] sm:$0xff] %v606
    %639 = vst [vmem:[#allocation2 + $0xe0] sm:$0xff] %v607
    %640 = vst [vmem:[#allocation2 + $0xe8] sm:$0xff] %v608
    %641 = vst [vmem:[#allocation2 + $0xf0] sm:$0xff] %v609
    %642 = vst [vmem:[#allocation2 + $0xf8] sm:$0xff] %v610
    %v643 = vpack.c.bf16 %v580, %v579
    %v644 = vpack.c.bf16 %v582, %v581
    %v645 = vpack.c.bf16 %v584, %v583
    %v646 = vpack.c.bf16 %v586, %v585
    %v647 = vpack.c.bf16 %v588, %v587
    %v648 = vpack.c.bf16 %v590, %v589
    %v649 = vpack.c.bf16 %v592, %v591
    %v650 = vpack.c.bf16 %v594, %v593
    %v651 = vpack.c.bf16 %v596, %v595
    %v652 = vpack.c.bf16 %v598, %v597
    %v653 = vpack.c.bf16 %v600, %v599
    %v654 = vpack.c.bf16 %v602, %v601
    %v655 = vpack.c.bf16 %v604, %v603
    %v656 = vpack.c.bf16 %v606, %v605
    %v657 = vpack.c.bf16 %v608, %v607
    %v658 = vpack.c.bf16 %v610, %v609
    %v659 = vld [vmem:[%s3] sm:$0xf]
    %v660 = vld [vmem:[%s3 + $0x4] sm:$0xf]
    %v661 = vld [vmem:[%s3 + $0x8] sm:$0xf]
    %v662 = vld [vmem:[%s3 + $0xc] sm:$0xf]
    %v663 = vld [vmem:[%s3 + $0x10] sm:$0xf]
    %v664 = vld [vmem:[%s3 + $0x14] sm:$0xf]
    %v665 = vld [vmem:[%s3 + $0x18] sm:$0xf]
    %v666 = vld [vmem:[%s3 + $0x1c] sm:$0xf]
    %v667 = vld [vmem:[%s3 + $0x20] sm:$0xf]
    %v668 = vld [vmem:[%s3 + $0x24] sm:$0xf]
    %v669 = vld [vmem:[%s3 + $0x28] sm:$0xf]
    %v670 = vld [vmem:[%s3 + $0x2c] sm:$0xf]
    %v671 = vld [vmem:[%s3 + $0x30] sm:$0xf]
    %v672 = vld [vmem:[%s3 + $0x34] sm:$0xf]
    %v673 = vld [vmem:[%s3 + $0x38] sm:$0xf]
    %v674 = vld [vmem:[%s3 + $0x3c] sm:$0xf]
    %v675 = vld [vmem:[%s4] sm:$0x1]
    %v677 = vlaneseq
    %v678 = vshrl.u32 %v677, 7
    %v679 = vsub.s32 0, %v678
    %v680 = vrot.slane %v675, %v679
    %v698 = vunpack.c.l.b16 %v659
    %v699 = vunpack.c.l.b16 %v660
    %v700 = vunpack.c.l.b16 %v661
    %v701 = vunpack.c.l.b16 %v662
    %v702 = vunpack.c.l.b16 %v663
    %v703 = vunpack.c.l.b16 %v664
    %v704 = vunpack.c.l.b16 %v665
    %v705 = vunpack.c.l.b16 %v666
    %v706 = vunpack.c.l.b16 %v667
    %v707 = vunpack.c.l.b16 %v668
    %v708 = vunpack.c.l.b16 %v669
    %v709 = vunpack.c.l.b16 %v670
    %v710 = vunpack.c.l.b16 %v671
    %v711 = vunpack.c.l.b16 %v672
    %v712 = vunpack.c.l.b16 %v673
    %v713 = vunpack.c.l.b16 %v674
    %v714 = vpack.c.b16 %v699, %v698
    %v715 = vpack.c.b16 %v701, %v700
    %v716 = vpack.c.b16 %v703, %v702
    %v717 = vpack.c.b16 %v705, %v704
    %v718 = vpack.c.b16 %v707, %v706
    %v719 = vpack.c.b16 %v709, %v708
    %v720 = vpack.c.b16 %v711, %v710
    %v721 = vpack.c.b16 %v713, %v712
    %730 = vmatprep.subr.bf16.mxu0 0
    %731 = vmatpush1.bf16.msra.mxu0 %v714
    %732 = vmatprep.subr.bf16.mxu0 0
    %733 = vmatpush1.bf16.msra.mxu0 %v715
    %734 = vmatprep.subr.bf16.mxu0 0
    %735 = vmatpush1.bf16.msra.mxu0 %v716
    %736 = vmatprep.subr.bf16.mxu0 0
    %737 = vmatpush1.bf16.msra.mxu0 %v717
    %738 = vmatprep.subr.bf16.mxu0 0
    %739 = vmatpush1.bf16.msra.mxu0 %v718
    %740 = vmatprep.subr.bf16.mxu0 0
    %741 = vmatpush1.bf16.msra.mxu0 %v719
    %742 = vmatprep.subr.bf16.mxu0 0
    %743 = vmatpush1.bf16.msra.mxu0 %v720
    %744 = vmatprep.subr.bf16.mxu0 0
    %745 = vmatpush1.bf16.msra.mxu0 %v721
    %746 = vmatprep.subr.bf16.mxu0 0
    %747 = vmatpush1.bf16.msra.mxu0 0
    %748 = vmatprep.subr.bf16.mxu0 0
    %749 = vmatpush1.bf16.msra.mxu0 0
    %750 = vmatprep.subr.bf16.mxu0 0
    %751 = vmatpush1.bf16.msra.mxu0 0
    %752 = vmatprep.subr.bf16.mxu0 0
    %753 = vmatpush1.bf16.msra.mxu0 0
    %754 = vmatprep.subr.bf16.mxu0 0
    %755 = vmatpush1.bf16.msra.mxu0 0
    %756 = vmatprep.subr.bf16.mxu0 0
    %757 = vmatpush1.bf16.msra.mxu0 0
    %758 = vmatprep.subr.bf16.mxu0 0
    %759 = vmatpush1.bf16.msra.mxu0 0
    %760 = vmatprep.subr.bf16.mxu0 0
    %761 = vmatpush1.bf16.msra.mxu0 0
    %762 = vmatprep.mubr.bf16.mxu0 0
    %763 = vmatmul.mubr.bf16.gmra.mrb[0].mxu0 %v643
    %v764 = vpop.f32.mrb[0].mxu0
    %v765 = vadd.f32 %v680, %v764
    %v766 = vpop.f32.mrb[0].mxu0
    %v767 = vpop.f32.mrb[0].mxu0
    %v768 = vadd.f32 %v680, %v767
    %v769 = vpop.f32.mrb[0].mxu0
    %770 = vmatprep.mubr.bf16.mxu0 0
    %771 = vmatmul.mubr.bf16.gmra.mrb[0].mxu0 %v644
    %v772 = vpop.f32.mrb[0].mxu0
    %v773 = vadd.f32 %v680, %v772
    %v774 = vpop.f32.mrb[0].mxu0
    %v775 = vpop.f32.mrb[0].mxu0
    %v776 = vadd.f32 %v680, %v775
    %v777 = vpop.f32.mrb[0].mxu0
    %778 = vmatprep.mubr.bf16.mxu0 0
    %779 = vmatmul.mubr.bf16.gmra.mrb[0].mxu0 %v645
    %v780 = vpop.f32.mrb[0].mxu0
    %v781 = vadd.f32 %v680, %v780
    %v782 = vpop.f32.mrb[0].mxu0
    %v783 = vpop.f32.mrb[0].mxu0
    %v784 = vadd.f32 %v680, %v783
    %v785 = vpop.f32.mrb[0].mxu0
    %786 = vmatprep.mubr.bf16.mxu0 0
    %787 = vmatmul.mubr.bf16.gmra.mrb[0].mxu0 %v646
    %v788 = vpop.f32.mrb[0].mxu0
    %v789 = vadd.f32 %v680, %v788
    %v790 = vpop.f32.mrb[0].mxu0
    %v791 = vpop.f32.mrb[0].mxu0
    %v792 = vadd.f32 %v680, %v791
    %v793 = vpop.f32.mrb[0].mxu0
    %794 = vmatprep.mubr.bf16.mxu0 0
    %795 = vmatmul.mubr.bf16.gmra.mrb[0].mxu0 %v647
    %v796 = vpop.f32.mrb[0].mxu0
    %v797 = vadd.f32 %v680, %v796
    %v798 = vpop.f32.mrb[0].mxu0
    %v799 = vpop.f32.mrb[0].mxu0
    %v800 = vadd.f32 %v680, %v799
    %v801 = vpop.f32.mrb[0].mxu0
    %802 = vmatprep.mubr.bf16.mxu0 0
    %803 = vmatmul.mubr.bf16.gmra.mrb[0].mxu0 %v648
    %v804 = vpop.f32.mrb[0].mxu0
    %v805 = vadd.f32 %v680, %v804
    %v806 = vpop.f32.mrb[0].mxu0
    %v807 = vpop.f32.mrb[0].mxu0
    %v808 = vadd.f32 %v680, %v807
    %v809 = vpop.f32.mrb[0].mxu0
    %810 = vmatprep.mubr.bf16.mxu0 0
    %811 = vmatmul.mubr.bf16.gmra.mrb[0].mxu0 %v649
    %v812 = vpop.f32.mrb[0].mxu0
    %v813 = vadd.f32 %v680, %v812
    %v814 = vpop.f32.mrb[0].mxu0
    %v815 = vpop.f32.mrb[0].mxu0
    %v816 = vadd.f32 %v680, %v815
    %v817 = vpop.f32.mrb[0].mxu0
    %818 = vmatprep.mubr.bf16.mxu0 0
    %819 = vmatmul.mubr.bf16.gmra.mrb[0].mxu0 %v650
    %v820 = vpop.f32.mrb[0].mxu0
    %v821 = vadd.f32 %v680, %v820
    %v822 = vpop.f32.mrb[0].mxu0
    %v823 = vpop.f32.mrb[0].mxu0
    %v824 = vadd.f32 %v680, %v823
    %v825 = vpop.f32.mrb[0].mxu0
    %826 = vmatprep.mubr.bf16.mxu0 0
    %827 = vmatmul.mubr.bf16.gmra.mrb[0].mxu0 %v651
    %v828 = vpop.f32.mrb[0].mxu0
    %v829 = vadd.f32 %v680, %v828
    %v830 = vpop.f32.mrb[0].mxu0
    %v831 = vpop.f32.mrb[0].mxu0
    %v832 = vadd.f32 %v680, %v831
    %v833 = vpop.f32.mrb[0].mxu0
    %834 = vmatprep.mubr.bf16.mxu0 0
    %835 = vmatmul.mubr.bf16.gmra.mrb[0].mxu0 %v652
    %v836 = vpop.f32.mrb[0].mxu0
    %v837 = vadd.f32 %v680, %v836
    %v838 = vpop.f32.mrb[0].mxu0
    %v839 = vpop.f32.mrb[0].mxu0
    %v840 = vadd.f32 %v680, %v839
    %v841 = vpop.f32.mrb[0].mxu0
    %842 = vmatprep.mubr.bf16.mxu0 0
    %843 = vmatmul.mubr.bf16.gmra.mrb[0].mxu0 %v653
    %v844 = vpop.f32.mrb[0].mxu0
    %v845 = vadd.f32 %v680, %v844
    %v846 = vpop.f32.mrb[0].mxu0
    %v847 = vpop.f32.mrb[0].mxu0
    %v848 = vadd.f32 %v680, %v847
    %v849 = vpop.f32.mrb[0].mxu0
    %850 = vmatprep.mubr.bf16.mxu0 0
    %851 = vmatmul.mubr.bf16.gmra.mrb[0].mxu0 %v654
    %v852 = vpop.f32.mrb[0].mxu0
    %v853 = vadd.f32 %v680, %v852
    %v854 = vpop.f32.mrb[0].mxu0
    %v855 = vpop.f32.mrb[0].mxu0
    %v856 = vadd.f32 %v680, %v855
    %v857 = vpop.f32.mrb[0].mxu0
    %858 = vmatprep.mubr.bf16.mxu0 0
    %859 = vmatmul.mubr.bf16.gmra.mrb[0].mxu0 %v655
    %v860 = vpop.f32.mrb[0].mxu0
    %v861 = vadd.f32 %v680, %v860
    %v862 = vpop.f32.mrb[0].mxu0
    %v863 = vpop.f32.mrb[0].mxu0
    %v864 = vadd.f32 %v680, %v863
    %v865 = vpop.f32.mrb[0].mxu0
    %866 = vmatprep.mubr.bf16.mxu0 0
    %867 = vmatmul.mubr.bf16.gmra.mrb[0].mxu0 %v656
    %v868 = vpop.f32.mrb[0].mxu0
    %v869 = vadd.f32 %v680, %v868
    %v870 = vpop.f32.mrb[0].mxu0
    %v871 = vpop.f32.mrb[0].mxu0
    %v872 = vadd.f32 %v680, %v871
    %v873 = vpop.f32.mrb[0].mxu0
    %874 = vmatprep.mubr.bf16.mxu0 0
    %875 = vmatmul.mubr.bf16.gmra.mrb[0].mxu0 %v657
    %v876 = vpop.f32.mrb[0].mxu0
    %v877 = vadd.f32 %v680, %v876
    %v878 = vpop.f32.mrb[0].mxu0
    %v879 = vpop.f32.mrb[0].mxu0
    %v880 = vadd.f32 %v680, %v879
    %v881 = vpop.f32.mrb[0].mxu0
    %882 = vmatprep.mubr.bf16.mxu0 0
    %883 = vmatmul.mubr.bf16.gmra.mrb[0].mxu0 %v658
    %v884 = vpop.f32.mrb[0].mxu0
    %v885 = vadd.f32 %v680, %v884
    %v886 = vpop.f32.mrb[0].mxu0
    %v887 = vpop.f32.mrb[0].mxu0
    %v888 = vadd.f32 %v680, %v887
    %v889 = vpop.f32.mrb[0].mxu0
    %890 = vdwg.mxu0
    %v891 = vmax.f32 %v765, 0.0
    %v892 = vmax.f32 %v768, 0.0
    %v893 = vmax.f32 %v773, 0.0
    %v894 = vmax.f32 %v776, 0.0
    %v895 = vmax.f32 %v781, 0.0
    %v896 = vmax.f32 %v784, 0.0
    %v897 = vmax.f32 %v789, 0.0
    %v898 = vmax.f32 %v792, 0.0
    %v899 = vmax.f32 %v797, 0.0
    %v900 = vmax.f32 %v800, 0.0
    %v901 = vmax.f32 %v805, 0.0
    %v902 = vmax.f32 %v808, 0.0
    %v903 = vmax.f32 %v813, 0.0
    %v904 = vmax.f32 %v816, 0.0
    %v905 = vmax.f32 %v821, 0.0
    %v906 = vmax.f32 %v824, 0.0
    %v907 = vmax.f32 %v829, 0.0
    %v908 = vmax.f32 %v832, 0.0
    %v909 = vmax.f32 %v837, 0.0
    %v910 = vmax.f32 %v840, 0.0
    %v911 = vmax.f32 %v845, 0.0
    %v912 = vmax.f32 %v848, 0.0
    %v913 = vmax.f32 %v853, 0.0
    %v914 = vmax.f32 %v856, 0.0
    %v915 = vmax.f32 %v861, 0.0
    %v916 = vmax.f32 %v864, 0.0
    %v917 = vmax.f32 %v869, 0.0
    %v918 = vmax.f32 %v872, 0.0
    %v919 = vmax.f32 %v877, 0.0
    %v920 = vmax.f32 %v880, 0.0
    %v921 = vmax.f32 %v885, 0.0
    %v922 = vmax.f32 %v888, 0.0
    %v923 = vpack.c.bf16 %v892, %v891
    %v924 = vpack.c.bf16 %v894, %v893
    %v925 = vpack.c.bf16 %v896, %v895
    %v926 = vpack.c.bf16 %v898, %v897
    %v927 = vpack.c.bf16 %v900, %v899
    %v928 = vpack.c.bf16 %v902, %v901
    %v929 = vpack.c.bf16 %v904, %v903
    %v930 = vpack.c.bf16 %v906, %v905
    %v931 = vpack.c.bf16 %v908, %v907
    %v932 = vpack.c.bf16 %v910, %v909
    %v933 = vpack.c.bf16 %v912, %v911
    %v934 = vpack.c.bf16 %v914, %v913
    %v935 = vpack.c.bf16 %v916, %v915
    %v936 = vpack.c.bf16 %v918, %v917
    %v937 = vpack.c.bf16 %v920, %v919
    %v938 = vpack.c.bf16 %v922, %v921
    %v939 = vld [vmem:[%s5] sm:$0xf]
    %v940 = vld [vmem:[%s5 + $0x4] sm:$0xf]
    %v941 = vld [vmem:[%s5 + $0x8] sm:$0xf]
    %v942 = vld [vmem:[%s5 + $0xc] sm:$0xf]
    %v943 = vld [vmem:[%s5 + $0x10] sm:$0xf]
    %v944 = vld [vmem:[%s5 + $0x14] sm:$0xf]
    %v945 = vld [vmem:[%s5 + $0x18] sm:$0xf]
    %v946 = vld [vmem:[%s5 + $0x1c] sm:$0xf]
    %v947 = vld [vmem:[%s5 + $0x20] sm:$0xf]
    %v948 = vld [vmem:[%s5 + $0x24] sm:$0xf]
    %v949 = vld [vmem:[%s5 + $0x28] sm:$0xf]
    %v950 = vld [vmem:[%s5 + $0x2c] sm:$0xf]
    %v951 = vld [vmem:[%s5 + $0x30] sm:$0xf]
    %v952 = vld [vmem:[%s5 + $0x34] sm:$0xf]
    %v953 = vld [vmem:[%s5 + $0x38] sm:$0xf]
    %v954 = vld [vmem:[%s5 + $0x3c] sm:$0xf]
    %v955 = vld [vmem:[%s6] sm:$0x1]
    %v957 = vlaneseq
    %v958 = vshrl.u32 %v957, 7
    %v959 = vsub.s32 0, %v958
    %v960 = vrot.slane %v955, %v959
    %v978 = vunpack.c.l.b16 %v939
    %v979 = vunpack.c.l.b16 %v940
    %v980 = vunpack.c.l.b16 %v941
    %v981 = vunpack.c.l.b16 %v942
    %v982 = vunpack.c.l.b16 %v943
    %v983 = vunpack.c.l.b16 %v944
    %v984 = vunpack.c.l.b16 %v945
    %v985 = vunpack.c.l.b16 %v946
    %v986 = vunpack.c.l.b16 %v947
    %v987 = vunpack.c.l.b16 %v948
    %v988 = vunpack.c.l.b16 %v949
    %v989 = vunpack.c.l.b16 %v950
    %v990 = vunpack.c.l.b16 %v951
    %v991 = vunpack.c.l.b16 %v952
    %v992 = vunpack.c.l.b16 %v953
    %v993 = vunpack.c.l.b16 %v954
    %v994 = vpack.c.b16 %v979, %v978
    %v995 = vpack.c.b16 %v981, %v980
    %v996 = vpack.c.b16 %v983, %v982
    %v997 = vpack.c.b16 %v985, %v984
    %v998 = vpack.c.b16 %v987, %v986
    %v999 = vpack.c.b16 %v989, %v988
    %v1000 = vpack.c.b16 %v991, %v990
    %v1001 = vpack.c.b16 %v993, %v992
    %1010 = vmatprep.subr.bf16.mxu0 0
    %1011 = vmatpush1.bf16.msra.mxu0 %v994
    %1012 = vmatprep.subr.bf16.mxu0 0
    %1013 = vmatpush1.bf16.msra.mxu0 %v995
    %1014 = vmatprep.subr.bf16.mxu0 0
    %1015 = vmatpush1.bf16.msra.mxu0 %v996
    %1016 = vmatprep.subr.bf16.mxu0 0
    %1017 = vmatpush1.bf16.msra.mxu0 %v997
    %1018 = vmatprep.subr.bf16.mxu0 0
    %1019 = vmatpush1.bf16.msra.mxu0 %v998
    %1020 = vmatprep.subr.bf16.mxu0 0
    %1021 = vmatpush1.bf16.msra.mxu0 %v999
    %1022 = vmatprep.subr.bf16.mxu0 0
    %1023 = vmatpush1.bf16.msra.mxu0 %v1000
    %1024 = vmatprep.subr.bf16.mxu0 0
    %1025 = vmatpush1.bf16.msra.mxu0 %v1001
    %1026 = vmatprep.subr.bf16.mxu0 0
    %1027 = vmatpush1.bf16.msra.mxu0 0
    %1028 = vmatprep.subr.bf16.mxu0 0
    %1029 = vmatpush1.bf16.msra.mxu0 0
    %1030 = vmatprep.subr.bf16.mxu0 0
    %1031 = vmatpush1.bf16.msra.mxu0 0
    %1032 = vmatprep.subr.bf16.mxu0 0
    %1033 = vmatpush1.bf16.msra.mxu0 0
    %1034 = vmatprep.subr.bf16.mxu0 0
    %1035 = vmatpush1.bf16.msra.mxu0 0
    %1036 = vmatprep.subr.bf16.mxu0 0
    %1037 = vmatpush1.bf16.msra.mxu0 0
    %1038 = vmatprep.subr.bf16.mxu0 0
    %1039 = vmatpush1.bf16.msra.mxu0 0
    %1040 = vmatprep.subr.bf16.mxu0 0
    %1041 = vmatpush1.bf16.msra.mxu0 0
    %1042 = vmatprep.mubr.bf16.mxu0 0
    %1043 = vmatmul.mubr.bf16.gmra.mrb[0].mxu0 %v923
    %v1044 = vpop.f32.mrb[0].mxu0
    %v1045 = vadd.f32 %v960, %v1044
    %v1046 = vpop.f32.mrb[0].mxu0
    %v1047 = vpop.f32.mrb[0].mxu0
    %v1048 = vadd.f32 %v960, %v1047
    %v1049 = vpop.f32.mrb[0].mxu0
    %1050 = vmatprep.mubr.bf16.mxu0 0
    %1051 = vmatmul.mubr.bf16.gmra.mrb[0].mxu0 %v924
    %v1052 = vpop.f32.mrb[0].mxu0
    %v1053 = vadd.f32 %v960, %v1052
    %v1054 = vpop.f32.mrb[0].mxu0
    %v1055 = vpop.f32.mrb[0].mxu0
    %v1056 = vadd.f32 %v960, %v1055
    %v1057 = vpop.f32.mrb[0].mxu0
    %1058 = vmatprep.mubr.bf16.mxu0 0
    %1059 = vmatmul.mubr.bf16.gmra.mrb[0].mxu0 %v925
    %v1060 = vpop.f32.mrb[0].mxu0
    %v1061 = vadd.f32 %v960, %v1060
    %v1062 = vpop.f32.mrb[0].mxu0
    %v1063 = vpop.f32.mrb[0].mxu0
    %v1064 = vadd.f32 %v960, %v1063
    %v1065 = vpop.f32.mrb[0].mxu0
    %1066 = vmatprep.mubr.bf16.mxu0 0
    %1067 = vmatmul.mubr.bf16.gmra.mrb[0].mxu0 %v926
    %v1068 = vpop.f32.mrb[0].mxu0
    %v1069 = vadd.f32 %v960, %v1068
    %v1070 = vpop.f32.mrb[0].mxu0
    %v1071 = vpop.f32.mrb[0].mxu0
    %v1072 = vadd.f32 %v960, %v1071
    %v1073 = vpop.f32.mrb[0].mxu0
    %1074 = vmatprep.mubr.bf16.mxu0 0
    %1075 = vmatmul.mubr.bf16.gmra.mrb[0].mxu0 %v927
    %v1076 = vpop.f32.mrb[0].mxu0
    %v1077 = vadd.f32 %v960, %v1076
    %v1078 = vpop.f32.mrb[0].mxu0
    %v1079 = vpop.f32.mrb[0].mxu0
    %v1080 = vadd.f32 %v960, %v1079
    %v1081 = vpop.f32.mrb[0].mxu0
    %1082 = vmatprep.mubr.bf16.mxu0 0
    %1083 = vmatmul.mubr.bf16.gmra.mrb[0].mxu0 %v928
    %v1084 = vpop.f32.mrb[0].mxu0
    %v1085 = vadd.f32 %v960, %v1084
    %v1086 = vpop.f32.mrb[0].mxu0
    %v1087 = vpop.f32.mrb[0].mxu0
    %v1088 = vadd.f32 %v960, %v1087
    %v1089 = vpop.f32.mrb[0].mxu0
    %1090 = vmatprep.mubr.bf16.mxu0 0
    %1091 = vmatmul.mubr.bf16.gmra.mrb[0].mxu0 %v929
    %v1092 = vpop.f32.mrb[0].mxu0
    %v1093 = vadd.f32 %v960, %v1092
    %v1094 = vpop.f32.mrb[0].mxu0
    %v1095 = vpop.f32.mrb[0].mxu0
    %v1096 = vadd.f32 %v960, %v1095
    %v1097 = vpop.f32.mrb[0].mxu0
    %1098 = vmatprep.mubr.bf16.mxu0 0
    %1099 = vmatmul.mubr.bf16.gmra.mrb[0].mxu0 %v930
    %v1100 = vpop.f32.mrb[0].mxu0
    %v1101 = vadd.f32 %v960, %v1100
    %v1102 = vpop.f32.mrb[0].mxu0
    %v1103 = vpop.f32.mrb[0].mxu0
    %v1104 = vadd.f32 %v960, %v1103
    %v1105 = vpop.f32.mrb[0].mxu0
    %1106 = vmatprep.mubr.bf16.mxu0 0
    %1107 = vmatmul.mubr.bf16.gmra.mrb[0].mxu0 %v931
    %v1108 = vpop.f32.mrb[0].mxu0
    %v1109 = vadd.f32 %v960, %v1108
    %v1110 = vpop.f32.mrb[0].mxu0
    %v1111 = vpop.f32.mrb[0].mxu0
    %v1112 = vadd.f32 %v960, %v1111
    %v1113 = vpop.f32.mrb[0].mxu0
    %1114 = vmatprep.mubr.bf16.mxu0 0
    %1115 = vmatmul.mubr.bf16.gmra.mrb[0].mxu0 %v932
    %v1116 = vpop.f32.mrb[0].mxu0
    %v1117 = vadd.f32 %v960, %v1116
    %v1118 = vpop.f32.mrb[0].mxu0
    %v1119 = vpop.f32.mrb[0].mxu0
    %v1120 = vadd.f32 %v960, %v1119
    %v1121 = vpop.f32.mrb[0].mxu0
    %1122 = vmatprep.mubr.bf16.mxu0 0
    %1123 = vmatmul.mubr.bf16.gmra.mrb[0].mxu0 %v933
    %v1124 = vpop.f32.mrb[0].mxu0
    %v1125 = vadd.f32 %v960, %v1124
    %v1126 = vpop.f32.mrb[0].mxu0
    %v1127 = vpop.f32.mrb[0].mxu0
    %v1128 = vadd.f32 %v960, %v1127
    %v1129 = vpop.f32.mrb[0].mxu0
    %1130 = vmatprep.mubr.bf16.mxu0 0
    %1131 = vmatmul.mubr.bf16.gmra.mrb[0].mxu0 %v934
    %v1132 = vpop.f32.mrb[0].mxu0
    %v1133 = vadd.f32 %v960, %v1132
    %v1134 = vpop.f32.mrb[0].mxu0
    %v1135 = vpop.f32.mrb[0].mxu0
    %v1136 = vadd.f32 %v960, %v1135
    %v1137 = vpop.f32.mrb[0].mxu0
    %1138 = vmatprep.mubr.bf16.mxu0 0
    %1139 = vmatmul.mubr.bf16.gmra.mrb[0].mxu0 %v935
    %v1140 = vpop.f32.mrb[0].mxu0
    %v1141 = vadd.f32 %v960, %v1140
    %v1142 = vpop.f32.mrb[0].mxu0
    %v1143 = vpop.f32.mrb[0].mxu0
    %v1144 = vadd.f32 %v960, %v1143
    %v1145 = vpop.f32.mrb[0].mxu0
    %1146 = vmatprep.mubr.bf16.mxu0 0
    %1147 = vmatmul.mubr.bf16.gmra.mrb[0].mxu0 %v936
    %v1148 = vpop.f32.mrb[0].mxu0
    %v1149 = vadd.f32 %v960, %v1148
    %v1150 = vpop.f32.mrb[0].mxu0
    %v1151 = vpop.f32.mrb[0].mxu0
    %v1152 = vadd.f32 %v960, %v1151
    %v1153 = vpop.f32.mrb[0].mxu0
    %1154 = vmatprep.mubr.bf16.mxu0 0
    %1155 = vmatmul.mubr.bf16.gmra.mrb[0].mxu0 %v937
    %v1156 = vpop.f32.mrb[0].mxu0
    %v1157 = vadd.f32 %v960, %v1156
    %v1158 = vpop.f32.mrb[0].mxu0
    %v1159 = vpop.f32.mrb[0].mxu0
    %v1160 = vadd.f32 %v960, %v1159
    %v1161 = vpop.f32.mrb[0].mxu0
    %1162 = vmatprep.mubr.bf16.mxu0 0
    %1163 = vmatmul.mubr.bf16.gmra.mrb[0].mxu0 %v938
    %v1164 = vpop.f32.mrb[0].mxu0
    %v1165 = vadd.f32 %v960, %v1164
    %v1166 = vpop.f32.mrb[0].mxu0
    %v1167 = vpop.f32.mrb[0].mxu0
    %v1168 = vadd.f32 %v960, %v1167
    %v1169 = vpop.f32.mrb[0].mxu0
    %1170 = vdwg.mxu0
    %1171 = vst [vmem:[#allocation6] sm:$0xff] %v1045
    %1172 = vst [vmem:[#allocation6 + $0x8] sm:$0xff] %v1048
    %1173 = vst [vmem:[#allocation6 + $0x10] sm:$0xff] %v1053
    %1174 = vst [vmem:[#allocation6 + $0x18] sm:$0xff] %v1056
    %1175 = vst [vmem:[#allocation6 + $0x20] sm:$0xff] %v1061
    %1176 = vst [vmem:[#allocation6 + $0x28] sm:$0xff] %v1064
    %1177 = vst [vmem:[#allocation6 + $0x30] sm:$0xff] %v1069
    %1178 = vst [vmem:[#allocation6 + $0x38] sm:$0xff] %v1072
    %1179 = vst [vmem:[#allocation6 + $0x40] sm:$0xff] %v1077
    %1180 = vst [vmem:[#allocation6 + $0x48] sm:$0xff] %v1080
    %1181 = vst [vmem:[#allocation6 + $0x50] sm:$0xff] %v1085
    %1182 = vst [vmem:[#allocation6 + $0x58] sm:$0xff] %v1088
    %1183 = vst [vmem:[#allocation6 + $0x60] sm:$0xff] %v1093
    %1184 = vst [vmem:[#allocation6 + $0x68] sm:$0xff] %v1096
    %1185 = vst [vmem:[#allocation6 + $0x70] sm:$0xff] %v1101
    %1186 = vst [vmem:[#allocation6 + $0x78] sm:$0xff] %v1104
    %1187 = vst [vmem:[#allocation6 + $0x80] sm:$0xff] %v1109
    %1188 = vst [vmem:[#allocation6 + $0x88] sm:$0xff] %v1112
    %1189 = vst [vmem:[#allocation6 + $0x90] sm:$0xff] %v1117
    %1190 = vst [vmem:[#allocation6 + $0x98] sm:$0xff] %v1120
    %1191 = vst [vmem:[#allocation6 + $0xa0] sm:$0xff] %v1125
    %1192 = vst [vmem:[#allocation6 + $0xa8] sm:$0xff] %v1128
    %1193 = vst [vmem:[#allocation6 + $0xb0] sm:$0xff] %v1133
    %1194 = vst [vmem:[#allocation6 + $0xb8] sm:$0xff] %v1136
    %1195 = vst [vmem:[#allocation6 + $0xc0] sm:$0xff] %v1141
    %1196 = vst [vmem:[#allocation6 + $0xc8] sm:$0xff] %v1144
    %1197 = vst [vmem:[#allocation6 + $0xd0] sm:$0xff] %v1149
    %1198 = vst [vmem:[#allocation6 + $0xd8] sm:$0xff] %v1152
    %1199 = vst [vmem:[#allocation6 + $0xe0] sm:$0xff] %v1157
    %1200 = vst [vmem:[#allocation6 + $0xe8] sm:$0xff] %v1160
    %1201 = vst [vmem:[#allocation6 + $0xf0] sm:$0xff] %v1165
    %1202 = vst [vmem:[#allocation6 + $0xf8] sm:$0xff] %v1168
    %1203 = vmax.xlane.f32.xlu0 %v1045
    %v1204 = vpop.xlane.xlu0 %1203
    %1205 = vmax.xlane.f32.xlu0 %v1048
    %v1206 = vpop.xlane.xlu0 %1205
    %1207 = vmax.xlane.f32.xlu0 %v1053
    %v1208 = vpop.xlane.xlu0 %1207
    %1209 = vmax.xlane.f32.xlu0 %v1056
    %v1210 = vpop.xlane.xlu0 %1209
    %1211 = vmax.xlane.f32.xlu0 %v1061
    %v1212 = vpop.xlane.xlu0 %1211
    %1213 = vmax.xlane.f32.xlu0 %v1064
    %v1214 = vpop.xlane.xlu0 %1213
    %1215 = vmax.xlane.f32.xlu0 %v1069
    %v1216 = vpop.xlane.xlu0 %1215
    %1217 = vmax.xlane.f32.xlu0 %v1072
    %v1218 = vpop.xlane.xlu0 %1217
    %1219 = vmax.xlane.f32.xlu0 %v1077
    %v1220 = vpop.xlane.xlu0 %1219
    %1221 = vmax.xlane.f32.xlu0 %v1080
    %v1222 = vpop.xlane.xlu0 %1221
    %1223 = vmax.xlane.f32.xlu0 %v1085
    %v1224 = vpop.xlane.xlu0 %1223
    %1225 = vmax.xlane.f32.xlu0 %v1088
    %v1226 = vpop.xlane.xlu0 %1225
    %1227 = vmax.xlane.f32.xlu0 %v1093
    %v1228 = vpop.xlane.xlu0 %1227
    %1229 = vmax.xlane.f32.xlu0 %v1096
    %v1230 = vpop.xlane.xlu0 %1229
    %1231 = vmax.xlane.f32.xlu0 %v1101
    %v1232 = vpop.xlane.xlu0 %1231
    %1233 = vmax.xlane.f32.xlu0 %v1104
    %v1234 = vpop.xlane.xlu0 %1233
    %1235 = vmax.xlane.f32.xlu0 %v1109
    %v1236 = vpop.xlane.xlu0 %1235
    %1237 = vmax.xlane.f32.xlu0 %v1112
    %v1238 = vpop.xlane.xlu0 %1237
    %1239 = vmax.xlane.f32.xlu0 %v1117
    %v1240 = vpop.xlane.xlu0 %1239
    %1241 = vmax.xlane.f32.xlu0 %v1120
    %v1242 = vpop.xlane.xlu0 %1241
    %1243 = vmax.xlane.f32.xlu0 %v1125
    %v1244 = vpop.xlane.xlu0 %1243
    %1245 = vmax.xlane.f32.xlu0 %v1128
    %v1246 = vpop.xlane.xlu0 %1245
    %1247 = vmax.xlane.f32.xlu0 %v1133
    %v1248 = vpop.xlane.xlu0 %1247
    %1249 = vmax.xlane.f32.xlu0 %v1136
    %v1250 = vpop.xlane.xlu0 %1249
    %1251 = vmax.xlane.f32.xlu0 %v1141
    %v1252 = vpop.xlane.xlu0 %1251
    %1253 = vmax.xlane.f32.xlu0 %v1144
    %v1254 = vpop.xlane.xlu0 %1253
    %1255 = vmax.xlane.f32.xlu0 %v1149
    %v1256 = vpop.xlane.xlu0 %1255
    %1257 = vmax.xlane.f32.xlu0 %v1152
    %v1258 = vpop.xlane.xlu0 %1257
    %1259 = vmax.xlane.f32.xlu0 %v1157
    %v1260 = vpop.xlane.xlu0 %1259
    %1261 = vmax.xlane.f32.xlu0 %v1160
    %v1262 = vpop.xlane.xlu0 %1261
    %1263 = vmax.xlane.f32.xlu0 %v1165
    %v1264 = vpop.xlane.xlu0 %1263
    %1265 = vmax.xlane.f32.xlu0 %v1168
    %v1266 = vpop.xlane.xlu0 %1265
    %v1267 = vsub.f32 %v1045, %v1204
    %v1268 = vsub.f32 %v1048, %v1206
    %v1269 = vsub.f32 %v1053, %v1208
    %v1270 = vsub.f32 %v1056, %v1210
    %v1271 = vsub.f32 %v1061, %v1212
    %v1272 = vsub.f32 %v1064, %v1214
    %v1273 = vsub.f32 %v1069, %v1216
    %v1274 = vsub.f32 %v1072, %v1218
    %v1275 = vsub.f32 %v1077, %v1220
    %v1276 = vsub.f32 %v1080, %v1222
    %v1277 = vsub.f32 %v1085, %v1224
    %v1278 = vsub.f32 %v1088, %v1226
    %v1279 = vsub.f32 %v1093, %v1228
    %v1280 = vsub.f32 %v1096, %v1230
    %v1281 = vsub.f32 %v1101, %v1232
    %v1282 = vsub.f32 %v1104, %v1234
    %v1283 = vsub.f32 %v1109, %v1236
    %v1284 = vsub.f32 %v1112, %v1238
    %v1285 = vsub.f32 %v1117, %v1240
    %v1286 = vsub.f32 %v1120, %v1242
    %v1287 = vsub.f32 %v1125, %v1244
    %v1288 = vsub.f32 %v1128, %v1246
    %v1289 = vsub.f32 %v1133, %v1248
    %v1290 = vsub.f32 %v1136, %v1250
    %v1291 = vsub.f32 %v1141, %v1252
    %v1292 = vsub.f32 %v1144, %v1254
    %v1293 = vsub.f32 %v1149, %v1256
    %v1294 = vsub.f32 %v1152, %v1258
    %v1295 = vsub.f32 %v1157, %v1260
    %v1296 = vsub.f32 %v1160, %v1262
    %v1297 = vsub.f32 %v1165, %v1264
    %v1298 = vsub.f32 %v1168, %v1266
    %v1299 = vmul.f32 %v1267, 1.442695
    %v1300 = vpow.pop %v1299
    %v1301 = vmul.f32 %v1268, 1.442695
    %v1302 = vpow.pop %v1301
    %v1303 = vmul.f32 %v1269, 1.442695
    %v1304 = vpow.pop %v1303
    %v1305 = vmul.f32 %v1270, 1.442695
    %v1306 = vpow.pop %v1305
    %v1307 = vmul.f32 %v1271, 1.442695
    %v1308 = vpow.pop %v1307
    %v1309 = vmul.f32 %v1272, 1.442695
    %v1310 = vpow.pop %v1309
    %v1311 = vmul.f32 %v1273, 1.442695
    %v1312 = vpow.pop %v1311
    %v1313 = vmul.f32 %v1274, 1.442695
    %v1314 = vpow.pop %v1313
    %v1315 = vmul.f32 %v1275, 1.442695
    %v1316 = vpow.pop %v1315
    %v1317 = vmul.f32 %v1276, 1.442695
    %v1318 = vpow.pop %v1317
    %v1319 = vmul.f32 %v1277, 1.442695
    %v1320 = vpow.pop %v1319
    %v1321 = vmul.f32 %v1278, 1.442695
    %v1322 = vpow.pop %v1321
    %v1323 = vmul.f32 %v1279, 1.442695
    %v1324 = vpow.pop %v1323
    %v1325 = vmul.f32 %v1280, 1.442695
    %v1326 = vpow.pop %v1325
    %v1327 = vmul.f32 %v1281, 1.442695
    %v1328 = vpow.pop %v1327
    %v1329 = vmul.f32 %v1282, 1.442695
    %v1330 = vpow.pop %v1329
    %v1331 = vmul.f32 %v1283, 1.442695
    %v1332 = vpow.pop %v1331
    %v1333 = vmul.f32 %v1284, 1.442695
    %v1334 = vpow.pop %v1333
    %v1335 = vmul.f32 %v1285, 1.442695
    %v1336 = vpow.pop %v1335
    %v1337 = vmul.f32 %v1286, 1.442695
    %v1338 = vpow.pop %v1337
    %v1339 = vmul.f32 %v1287, 1.442695
    %v1340 = vpow.pop %v1339
    %v1341 = vmul.f32 %v1288, 1.442695
    %v1342 = vpow.pop %v1341
    %v1343 = vmul.f32 %v1289, 1.442695
    %v1344 = vpow.pop %v1343
    %v1345 = vmul.f32 %v1290, 1.442695
    %v1346 = vpow.pop %v1345
    %v1347 = vmul.f32 %v1291, 1.442695
    %v1348 = vpow.pop %v1347
    %v1349 = vmul.f32 %v1292, 1.442695
    %v1350 = vpow.pop %v1349
    %v1351 = vmul.f32 %v1293, 1.442695
    %v1352 = vpow.pop %v1351
    %v1353 = vmul.f32 %v1294, 1.442695
    %v1354 = vpow.pop %v1353
    %v1355 = vmul.f32 %v1295, 1.442695
    %v1356 = vpow.pop %v1355
    %v1357 = vmul.f32 %v1296, 1.442695
    %v1358 = vpow.pop %v1357
    %v1359 = vmul.f32 %v1297, 1.442695
    %v1360 = vpow.pop %v1359
    %v1361 = vmul.f32 %v1298, 1.442695
    %v1362 = vpow.pop %v1361
    %1363 = vadd.xlane.f32.xlu0 %v1300
    %v1364 = vpop.xlane.xlu0 %1363
    %1365 = vadd.xlane.f32.xlu0 %v1302
    %v1366 = vpop.xlane.xlu0 %1365
    %1367 = vadd.xlane.f32.xlu0 %v1304
    %v1368 = vpop.xlane.xlu0 %1367
    %1369 = vadd.xlane.f32.xlu0 %v1306
    %v1370 = vpop.xlane.xlu0 %1369
    %1371 = vadd.xlane.f32.xlu0 %v1308
    %v1372 = vpop.xlane.xlu0 %1371
    %1373 = vadd.xlane.f32.xlu0 %v1310
    %v1374 = vpop.xlane.xlu0 %1373
    %1375 = vadd.xlane.f32.xlu0 %v1312
    %v1376 = vpop.xlane.xlu0 %1375
    %1377 = vadd.xlane.f32.xlu0 %v1314
    %v1378 = vpop.xlane.xlu0 %1377
    %1379 = vadd.xlane.f32.xlu0 %v1316
    %v1380 = vpop.xlane.xlu0 %1379
    %1381 = vadd.xlane.f32.xlu0 %v1318
    %v1382 = vpop.xlane.xlu0 %1381
    %1383 = vadd.xlane.f32.xlu0 %v1320
    %v1384 = vpop.xlane.xlu0 %1383
    %1385 = vadd.xlane.f32.xlu0 %v1322
    %v1386 = vpop.xlane.xlu0 %1385
    %1387 = vadd.xlane.f32.xlu0 %v1324
    %v1388 = vpop.xlane.xlu0 %1387
    %1389 = vadd.xlane.f32.xlu0 %v1326
    %v1390 = vpop.xlane.xlu0 %1389
    %1391 = vadd.xlane.f32.xlu0 %v1328
    %v1392 = vpop.xlane.xlu0 %1391
    %1393 = vadd.xlane.f32.xlu0 %v1330
    %v1394 = vpop.xlane.xlu0 %1393
    %1395 = vadd.xlane.f32.xlu0 %v1332
    %v1396 = vpop.xlane.xlu0 %1395
    %1397 = vadd.xlane.f32.xlu0 %v1334
    %v1398 = vpop.xlane.xlu0 %1397
    %1399 = vadd.xlane.f32.xlu0 %v1336
    %v1400 = vpop.xlane.xlu0 %1399
    %1401 = vadd.xlane.f32.xlu0 %v1338
    %v1402 = vpop.xlane.xlu0 %1401
    %1403 = vadd.xlane.f32.xlu0 %v1340
    %v1404 = vpop.xlane.xlu0 %1403
    %1405 = vadd.xlane.f32.xlu0 %v1342
    %v1406 = vpop.xlane.xlu0 %1405
    %1407 = vadd.xlane.f32.xlu0 %v1344
    %v1408 = vpop.xlane.xlu0 %1407
    %1409 = vadd.xlane.f32.xlu0 %v1346
    %v1410 = vpop.xlane.xlu0 %1409
    %1411 = vadd.xlane.f32.xlu0 %v1348
    %v1412 = vpop.xlane.xlu0 %1411
    %1413 = vadd.xlane.f32.xlu0 %v1350
    %v1414 = vpop.xlane.xlu0 %1413
    %1415 = vadd.xlane.f32.xlu0 %v1352
    %v1416 = vpop.xlane.xlu0 %1415
    %1417 = vadd.xlane.f32.xlu0 %v1354
    %v1418 = vpop.xlane.xlu0 %1417
    %1419 = vadd.xlane.f32.xlu0 %v1356
    %v1420 = vpop.xlane.xlu0 %1419
    %1421 = vadd.xlane.f32.xlu0 %v1358
    %v1422 = vpop.xlane.xlu0 %1421
    %1423 = vadd.xlane.f32.xlu0 %v1360
    %v1424 = vpop.xlane.xlu0 %1423
    %1425 = vadd.xlane.f32.xlu0 %v1362
    %v1426 = vpop.xlane.xlu0 %1425
    %v1427 = vrcp.pop %v1364
    %v1428 = vrcp.pop %v1366
    %v1429 = vrcp.pop %v1368
    %v1430 = vrcp.pop %v1370
    %v1431 = vrcp.pop %v1372
    %v1432 = vrcp.pop %v1374
    %v1433 = vrcp.pop %v1376
    %v1434 = vrcp.pop %v1378
    %v1435 = vrcp.pop %v1380
    %v1436 = vrcp.pop %v1382
    %v1437 = vrcp.pop %v1384
    %v1438 = vrcp.pop %v1386
    %v1439 = vrcp.pop %v1388
    %v1440 = vrcp.pop %v1390
    %v1441 = vrcp.pop %v1392
    %v1442 = vrcp.pop %v1394
    %v1443 = vrcp.pop %v1396
    %v1444 = vrcp.pop %v1398
    %v1445 = vrcp.pop %v1400
    %v1446 = vrcp.pop %v1402
    %v1447 = vrcp.pop %v1404
    %v1448 = vrcp.pop %v1406
    %v1449 = vrcp.pop %v1408
    %v1450 = vrcp.pop %v1410
    %v1451 = vrcp.pop %v1412
    %v1452 = vrcp.pop %v1414
    %v1453 = vrcp.pop %v1416
    %v1454 = vrcp.pop %v1418
    %v1455 = vrcp.pop %v1420
    %v1456 = vrcp.pop %v1422
    %v1457 = vrcp.pop %v1424
    %v1458 = vrcp.pop %v1426
    %v1459 = vmul.f32 %v1300, %v1427
    %v1460 = vmul.f32 %v1302, %v1428
    %v1461 = vmul.f32 %v1304, %v1429
    %v1462 = vmul.f32 %v1306, %v1430
    %v1463 = vmul.f32 %v1308, %v1431
    %v1464 = vmul.f32 %v1310, %v1432
    %v1465 = vmul.f32 %v1312, %v1433
    %v1466 = vmul.f32 %v1314, %v1434
    %v1467 = vmul.f32 %v1316, %v1435
    %v1468 = vmul.f32 %v1318, %v1436
    %v1469 = vmul.f32 %v1320, %v1437
    %v1470 = vmul.f32 %v1322, %v1438
    %v1471 = vmul.f32 %v1324, %v1439
    %v1472 = vmul.f32 %v1326, %v1440
    %v1473 = vmul.f32 %v1328, %v1441
    %v1474 = vmul.f32 %v1330, %v1442
    %v1475 = vmul.f32 %v1332, %v1443
    %v1476 = vmul.f32 %v1334, %v1444
    %v1477 = vmul.f32 %v1336, %v1445
    %v1478 = vmul.f32 %v1338, %v1446
    %v1479 = vmul.f32 %v1340, %v1447
    %v1480 = vmul.f32 %v1342, %v1448
    %v1481 = vmul.f32 %v1344, %v1449
    %v1482 = vmul.f32 %v1346, %v1450
    %v1483 = vmul.f32 %v1348, %v1451
    %v1484 = vmul.f32 %v1350, %v1452
    %v1485 = vmul.f32 %v1352, %v1453
    %v1486 = vmul.f32 %v1354, %v1454
    %v1487 = vmul.f32 %v1356, %v1455
    %v1488 = vmul.f32 %v1358, %v1456
    %v1489 = vmul.f32 %v1360, %v1457
    %v1490 = vmul.f32 %v1362, %v1458
    %1491 = vst [vmem:[#allocation4] sm:$0xff] %v1459
    %1492 = vst [vmem:[#allocation4 + $0x8] sm:$0xff] %v1460
    %1493 = vst [vmem:[#allocation4 + $0x10] sm:$0xff] %v1461
    %1494 = vst [vmem:[#allocation4 + $0x18] sm:$0xff] %v1462
    %1495 = vst [vmem:[#allocation4 + $0x20] sm:$0xff] %v1463
    %1496 = vst [vmem:[#allocation4 + $0x28] sm:$0xff] %v1464
    %1497 = vst [vmem:[#allocation4 + $0x30] sm:$0xff] %v1465
    %1498 = vst [vmem:[#allocation4 + $0x38] sm:$0xff] %v1466
    %1499 = vst [vmem:[#allocation4 + $0x40] sm:$0xff] %v1467
    %1500 = vst [vmem:[#allocation4 + $0x48] sm:$0xff] %v1468
    %1501 = vst [vmem:[#allocation4 + $0x50] sm:$0xff] %v1469
    %1502 = vst [vmem:[#allocation4 + $0x58] sm:$0xff] %v1470
    %1503 = vst [vmem:[#allocation4 + $0x60] sm:$0xff] %v1471
    %1504 = vst [vmem:[#allocation4 + $0x68] sm:$0xff] %v1472
    %1505 = vst [vmem:[#allocation4 + $0x70] sm:$0xff] %v1473
    %1506 = vst [vmem:[#allocation4 + $0x78] sm:$0xff] %v1474
    %1507 = vst [vmem:[#allocation4 + $0x80] sm:$0xff] %v1475
    %1508 = vst [vmem:[#allocation4 + $0x88] sm:$0xff] %v1476
    %1509 = vst [vmem:[#allocation4 + $0x90] sm:$0xff] %v1477
    %1510 = vst [vmem:[#allocation4 + $0x98] sm:$0xff] %v1478
    %1511 = vst [vmem:[#allocation4 + $0xa0] sm:$0xff] %v1479
    %1512 = vst [vmem:[#allocation4 + $0xa8] sm:$0xff] %v1480
    %1513 = vst [vmem:[#allocation4 + $0xb0] sm:$0xff] %v1481
    %1514 = vst [vmem:[#allocation4 + $0xb8] sm:$0xff] %v1482
    %1515 = vst [vmem:[#allocation4 + $0xc0] sm:$0xff] %v1483
    %1516 = vst [vmem:[#allocation4 + $0xc8] sm:$0xff] %v1484
    %1517 = vst [vmem:[#allocation4 + $0xd0] sm:$0xff] %v1485
    %1518 = vst [vmem:[#allocation4 + $0xd8] sm:$0xff] %v1486
    %1519 = vst [vmem:[#allocation4 + $0xe0] sm:$0xff] %v1487
    %1520 = vst [vmem:[#allocation4 + $0xe8] sm:$0xff] %v1488
    %1521 = vst [vmem:[#allocation4 + $0xf0] sm:$0xff] %v1489
    %1522 = vst [vmem:[#allocation4 + $0xf8] sm:$0xff] %v1490
    // Predicated region
    $region30: #{tpu_custom_call.1} parent=1 // pred_check
      _
    $region31: #{tpu_custom_call.1} parent=1 // pred_check_branch
      %1524 = sbr.rel (0) target = $region33
    $region32: #{tpu_custom_call.1} parent=1 // pred_region
      %s1526 = ssub.s32 4096, 4096
      %1527 = vsyncadd [#allocation3], %s1526
      %s1528 = sshll.u32 [#allocation2], 4
      %s1529 = int_to_ptr.vmem [resolvable:$true] %s1528
      %1534 = dma.vmem_to_hbm [thread:$0]  %s1529, 4096, %s7, [#allocation3], 128, 128, 8
    $region33: #{tpu_custom_call.1} parent=1 // pred_fallthru
      _
    // Predicated region
    $region34: #{tpu_custom_call.1} parent=1 // pred_check
      _
    $region35: #{tpu_custom_call.1} parent=1 // pred_check_branch
      %1536 = sbr.rel (0) target = $region37
    $region36: #{tpu_custom_call.1} parent=1 // pred_region
      %s1538 = ssub.s32 4096, 4096
      %1539 = vsyncadd [#allocation5], %s1538
      %s1540 = sshll.u32 [#allocation4], 4
      %s1541 = int_to_ptr.vmem [resolvable:$true] %s1540
      %1546 = dma.vmem_to_hbm [thread:$0]  %s1541, 4096, %s8, [#allocation5], 128, 128, 8
    $region37: #{tpu_custom_call.1} parent=1 // pred_fallthru
      _
    // Predicated region
    $region38: #{tpu_custom_call.1} parent=1 // pred_check
      _
    $region39: #{tpu_custom_call.1} parent=1 // pred_check_branch
      %1548 = sbr.rel (0) target = $region41
    $region40: #{tpu_custom_call.1} parent=1 // pred_region
      %s1550 = ssub.s32 4096, 4096
      %1551 = vsyncadd [#allocation5], %s1550
      %s1552 = sshll.u32 [#allocation6], 4
      %s1553 = int_to_ptr.vmem [resolvable:$true] %s1552
      %1558 = dma.vmem_to_hbm [thread:$0]  %s1553, 4096, %s9, [#allocation5], 128, 128, 8
    $region41: #{tpu_custom_call.1} parent=1 // pred_fallthru
      _
    // Predicated region
    $region42: #{tpu_custom_call.1} parent=1 // pred_check
      _
    $region43: #{tpu_custom_call.1} parent=1 // pred_check_branch
      %1560 = sbr.rel (0) target = $region45
    $region44: #{tpu_custom_call.1} parent=1 // pred_region
      %1561 = dma.done [#allocation3], 4096
    $region45: #{tpu_custom_call.1} parent=1 // pred_fallthru
      _
    // Predicated region
    $region46: #{tpu_custom_call.1} parent=1 // pred_check
      _
    $region47: #{tpu_custom_call.1} parent=1 // pred_check_branch
      %1563 = sbr.rel (0) target = $region49
    $region48: #{tpu_custom_call.1} parent=1 // pred_region
      %1564 = dma.done [#allocation5], 4096
    $region49: #{tpu_custom_call.1} parent=1 // pred_fallthru
      _
    // Predicated region
    $region50: #{tpu_custom_call.1} parent=1 // pred_check
      _
    $region51: #{tpu_custom_call.1} parent=1 // pred_check_branch
      %1566 = sbr.rel (0) target = $region53
    $region52: #{tpu_custom_call.1} parent=1 // pred_region
      %1567 = dma.done [#allocation5], 4096
    $region53: #{tpu_custom_call.1} parent=1 // pred_fallthru
      _
    %1568 = vsyncpa [#allocation3], 1
    %1569 = vsyncpa [#allocation5], 1

</llo_original>
